<compile_context>
chip_gen: v7x
topology: tpu7x:2x2x1
jax: 0.10.0
libtpu: 0.0.40
codegen_flags: <defaults>
</compile_context>

<pallas_src>
import jax
import jax.numpy as jnp
import numpy as np
from jax.experimental import pallas as pl
from jax.experimental.pallas import tpu as pltpu

# ---------------- configuration (small, consistent with the module) ----------
IMG_SIZE = 16
PATCH = 4
IN_CH = 4
NUM_CLASSES = 10
PAD_CLASSES = 128                          # lane-dense classifier output
EMBED_DIM = 32
NUM_HEADS = 4
HEAD_DIM = EMBED_DIM // NUM_HEADS          # 8
HIDDEN_DIM = 64
NUM_LAYERS = 2
GRID = IMG_SIZE // PATCH                   # 4
SEQ = GRID * GRID                          # 16 patches
PATCH_DIM = PATCH * PATCH * IN_CH          # 64
BATCH = 2
EPS = 1e-5
NEG_BIG = -1e30                            # additive mask value (finite, safe)


# ---------------------------- fused Pallas kernel -----------------------------
def _layer_norm_rows(h, w, b):
    mu = jnp.mean(h, axis=-1, keepdims=True)
    var = jnp.mean((h - mu) ** 2, axis=-1, keepdims=True)
    return (h - mu) * jax.lax.rsqrt(var + EPS) * w + b


def vit_fused_kernel(patches_ref, pe_ref, wp_ref, bp_ref,
                     rrep_ref, hm_ref, amask_ref, bsel_ref,
                     csum_ref, fold_ref, pool_ref,
                     wqkv_ref, bqkv_ref, woexp_ref, bo_ref,
                     w1_ref, b1_ref, w2_ref, b2_ref,
                     ln1w_ref, ln1b_ref, ln2w_ref, ln2b_ref,
                     wc_ref, bc_ref, out_ref):
    f32, bf16 = jnp.float32, jnp.bfloat16
    d = EMBED_DIM
    scale = 1.0 / (HEAD_DIM ** 0.5)

    # ---- patch embedding + positional encoding (bf16 operands, f32 accum) ----
    x = (jnp.dot(patches_ref[...], wp_ref[...], preferred_element_type=f32)
         + bp_ref[...] + pe_ref[...])                       # (N*S, D) f32

    # precomputed structural constants, loaded once and reused by both layers
    rrep = rrep_ref[...]    # (NHS, N*S) bf16 : row (n,h,pos) <- activation row (n,pos)
    hm = hm_ref[...]        # (NHS, D)   f32  : 1 on the row's own head columns
    amask = amask_ref[...]  # (NHS, NHS) f32  : 0 if same (batch, head) else -1e30
    bsel = bsel_ref[...]    # (NHS, H*D) f32  : 1 where lane block == pos % H
    csum = csum_ref[...]    # (N*S, NHS) f32  : sums each group of H rows
    fold = fold_ref[...]    # (H*D, D)   f32  : folds the H lane blocks

    for l in range(NUM_LAYERS):            # static unroll (2 layers)
        xb = x.astype(bf16)

        # One row per (batch, head, position): replicate the N*S activation
        # rows to N*H*S rows with a single MXU op, then one (NHS, 3D)
        # projection.  No per-head slicing / stacking anywhere.
        xrep = jnp.dot(rrep, xb, preferred_element_type=f32).astype(bf16)
        qkv = (jnp.dot(xrep, wqkv_ref[l], preferred_element_type=f32)
               + bqkv_ref[l])                               # (NHS, 3D) f32

        q = qkv[:, 0 * d:1 * d].astype(bf16)                # full q vector / row
        k = (qkv[:, 1 * d:2 * d] * hm).astype(bf16)         # only own head's cols
        v = (qkv[:, 2 * d:3 * d] * hm).astype(bf16)

        # Lane-dense (NHS, NHS) attention: the D-wide contraction only sees
        # the row's own 8 head columns because k is zero elsewhere; cross-
        # batch / cross-head entries are killed by the additive mask BEFORE
        # the row-max subtraction, so they contribute exactly 0 to softmax.
        energy = jnp.einsum('id,jd->ij', q, k,
                            preferred_element_type=f32) * scale + amask
        energy = energy - jnp.max(energy, axis=-1, keepdims=True)
        p = jnp.exp(energy)
        attn = p * pl.reciprocal(jnp.sum(p, axis=-1, keepdims=True), approx=True)

        # row (n,h,q) holds head h's output in cols h*hd:(h+1)*hd, 0 elsewhere
        o_head = jnp.dot(attn.astype(bf16), v, preferred_element_type=f32)

        # torch's heads-NOT-transposed reshape fused with fc_out, as three
        # lane-dense matmuls against precomputed constants:
        #   woexp replicates Wo's hd-row blocks per lane block,
        #   bsel keeps the lane block selected by pos % H,
        #   csum merges each group of H rows, fold sums the H lane blocks.
        m = (jnp.dot(o_head.astype(bf16), woexp_ref[l],
                     preferred_element_type=f32) * bsel)    # (NHS, H*D)
        g = jnp.dot(csum, m, preferred_element_type=f32)    # (N*S, H*D)
        attn_out = jnp.dot(g, fold, preferred_element_type=f32) + bo_ref[l]

        # residual + LayerNorm 1 (f32)
        y1 = _layer_norm_rows(x + attn_out, ln1w_ref[l], ln1b_ref[l])

        # FeedForward
        ff = jnp.dot(y1.astype(bf16), w1_ref[l],
                     preferred_element_type=f32) + b1_ref[l]
        ff = jnp.maximum(ff, 0.0)
        ff = jnp.dot(ff.astype(bf16), w2_ref[l],
                     preferred_element_type=f32) + b2_ref[l]

        # residual + LayerNorm 2 (f32)
        x = _layer_norm_rows(y1 + ff, ln2w_ref[l], ln2b_ref[l])

    # ---- mean pool over the sequence (one matmul) + padded classifier -------
    pooled = jnp.dot(pool_ref[...], x, preferred_element_type=f32)   # (N, D)
    out_ref[...] = (jnp.dot(pooled.astype(bf16), wc_ref[...],
                            preferred_element_type=f32) + bc_ref[...])


# ----------------------------- wrapper ----------------------------------------
def vit_pallas(patches, prep):
    args = (patches, prep['pe'], prep['wp'], prep['bp'],
            prep['rrep'], prep['hm'], prep['amask'], prep['bsel'],
            prep['csum'], prep['fold'], prep['pool'],
            prep['wqkv'], prep['bqkv'], prep['woexp'], prep['bo'],
            prep['w1'], prep['b1'], prep['w2'], prep['b2'],
            prep['ln1w'], prep['ln1b'], prep['ln2w'], prep['ln2b'],
            prep['wc'], prep['bc'])
    n = prep['pool'].shape[0]
    logits_pad = pl.pallas_call(
        vit_fused_kernel,
        out_shape=jax.ShapeDtypeStruct((n, PAD_CLASSES), jnp.float32),
        in_specs=[pl.BlockSpec(memory_space=pltpu.MemorySpace.VMEM)
                  for _ in args],
        out_specs=pl.BlockSpec(memory_space=pltpu.MemorySpace.VMEM),
    )(*args)
    return logits_pad[:, :NUM_CLASSES]


def extract_patches(x):
    # Matches x.unfold(2,p,p).unfold(3,p,p).contiguous().view(N, -1, p*p*C)
    n, c, h, w = x.shape
    gh, gw = h // PATCH, w // PATCH
    p = x.reshape(n, c, gh, PATCH, gw, PATCH).transpose(0, 1, 2, 4, 3, 5)
    return p.reshape(n, -1, PATCH * PATCH * c)


@jax.jit
def vit_forward(x, prep):
    n = x.shape[0]
    # prepare_params bakes the batch size into pe and the structural constants
    assert n * SEQ == prep['pe'].shape[0], "batch must match prepare_params()"
    patches = extract_patches(x).reshape(n * SEQ, PATCH_DIM).astype(jnp.bfloat16)
    return vit_pallas(patches, prep)


# -------------- one-time parameter / constant preprocessing -------------------
def _structural_constants(batch):
    """0/1 matrices that express replication, head masking, the torch head
    scramble and mean pooling as lane-dense matmuls (built once, host-side)."""
    nhs = batch * NUM_HEADS * SEQ
    i = np.arange(nhs)
    n_i = i // (NUM_HEADS * SEQ)
    h_i = (i // SEQ) % NUM_HEADS
    q_i = i % SEQ
    col = np.arange(NUM_HEADS * EMBED_DIM)

    rrep = (np.arange(batch * SEQ)[None, :] == (n_i * SEQ + q_i)[:, None])
    hm = (np.arange(EMBED_DIM)[None, :] // HEAD_DIM == h_i[:, None])
    same = (n_i[:, None] == n_i[None, :]) & (h_i[:, None] == h_i[None, :])
    amask = np.where(same, 0.0, NEG_BIG)
    bsel = (col[None, :] // EMBED_DIM == (q_i % NUM_HEADS)[:, None])
    csum = (np.arange(nhs)[None, :] // NUM_HEADS
            == np.arange(batch * SEQ)[:, None])
    fold = (col[:, None] % EMBED_DIM == np.arange(EMBED_DIM)[None, :])
    pool = (np.arange(batch * SEQ)[None, :] // SEQ
            == np.arange(batch)[:, None]).astype(np.float32) / SEQ

    return {
        'rrep': jnp.asarray(rrep, jnp.float32).astype(jnp.bfloat16),
        'hm': jnp.asarray(hm, jnp.float32),
        'amask': jnp.asarray(amask, jnp.float32),
        'bsel': jnp.asarray(bsel, jnp.float32),
        'csum': jnp.asarray(csum, jnp.float32),
        'fold': jnp.asarray(fold, jnp.float32),
        'pool': jnp.asarray(pool, jnp.float32),
    }


def _expand_wo(wo):
    """(D, H*D): lane block b holds Wo.T rows b*hd:(b+1)*hd replicated over
    every head position, so o_head @ woexp computes all b-variants at once."""
    wo_t = np.asarray(wo).T                                   # (D_in, D_out)
    blocks = [np.tile(wo_t[b * HEAD_DIM:(b + 1) * HEAD_DIM, :], (NUM_HEADS, 1))
              for b in range(NUM_HEADS)]
    return np.concatenate(blocks, axis=1)


def prepare_params(params, pe, batch):
    bf16 = jnp.bfloat16
    blocks = params['blocks']

    def stack(fn):
        return jnp.stack([fn(blk) for blk in blocks], axis=0)

    wc_pad = np.zeros((EMBED_DIM, PAD_CLASSES), np.float32)
    wc_pad[:, :NUM_CLASSES] = np.asarray(params['wc']).T
    bc_pad = np.zeros((1, PAD_CLASSES), np.float32)
    bc_pad[0, :NUM_CLASSES] = np.asarray(params['bc'])

    prep = {
        'wp': params['wp'].T.astype(bf16),                       # (PATCH_DIM, D)
        'bp': params['bp'].reshape(1, -1),
        'pe': jnp.tile(pe, (batch, 1)),                          # (N*S, D)
        'wqkv': stack(lambda b: jnp.concatenate(
            [b['wq'], b['wk'], b['wv']], axis=0).T).astype(bf16),  # (L, D, 3D)
        'bqkv': stack(lambda b: jnp.concatenate(
            [b['bq'], b['bk'], b['bv']]).reshape(1, -1)),          # (L, 1, 3D)
        'woexp': jnp.asarray(
            np.stack([_expand_wo(b['wo']) for b in blocks], axis=0),
            jnp.float32).astype(bf16),                           # (L, D, H*D)
        'bo': stack(lambda b: b['bo'].reshape(1, -1)),
        'w1': stack(lambda b: b['w1'].T).astype(bf16),           # (L, D, HID)
        'b1': stack(lambda b: b['b1'].reshape(1, -1)),
        'w2': stack(lambda b: b['w2'].T).astype(bf16),           # (L, HID, D)
        'b2': stack(lambda b: b['b2'].reshape(1, -1)),
        'ln1w': stack(lambda b: b['ln1w'].reshape(1, -1)),
        'ln1b': stack(lambda b: b['ln1b'].reshape(1, -1)),
        'ln2w': stack(lambda b: b['ln2w'].reshape(1, -1)),
        'ln2b': stack(lambda b: b['ln2b'].reshape(1, -1)),
        'wc': jnp.asarray(wc_pad).astype(bf16),                  # (D, 128)
        'bc': jnp.asarray(bc_pad),                               # (1, 128)
    }
    prep.update(_structural_constants(batch))
    return prep


# ---------------------- params / positional encoding -------------------------
def make_pe(seq_len, dim):
    position = np.arange(seq_len, dtype=np.float32)[:, None]
    div_term = np.exp(np.arange(0, dim, 2, dtype=np.float32) *
                      (-np.log(10000.0) / dim))
    pe = np.zeros((seq_len, dim), dtype=np.float32)
    pe[:, 0::2] = np.sin(position * div_term)
    pe[:, 1::2] = np.cos(position * div_term)
    return jnp.asarray(pe)


def init_params(key):
    def lin(k, out_dim, in_dim, scale=0.1):
        kw, kb = jax.random.split(k)
        w = jax.random.normal(kw, (out_dim, in_dim), jnp.float32) * scale
        b = jax.random.normal(kb, (out_dim,), jnp.float32) * 0.01
        return w, b

    keys = jax.random.split(key, 2 + NUM_LAYERS)
    params = {}
    params['wp'], params['bp'] = lin(keys[0], EMBED_DIM, PATCH_DIM)
    params['wc'], params['bc'] = lin(keys[1], NUM_CLASSES, EMBED_DIM)
    params['blocks'] = []
    for l in range(NUM_LAYERS):
        ks = jax.random.split(keys[2 + l], 6)
        blk = {}
        blk['wq'], blk['bq'] = lin(ks[0], EMBED_DIM, EMBED_DIM)
        blk['wk'], blk['bk'] = lin(ks[1], EMBED_DIM, EMBED_DIM)
        blk['wv'], blk['bv'] = lin(ks[2], EMBED_DIM, EMBED_DIM)
        blk['wo'], blk['bo'] = lin(ks[3], EMBED_DIM, EMBED_DIM)
        blk['w1'], blk['b1'] = lin(ks[4], HIDDEN_DIM, EMBED_DIM)
        blk['w2'], blk['b2'] = lin(ks[5], EMBED_DIM, HIDDEN_DIM)
        blk['ln1w'] = jnp.ones((EMBED_DIM,), jnp.float32)
        blk['ln1b'] = jnp.zeros((EMBED_DIM,), jnp.float32)
        blk['ln2w'] = jnp.ones((EMBED_DIM,), jnp.float32)
        blk['ln2b'] = jnp.zeros((EMBED_DIM,), jnp.float32)
        params['blocks'].append(blk)
    return params


# ------------------------- pure-JAX (f32) reference ---------------------------
def _layer_norm(x, w, b):
    mu = x.mean(-1, keepdims=True)
    var = ((x - mu) ** 2).mean(-1, keepdims=True)
    return (x - mu) * jax.lax.rsqrt(var + EPS) * w + b


def reference_forward(x, params, pe):
    n = x.shape[0]
    patches = extract_patches(x)
    h = patches @ params['wp'].T + params['bp']
    h = h + pe[None, :, :]
    for blk in params['blocks']:
        q = (h @ blk['wq'].T + blk['bq']).reshape(n, SEQ, NUM_HEADS, HEAD_DIM).transpose(0, 2, 1, 3)
        k = (h @ blk['wk'].T + blk['bk']).reshape(n, SEQ, NUM_HEADS, HEAD_DIM).transpose(0, 2, 1, 3)
        v = (h @ blk['wv'].T + blk['bv']).reshape(n, SEQ, NUM_HEADS, HEAD_DIM).transpose(0, 2, 1, 3)
        energy = jnp.einsum('nhqd,nhkd->nhqk', q, k)
        attn = jax.nn.softmax(energy / (HEAD_DIM ** 0.5), axis=3)
        # NOTE: reshape WITHOUT transposing heads back — matches the torch module.
        out = jnp.einsum('nhql,nhld->nhqd', attn, v).reshape(n, SEQ, EMBED_DIM)
        out = out @ blk['wo'].T + blk['bo']
        h = _layer_norm(h + out, blk['ln1w'], blk['ln1b'])
        f = jnp.maximum(h @ blk['w1'].T + blk['b1'], 0.0) @ blk['w2'].T + blk['b2']
        h = _layer_norm(h + f, blk['ln2w'], blk['ln2b'])
    pooled = h.mean(axis=1)
    return pooled @ params['wc'].T + params['bc']


# --------------------------------- main ----------------------------------------
if __name__ == "__main__":
    key = jax.random.PRNGKey(0)
    pkey, xkey = jax.random.split(key)
    params = init_params(pkey)
    x = jax.random.normal(xkey, (BATCH, IN_CH, IMG_SIZE, IMG_SIZE), jnp.float32)
    pe = make_pe(SEQ, EMBED_DIM)
    prep = prepare_params(params, pe, BATCH)

    out = jax.block_until_ready(vit_forward(x, prep))
    ref = jax.block_until_ready(reference_forward(x, params, pe))

    assert out.shape == (BATCH, NUM_CLASSES)
    # Kernel uses bf16 matmul operands with f32 accumulation; compare against
    # the f32 reference with a bf16-appropriate tolerance.
    np.testing.assert_allclose(np.asarray(out), np.asarray(ref),
                               rtol=2e-2, atol=2e-2)
    print("KERNEL_OK")
</pallas_src>

<mosaic_0001>
module attributes {stable_mosaic.version = 11 : i64} {
  func.func @vit_fused_kernel(%arg0: memref<32x64xbf16, #tpu.memory_space<vmem>>, %arg1: memref<32x32xf32, #tpu.memory_space<vmem>>, %arg2: memref<64x32xbf16, #tpu.memory_space<vmem>>, %arg3: memref<1x32xf32, #tpu.memory_space<vmem>>, %arg4: memref<128x32xbf16, #tpu.memory_space<vmem>>, %arg5: memref<128x32xf32, #tpu.memory_space<vmem>>, %arg6: memref<128x128xf32, #tpu.memory_space<vmem>>, %arg7: memref<128x128xf32, #tpu.memory_space<vmem>>, %arg8: memref<32x128xf32, #tpu.memory_space<vmem>>, %arg9: memref<128x32xf32, #tpu.memory_space<vmem>>, %arg10: memref<2x32xf32, #tpu.memory_space<vmem>>, %arg11: memref<2x32x96xbf16, #tpu.memory_space<vmem>>, %arg12: memref<2x1x96xf32, #tpu.memory_space<vmem>>, %arg13: memref<2x32x128xbf16, #tpu.memory_space<vmem>>, %arg14: memref<2x1x32xf32, #tpu.memory_space<vmem>>, %arg15: memref<2x32x64xbf16, #tpu.memory_space<vmem>>, %arg16: memref<2x1x64xf32, #tpu.memory_space<vmem>>, %arg17: memref<2x64x32xbf16, #tpu.memory_space<vmem>>, %arg18: memref<2x1x32xf32, #tpu.memory_space<vmem>>, %arg19: memref<2x1x32xf32, #tpu.memory_space<vmem>>, %arg20: memref<2x1x32xf32, #tpu.memory_space<vmem>>, %arg21: memref<2x1x32xf32, #tpu.memory_space<vmem>>, %arg22: memref<2x1x32xf32, #tpu.memory_space<vmem>>, %arg23: memref<32x128xbf16, #tpu.memory_space<vmem>>, %arg24: memref<1x128xf32, #tpu.memory_space<vmem>>, %arg25: memref<2x128xf32, #tpu.memory_space<vmem>>) attributes {dimension_semantics = [], scalar_prefetch = 0 : i64, scratch_operands = 0 : i64, tpu.core_type = #tpu.core_type<tc>} {
    %c0 = arith.constant 0 : index
    %c0_0 = arith.constant 0 : index
    %0 = vector.load %arg0[%c0, %c0_0] : memref<32x64xbf16, #tpu.memory_space<vmem>>, vector<32x64xbf16>
    %c0_1 = arith.constant 0 : index
    %c0_2 = arith.constant 0 : index
    %1 = vector.load %arg2[%c0_1, %c0_2] : memref<64x32xbf16, #tpu.memory_space<vmem>>, vector<64x32xbf16>
    %cst = arith.constant dense<0.000000e+00> : vector<32x32xf32>
    %2 = tpu.matmul %0, %1, %cst {dimension_numbers = #tpu.dot_dimension_numbers<[1], [0], [0], [1], [0, 0, 1, 1], [], []>} : vector<32x64xbf16>, vector<64x32xbf16>, vector<32x32xf32> -> vector<32x32xf32>
    %c0_3 = arith.constant 0 : index
    %c0_4 = arith.constant 0 : index
    %3 = vector.load %arg3[%c0_3, %c0_4] : memref<1x32xf32, #tpu.memory_space<vmem>>, vector<1x32xf32>
    %4 = vector.broadcast %3 : vector<1x32xf32> to vector<32x32xf32>
    %5 = arith.addf %2, %4 : vector<32x32xf32>
    %c0_5 = arith.constant 0 : index
    %c0_6 = arith.constant 0 : index
    %6 = vector.load %arg1[%c0_5, %c0_6] : memref<32x32xf32, #tpu.memory_space<vmem>>, vector<32x32xf32>
    %7 = arith.addf %5, %6 : vector<32x32xf32>
    %c0_7 = arith.constant 0 : index
    %c0_8 = arith.constant 0 : index
    %8 = vector.load %arg4[%c0_7, %c0_8] : memref<128x32xbf16, #tpu.memory_space<vmem>>, vector<128x32xbf16>
    %c0_9 = arith.constant 0 : index
    %c0_10 = arith.constant 0 : index
    %9 = vector.load %arg5[%c0_9, %c0_10] : memref<128x32xf32, #tpu.memory_space<vmem>>, vector<128x32xf32>
    %c0_11 = arith.constant 0 : index
    %c0_12 = arith.constant 0 : index
    %10 = vector.load %arg6[%c0_11, %c0_12] : memref<128x128xf32, #tpu.memory_space<vmem>>, vector<128x128xf32>
    %c0_13 = arith.constant 0 : index
    %c0_14 = arith.constant 0 : index
    %11 = vector.load %arg7[%c0_13, %c0_14] : memref<128x128xf32, #tpu.memory_space<vmem>>, vector<128x128xf32>
    %c0_15 = arith.constant 0 : index
    %c0_16 = arith.constant 0 : index
    %12 = vector.load %arg8[%c0_15, %c0_16] : memref<32x128xf32, #tpu.memory_space<vmem>>, vector<32x128xf32>
    %c0_17 = arith.constant 0 : index
    %c0_18 = arith.constant 0 : index
    %13 = vector.load %arg9[%c0_17, %c0_18] : memref<128x32xf32, #tpu.memory_space<vmem>>, vector<128x32xf32>
    %14 = arith.truncf %7 : vector<32x32xf32> to vector<32x32xbf16>
    %cst_19 = arith.constant dense<0.000000e+00> : vector<128x32xf32>
    %15 = tpu.matmul %8, %14, %cst_19 {dimension_numbers = #tpu.dot_dimension_numbers<[1], [0], [0], [1], [0, 0, 1, 1], [], []>} : vector<128x32xbf16>, vector<32x32xbf16>, vector<128x32xf32> -> vector<128x32xf32>
    %16 = arith.truncf %15 : vector<128x32xf32> to vector<128x32xbf16>
    %c0_20 = arith.constant 0 : index
    %c0_21 = arith.constant 0 : index
    %c0_22 = arith.constant 0 : index
    %17 = vector.load %arg11[%c0_20, %c0_21, %c0_22] : memref<2x32x96xbf16, #tpu.memory_space<vmem>>, vector<1x32x96xbf16>
    %18 = vector.shape_cast %17 : vector<1x32x96xbf16> to vector<32x96xbf16>
    %cst_23 = arith.constant dense<0.000000e+00> : vector<128x96xf32>
    %19 = tpu.matmul %16, %18, %cst_23 {dimension_numbers = #tpu.dot_dimension_numbers<[1], [0], [0], [1], [0, 0, 1, 1], [], []>} : vector<128x32xbf16>, vector<32x96xbf16>, vector<128x96xf32> -> vector<128x96xf32>
    %c0_24 = arith.constant 0 : index
    %c0_25 = arith.constant 0 : index
    %c0_26 = arith.constant 0 : index
    %20 = vector.load %arg12[%c0_24, %c0_25, %c0_26] : memref<2x1x96xf32, #tpu.memory_space<vmem>>, vector<1x1x96xf32>
    %21 = vector.shape_cast %20 : vector<1x1x96xf32> to vector<1x96xf32>
    %22 = vector.broadcast %21 : vector<1x96xf32> to vector<128x96xf32>
    %23 = arith.addf %19, %22 : vector<128x96xf32>
    %24 = vector.extract_strided_slice %23 {offsets = [0, 0], sizes = [128, 32], strides = [1, 1]} : vector<128x96xf32> to vector<128x32xf32>
    %25 = arith.truncf %24 : vector<128x32xf32> to vector<128x32xbf16>
    %26 = vector.extract_strided_slice %23 {offsets = [0, 32], sizes = [128, 32], strides = [1, 1]} : vector<128x96xf32> to vector<128x32xf32>
    %27 = arith.mulf %26, %9 : vector<128x32xf32>
    %28 = arith.truncf %27 : vector<128x32xf32> to vector<128x32xbf16>
    %29 = vector.extract_strided_slice %23 {offsets = [0, 64], sizes = [128, 32], strides = [1, 1]} : vector<128x96xf32> to vector<128x32xf32>
    %30 = arith.mulf %29, %9 : vector<128x32xf32>
    %31 = arith.truncf %30 : vector<128x32xf32> to vector<128x32xbf16>
    "tpu.trace_start"() <{level = 10 : i32, message = "id,jd->ij"}> : () -> ()
    %cst_27 = arith.constant dense<0.000000e+00> : vector<128x128xf32>
    %32 = tpu.matmul %25, %28, %cst_27 {dimension_numbers = #tpu.dot_dimension_numbers<[1], [1], [0], [0], [0, 0, 1, 0], [], []>} : vector<128x32xbf16>, vector<128x32xbf16>, vector<128x128xf32> -> vector<128x128xf32>
    "tpu.trace_stop"() : () -> ()
    %cst_28 = arith.constant 0.353553385 : f32
    %33 = vector.broadcast %cst_28 : f32 to vector<128x128xf32>
    %34 = arith.mulf %32, %33 : vector<128x128xf32>
    %35 = arith.addf %34, %10 : vector<128x128xf32>
    %cst_29 = arith.constant dense<0xFF800000> : vector<128xf32>
    %36 = vector.multi_reduction <maximumf>, %35, %cst_29 [1] : vector<128x128xf32> to vector<128xf32>
    %37 = vector.shape_cast %36 : vector<128xf32> to vector<128x1xf32>
    %38 = vector.broadcast %37 : vector<128x1xf32> to vector<128x128xf32>
    %39 = arith.subf %35, %38 : vector<128x128xf32>
    %40 = math.exp %39 : vector<128x128xf32>
    %cst_30 = arith.constant dense<0.000000e+00> : vector<128xf32>
    %41 = vector.multi_reduction <add>, %40, %cst_30 [1] : vector<128x128xf32> to vector<128xf32>
    %42 = vector.shape_cast %41 : vector<128xf32> to vector<128x1xf32>
    %43 = tpu.reciprocal %42 {approx = true} : vector<128x1xf32> -> vector<128x1xf32>
    %44 = vector.broadcast %43 : vector<128x1xf32> to vector<128x128xf32>
    %45 = arith.mulf %40, %44 : vector<128x128xf32>
    %46 = arith.truncf %45 : vector<128x128xf32> to vector<128x128xbf16>
    %cst_31 = arith.constant dense<0.000000e+00> : vector<128x32xf32>
    %47 = tpu.matmul %46, %31, %cst_31 {dimension_numbers = #tpu.dot_dimension_numbers<[1], [0], [0], [1], [0, 0, 1, 1], [], []>} : vector<128x128xbf16>, vector<128x32xbf16>, vector<128x32xf32> -> vector<128x32xf32>
    %48 = arith.truncf %47 : vector<128x32xf32> to vector<128x32xbf16>
    %c0_32 = arith.constant 0 : index
    %c0_33 = arith.constant 0 : index
    %c0_34 = arith.constant 0 : index
    %49 = vector.load %arg13[%c0_32, %c0_33, %c0_34] : memref<2x32x128xbf16, #tpu.memory_space<vmem>>, vector<1x32x128xbf16>
    %50 = vector.shape_cast %49 : vector<1x32x128xbf16> to vector<32x128xbf16>
    %cst_35 = arith.constant dense<0.000000e+00> : vector<128x128xf32>
    %51 = tpu.matmul %48, %50, %cst_35 {dimension_numbers = #tpu.dot_dimension_numbers<[1], [0], [0], [1], [0, 0, 1, 1], [], []>} : vector<128x32xbf16>, vector<32x128xbf16>, vector<128x128xf32> -> vector<128x128xf32>
    %52 = arith.mulf %51, %11 : vector<128x128xf32>
    %cst_36 = arith.constant dense<0.000000e+00> : vector<32x128xf32>
    %53 = tpu.matmul %12, %52, %cst_36 {dimension_numbers = #tpu.dot_dimension_numbers<[1], [0], [0], [1], [0, 0, 1, 1], [], []>} : vector<32x128xf32>, vector<128x128xf32>, vector<32x128xf32> -> vector<32x128xf32>
    %cst_37 = arith.constant dense<0.000000e+00> : vector<32x32xf32>
    %54 = tpu.matmul %53, %13, %cst_37 {dimension_numbers = #tpu.dot_dimension_numbers<[1], [0], [0], [1], [0, 0, 1, 1], [], []>} : vector<32x128xf32>, vector<128x32xf32>, vector<32x32xf32> -> vector<32x32xf32>
    %c0_38 = arith.constant 0 : index
    %c0_39 = arith.constant 0 : index
    %c0_40 = arith.constant 0 : index
    %55 = vector.load %arg14[%c0_38, %c0_39, %c0_40] : memref<2x1x32xf32, #tpu.memory_space<vmem>>, vector<1x1x32xf32>
    %56 = vector.shape_cast %55 : vector<1x1x32xf32> to vector<1x32xf32>
    %57 = vector.broadcast %56 : vector<1x32xf32> to vector<32x32xf32>
    %58 = arith.addf %54, %57 : vector<32x32xf32>
    %59 = arith.addf %7, %58 : vector<32x32xf32>
    %c0_41 = arith.constant 0 : index
    %c0_42 = arith.constant 0 : index
    %c0_43 = arith.constant 0 : index
    %60 = vector.load %arg19[%c0_41, %c0_42, %c0_43] : memref<2x1x32xf32, #tpu.memory_space<vmem>>, vector<1x1x32xf32>
    %61 = vector.shape_cast %60 : vector<1x1x32xf32> to vector<1x32xf32>
    %c0_44 = arith.constant 0 : index
    %c0_45 = arith.constant 0 : index
    %c0_46 = arith.constant 0 : index
    %62 = vector.load %arg20[%c0_44, %c0_45, %c0_46] : memref<2x1x32xf32, #tpu.memory_space<vmem>>, vector<1x1x32xf32>
    %63 = vector.shape_cast %62 : vector<1x1x32xf32> to vector<1x32xf32>
    %cst_47 = arith.constant dense<0.000000e+00> : vector<32xf32>
    %64 = vector.multi_reduction <add>, %59, %cst_47 [1] : vector<32x32xf32> to vector<32xf32>
    %65 = vector.shape_cast %64 : vector<32xf32> to vector<32x1xf32>
    %cst_48 = arith.constant 3.200000e+01 : f32
    %66 = vector.broadcast %cst_48 : f32 to vector<32x1xf32>
    %67 = arith.divf %65, %66 : vector<32x1xf32>
    %68 = vector.broadcast %67 : vector<32x1xf32> to vector<32x32xf32>
    %69 = arith.subf %59, %68 : vector<32x32xf32>
    %70 = arith.mulf %69, %69 : vector<32x32xf32>
    %cst_49 = arith.constant dense<0.000000e+00> : vector<32xf32>
    %71 = vector.multi_reduction <add>, %70, %cst_49 [1] : vector<32x32xf32> to vector<32xf32>
    %72 = vector.shape_cast %71 : vector<32xf32> to vector<32x1xf32>
    %cst_50 = arith.constant 3.200000e+01 : f32
    %73 = vector.broadcast %cst_50 : f32 to vector<32x1xf32>
    %74 = arith.divf %72, %73 : vector<32x1xf32>
    %75 = vector.broadcast %67 : vector<32x1xf32> to vector<32x32xf32>
    %76 = arith.subf %59, %75 : vector<32x32xf32>
    %cst_51 = arith.constant 9.99999974E-6 : f32
    %77 = vector.broadcast %cst_51 : f32 to vector<32x1xf32>
    %78 = arith.addf %74, %77 : vector<32x1xf32>
    %79 = math.rsqrt %78 : vector<32x1xf32>
    %80 = vector.broadcast %79 : vector<32x1xf32> to vector<32x32xf32>
    %81 = arith.mulf %76, %80 : vector<32x32xf32>
    %82 = vector.broadcast %61 : vector<1x32xf32> to vector<32x32xf32>
    %83 = arith.mulf %81, %82 : vector<32x32xf32>
    %84 = vector.broadcast %63 : vector<1x32xf32> to vector<32x32xf32>
    %85 = arith.addf %83, %84 : vector<32x32xf32>
    %86 = arith.truncf %85 : vector<32x32xf32> to vector<32x32xbf16>
    %c0_52 = arith.constant 0 : index
    %c0_53 = arith.constant 0 : index
    %c0_54 = arith.constant 0 : index
    %87 = vector.load %arg15[%c0_52, %c0_53, %c0_54] : memref<2x32x64xbf16, #tpu.memory_space<vmem>>, vector<1x32x64xbf16>
    %88 = vector.shape_cast %87 : vector<1x32x64xbf16> to vector<32x64xbf16>
    %cst_55 = arith.constant dense<0.000000e+00> : vector<32x64xf32>
    %89 = tpu.matmul %86, %88, %cst_55 {dimension_numbers = #tpu.dot_dimension_numbers<[1], [0], [0], [1], [0, 0, 1, 1], [], []>} : vector<32x32xbf16>, vector<32x64xbf16>, vector<32x64xf32> -> vector<32x64xf32>
    %c0_56 = arith.constant 0 : index
    %c0_57 = arith.constant 0 : index
    %c0_58 = arith.constant 0 : index
    %90 = vector.load %arg16[%c0_56, %c0_57, %c0_58] : memref<2x1x64xf32, #tpu.memory_space<vmem>>, vector<1x1x64xf32>
    %91 = vector.shape_cast %90 : vector<1x1x64xf32> to vector<1x64xf32>
    %92 = vector.broadcast %91 : vector<1x64xf32> to vector<32x64xf32>
    %93 = arith.addf %89, %92 : vector<32x64xf32>
    %cst_59 = arith.constant 0.000000e+00 : f32
    %94 = vector.broadcast %cst_59 : f32 to vector<32x64xf32>
    %95 = arith.maximumf %93, %94 : vector<32x64xf32>
    %96 = arith.truncf %95 : vector<32x64xf32> to vector<32x64xbf16>
    %c0_60 = arith.constant 0 : index
    %c0_61 = arith.constant 0 : index
    %c0_62 = arith.constant 0 : index
    %97 = vector.load %arg17[%c0_60, %c0_61, %c0_62] : memref<2x64x32xbf16, #tpu.memory_space<vmem>>, vector<1x64x32xbf16>
    %98 = vector.shape_cast %97 : vector<1x64x32xbf16> to vector<64x32xbf16>
    %cst_63 = arith.constant dense<0.000000e+00> : vector<32x32xf32>
    %99 = tpu.matmul %96, %98, %cst_63 {dimension_numbers = #tpu.dot_dimension_numbers<[1], [0], [0], [1], [0, 0, 1, 1], [], []>} : vector<32x64xbf16>, vector<64x32xbf16>, vector<32x32xf32> -> vector<32x32xf32>
    %c0_64 = arith.constant 0 : index
    %c0_65 = arith.constant 0 : index
    %c0_66 = arith.constant 0 : index
    %100 = vector.load %arg18[%c0_64, %c0_65, %c0_66] : memref<2x1x32xf32, #tpu.memory_space<vmem>>, vector<1x1x32xf32>
    %101 = vector.shape_cast %100 : vector<1x1x32xf32> to vector<1x32xf32>
    %102 = vector.broadcast %101 : vector<1x32xf32> to vector<32x32xf32>
    %103 = arith.addf %99, %102 : vector<32x32xf32>
    %104 = arith.addf %85, %103 : vector<32x32xf32>
    %c0_67 = arith.constant 0 : index
    %c0_68 = arith.constant 0 : index
    %c0_69 = arith.constant 0 : index
    %105 = vector.load %arg21[%c0_67, %c0_68, %c0_69] : memref<2x1x32xf32, #tpu.memory_space<vmem>>, vector<1x1x32xf32>
    %106 = vector.shape_cast %105 : vector<1x1x32xf32> to vector<1x32xf32>
    %c0_70 = arith.constant 0 : index
    %c0_71 = arith.constant 0 : index
    %c0_72 = arith.constant 0 : index
    %107 = vector.load %arg22[%c0_70, %c0_71, %c0_72] : memref<2x1x32xf32, #tpu.memory_space<vmem>>, vector<1x1x32xf32>
    %108 = vector.shape_cast %107 : vector<1x1x32xf32> to vector<1x32xf32>
    %cst_73 = arith.constant dense<0.000000e+00> : vector<32xf32>
    %109 = vector.multi_reduction <add>, %104, %cst_73 [1] : vector<32x32xf32> to vector<32xf32>
    %110 = vector.shape_cast %109 : vector<32xf32> to vector<32x1xf32>
    %cst_74 = arith.constant 3.200000e+01 : f32
    %111 = vector.broadcast %cst_74 : f32 to vector<32x1xf32>
    %112 = arith.divf %110, %111 : vector<32x1xf32>
    %113 = vector.broadcast %112 : vector<32x1xf32> to vector<32x32xf32>
    %114 = arith.subf %104, %113 : vector<32x32xf32>
    %115 = arith.mulf %114, %114 : vector<32x32xf32>
    %cst_75 = arith.constant dense<0.000000e+00> : vector<32xf32>
    %116 = vector.multi_reduction <add>, %115, %cst_75 [1] : vector<32x32xf32> to vector<32xf32>
    %117 = vector.shape_cast %116 : vector<32xf32> to vector<32x1xf32>
    %cst_76 = arith.constant 3.200000e+01 : f32
    %118 = vector.broadcast %cst_76 : f32 to vector<32x1xf32>
    %119 = arith.divf %117, %118 : vector<32x1xf32>
    %120 = vector.broadcast %112 : vector<32x1xf32> to vector<32x32xf32>
    %121 = arith.subf %104, %120 : vector<32x32xf32>
    %cst_77 = arith.constant 9.99999974E-6 : f32
    %122 = vector.broadcast %cst_77 : f32 to vector<32x1xf32>
    %123 = arith.addf %119, %122 : vector<32x1xf32>
    %124 = math.rsqrt %123 : vector<32x1xf32>
    %125 = vector.broadcast %124 : vector<32x1xf32> to vector<32x32xf32>
    %126 = arith.mulf %121, %125 : vector<32x32xf32>
    %127 = vector.broadcast %106 : vector<1x32xf32> to vector<32x32xf32>
    %128 = arith.mulf %126, %127 : vector<32x32xf32>
    %129 = vector.broadcast %108 : vector<1x32xf32> to vector<32x32xf32>
    %130 = arith.addf %128, %129 : vector<32x32xf32>
    %131 = arith.truncf %130 : vector<32x32xf32> to vector<32x32xbf16>
    %cst_78 = arith.constant dense<0.000000e+00> : vector<128x32xf32>
    %132 = tpu.matmul %8, %131, %cst_78 {dimension_numbers = #tpu.dot_dimension_numbers<[1], [0], [0], [1], [0, 0, 1, 1], [], []>} : vector<128x32xbf16>, vector<32x32xbf16>, vector<128x32xf32> -> vector<128x32xf32>
    %133 = arith.truncf %132 : vector<128x32xf32> to vector<128x32xbf16>
    %c1 = arith.constant 1 : index
    %c0_79 = arith.constant 0 : index
    %c0_80 = arith.constant 0 : index
    %134 = vector.load %arg11[%c1, %c0_79, %c0_80] : memref<2x32x96xbf16, #tpu.memory_space<vmem>>, vector<1x32x96xbf16>
    %135 = vector.shape_cast %134 : vector<1x32x96xbf16> to vector<32x96xbf16>
    %cst_81 = arith.constant dense<0.000000e+00> : vector<128x96xf32>
    %136 = tpu.matmul %133, %135, %cst_81 {dimension_numbers = #tpu.dot_dimension_numbers<[1], [0], [0], [1], [0, 0, 1, 1], [], []>} : vector<128x32xbf16>, vector<32x96xbf16>, vector<128x96xf32> -> vector<128x96xf32>
    %c1_82 = arith.constant 1 : index
    %c0_83 = arith.constant 0 : index
    %c0_84 = arith.constant 0 : index
    %137 = vector.load %arg12[%c1_82, %c0_83, %c0_84] : memref<2x1x96xf32, #tpu.memory_space<vmem>>, vector<1x1x96xf32>
    %138 = vector.shape_cast %137 : vector<1x1x96xf32> to vector<1x96xf32>
    %139 = vector.broadcast %138 : vector<1x96xf32> to vector<128x96xf32>
    %140 = arith.addf %136, %139 : vector<128x96xf32>
    %141 = vector.extract_strided_slice %140 {offsets = [0, 0], sizes = [128, 32], strides = [1, 1]} : vector<128x96xf32> to vector<128x32xf32>
    %142 = arith.truncf %141 : vector<128x32xf32> to vector<128x32xbf16>
    %143 = vector.extract_strided_slice %140 {offsets = [0, 32], sizes = [128, 32], strides = [1, 1]} : vector<128x96xf32> to vector<128x32xf32>
    %144 = arith.mulf %143, %9 : vector<128x32xf32>
    %145 = arith.truncf %144 : vector<128x32xf32> to vector<128x32xbf16>
    %146 = vector.extract_strided_slice %140 {offsets = [0, 64], sizes = [128, 32], strides = [1, 1]} : vector<128x96xf32> to vector<128x32xf32>
    %147 = arith.mulf %146, %9 : vector<128x32xf32>
    %148 = arith.truncf %147 : vector<128x32xf32> to vector<128x32xbf16>
    "tpu.trace_start"() <{level = 10 : i32, message = "id,jd->ij"}> : () -> ()
    %cst_85 = arith.constant dense<0.000000e+00> : vector<128x128xf32>
    %149 = tpu.matmul %142, %145, %cst_85 {dimension_numbers = #tpu.dot_dimension_numbers<[1], [1], [0], [0], [0, 0, 1, 0], [], []>} : vector<128x32xbf16>, vector<128x32xbf16>, vector<128x128xf32> -> vector<128x128xf32>
    "tpu.trace_stop"() : () -> ()
    %cst_86 = arith.constant 0.353553385 : f32
    %150 = vector.broadcast %cst_86 : f32 to vector<128x128xf32>
    %151 = arith.mulf %149, %150 : vector<128x128xf32>
    %152 = arith.addf %151, %10 : vector<128x128xf32>
    %cst_87 = arith.constant dense<0xFF800000> : vector<128xf32>
    %153 = vector.multi_reduction <maximumf>, %152, %cst_87 [1] : vector<128x128xf32> to vector<128xf32>
    %154 = vector.shape_cast %153 : vector<128xf32> to vector<128x1xf32>
    %155 = vector.broadcast %154 : vector<128x1xf32> to vector<128x128xf32>
    %156 = arith.subf %152, %155 : vector<128x128xf32>
    %157 = math.exp %156 : vector<128x128xf32>
    %cst_88 = arith.constant dense<0.000000e+00> : vector<128xf32>
    %158 = vector.multi_reduction <add>, %157, %cst_88 [1] : vector<128x128xf32> to vector<128xf32>
    %159 = vector.shape_cast %158 : vector<128xf32> to vector<128x1xf32>
    %160 = tpu.reciprocal %159 {approx = true} : vector<128x1xf32> -> vector<128x1xf32>
    %161 = vector.broadcast %160 : vector<128x1xf32> to vector<128x128xf32>
    %162 = arith.mulf %157, %161 : vector<128x128xf32>
    %163 = arith.truncf %162 : vector<128x128xf32> to vector<128x128xbf16>
    %cst_89 = arith.constant dense<0.000000e+00> : vector<128x32xf32>
    %164 = tpu.matmul %163, %148, %cst_89 {dimension_numbers = #tpu.dot_dimension_numbers<[1], [0], [0], [1], [0, 0, 1, 1], [], []>} : vector<128x128xbf16>, vector<128x32xbf16>, vector<128x32xf32> -> vector<128x32xf32>
    %165 = arith.truncf %164 : vector<128x32xf32> to vector<128x32xbf16>
    %c1_90 = arith.constant 1 : index
    %c0_91 = arith.constant 0 : index
    %c0_92 = arith.constant 0 : index
    %166 = vector.load %arg13[%c1_90, %c0_91, %c0_92] : memref<2x32x128xbf16, #tpu.memory_space<vmem>>, vector<1x32x128xbf16>
    %167 = vector.shape_cast %166 : vector<1x32x128xbf16> to vector<32x128xbf16>
    %cst_93 = arith.constant dense<0.000000e+00> : vector<128x128xf32>
    %168 = tpu.matmul %165, %167, %cst_93 {dimension_numbers = #tpu.dot_dimension_numbers<[1], [0], [0], [1], [0, 0, 1, 1], [], []>} : vector<128x32xbf16>, vector<32x128xbf16>, vector<128x128xf32> -> vector<128x128xf32>
    %169 = arith.mulf %168, %11 : vector<128x128xf32>
    %cst_94 = arith.constant dense<0.000000e+00> : vector<32x128xf32>
    %170 = tpu.matmul %12, %169, %cst_94 {dimension_numbers = #tpu.dot_dimension_numbers<[1], [0], [0], [1], [0, 0, 1, 1], [], []>} : vector<32x128xf32>, vector<128x128xf32>, vector<32x128xf32> -> vector<32x128xf32>
    %cst_95 = arith.constant dense<0.000000e+00> : vector<32x32xf32>
    %171 = tpu.matmul %170, %13, %cst_95 {dimension_numbers = #tpu.dot_dimension_numbers<[1], [0], [0], [1], [0, 0, 1, 1], [], []>} : vector<32x128xf32>, vector<128x32xf32>, vector<32x32xf32> -> vector<32x32xf32>
    %c1_96 = arith.constant 1 : index
    %c0_97 = arith.constant 0 : index
    %c0_98 = arith.constant 0 : index
    %172 = vector.load %arg14[%c1_96, %c0_97, %c0_98] : memref<2x1x32xf32, #tpu.memory_space<vmem>>, vector<1x1x32xf32>
    %173 = vector.shape_cast %172 : vector<1x1x32xf32> to vector<1x32xf32>
    %174 = vector.broadcast %173 : vector<1x32xf32> to vector<32x32xf32>
    %175 = arith.addf %171, %174 : vector<32x32xf32>
    %176 = arith.addf %130, %175 : vector<32x32xf32>
    %c1_99 = arith.constant 1 : index
    %c0_100 = arith.constant 0 : index
    %c0_101 = arith.constant 0 : index
    %177 = vector.load %arg19[%c1_99, %c0_100, %c0_101] : memref<2x1x32xf32, #tpu.memory_space<vmem>>, vector<1x1x32xf32>
    %178 = vector.shape_cast %177 : vector<1x1x32xf32> to vector<1x32xf32>
    %c1_102 = arith.constant 1 : index
    %c0_103 = arith.constant 0 : index
    %c0_104 = arith.constant 0 : index
    %179 = vector.load %arg20[%c1_102, %c0_103, %c0_104] : memref<2x1x32xf32, #tpu.memory_space<vmem>>, vector<1x1x32xf32>
    %180 = vector.shape_cast %179 : vector<1x1x32xf32> to vector<1x32xf32>
    %cst_105 = arith.constant dense<0.000000e+00> : vector<32xf32>
    %181 = vector.multi_reduction <add>, %176, %cst_105 [1] : vector<32x32xf32> to vector<32xf32>
    %182 = vector.shape_cast %181 : vector<32xf32> to vector<32x1xf32>
    %cst_106 = arith.constant 3.200000e+01 : f32
    %183 = vector.broadcast %cst_106 : f32 to vector<32x1xf32>
    %184 = arith.divf %182, %183 : vector<32x1xf32>
    %185 = vector.broadcast %184 : vector<32x1xf32> to vector<32x32xf32>
    %186 = arith.subf %176, %185 : vector<32x32xf32>
    %187 = arith.mulf %186, %186 : vector<32x32xf32>
    %cst_107 = arith.constant dense<0.000000e+00> : vector<32xf32>
    %188 = vector.multi_reduction <add>, %187, %cst_107 [1] : vector<32x32xf32> to vector<32xf32>
    %189 = vector.shape_cast %188 : vector<32xf32> to vector<32x1xf32>
    %cst_108 = arith.constant 3.200000e+01 : f32
    %190 = vector.broadcast %cst_108 : f32 to vector<32x1xf32>
    %191 = arith.divf %189, %190 : vector<32x1xf32>
    %192 = vector.broadcast %184 : vector<32x1xf32> to vector<32x32xf32>
    %193 = arith.subf %176, %192 : vector<32x32xf32>
    %cst_109 = arith.constant 9.99999974E-6 : f32
    %194 = vector.broadcast %cst_109 : f32 to vector<32x1xf32>
    %195 = arith.addf %191, %194 : vector<32x1xf32>
    %196 = math.rsqrt %195 : vector<32x1xf32>
    %197 = vector.broadcast %196 : vector<32x1xf32> to vector<32x32xf32>
    %198 = arith.mulf %193, %197 : vector<32x32xf32>
    %199 = vector.broadcast %178 : vector<1x32xf32> to vector<32x32xf32>
    %200 = arith.mulf %198, %199 : vector<32x32xf32>
    %201 = vector.broadcast %180 : vector<1x32xf32> to vector<32x32xf32>
    %202 = arith.addf %200, %201 : vector<32x32xf32>
    %203 = arith.truncf %202 : vector<32x32xf32> to vector<32x32xbf16>
    %c1_110 = arith.constant 1 : index
    %c0_111 = arith.constant 0 : index
    %c0_112 = arith.constant 0 : index
    %204 = vector.load %arg15[%c1_110, %c0_111, %c0_112] : memref<2x32x64xbf16, #tpu.memory_space<vmem>>, vector<1x32x64xbf16>
    %205 = vector.shape_cast %204 : vector<1x32x64xbf16> to vector<32x64xbf16>
    %cst_113 = arith.constant dense<0.000000e+00> : vector<32x64xf32>
    %206 = tpu.matmul %203, %205, %cst_113 {dimension_numbers = #tpu.dot_dimension_numbers<[1], [0], [0], [1], [0, 0, 1, 1], [], []>} : vector<32x32xbf16>, vector<32x64xbf16>, vector<32x64xf32> -> vector<32x64xf32>
    %c1_114 = arith.constant 1 : index
    %c0_115 = arith.constant 0 : index
    %c0_116 = arith.constant 0 : index
    %207 = vector.load %arg16[%c1_114, %c0_115, %c0_116] : memref<2x1x64xf32, #tpu.memory_space<vmem>>, vector<1x1x64xf32>
    %208 = vector.shape_cast %207 : vector<1x1x64xf32> to vector<1x64xf32>
    %209 = vector.broadcast %208 : vector<1x64xf32> to vector<32x64xf32>
    %210 = arith.addf %206, %209 : vector<32x64xf32>
    %cst_117 = arith.constant 0.000000e+00 : f32
    %211 = vector.broadcast %cst_117 : f32 to vector<32x64xf32>
    %212 = arith.maximumf %210, %211 : vector<32x64xf32>
    %213 = arith.truncf %212 : vector<32x64xf32> to vector<32x64xbf16>
    %c1_118 = arith.constant 1 : index
    %c0_119 = arith.constant 0 : index
    %c0_120 = arith.constant 0 : index
    %214 = vector.load %arg17[%c1_118, %c0_119, %c0_120] : memref<2x64x32xbf16, #tpu.memory_space<vmem>>, vector<1x64x32xbf16>
    %215 = vector.shape_cast %214 : vector<1x64x32xbf16> to vector<64x32xbf16>
    %cst_121 = arith.constant dense<0.000000e+00> : vector<32x32xf32>
    %216 = tpu.matmul %213, %215, %cst_121 {dimension_numbers = #tpu.dot_dimension_numbers<[1], [0], [0], [1], [0, 0, 1, 1], [], []>} : vector<32x64xbf16>, vector<64x32xbf16>, vector<32x32xf32> -> vector<32x32xf32>
    %c1_122 = arith.constant 1 : index
    %c0_123 = arith.constant 0 : index
    %c0_124 = arith.constant 0 : index
    %217 = vector.load %arg18[%c1_122, %c0_123, %c0_124] : memref<2x1x32xf32, #tpu.memory_space<vmem>>, vector<1x1x32xf32>
    %218 = vector.shape_cast %217 : vector<1x1x32xf32> to vector<1x32xf32>
    %219 = vector.broadcast %218 : vector<1x32xf32> to vector<32x32xf32>
    %220 = arith.addf %216, %219 : vector<32x32xf32>
    %221 = arith.addf %202, %220 : vector<32x32xf32>
    %c1_125 = arith.constant 1 : index
    %c0_126 = arith.constant 0 : index
    %c0_127 = arith.constant 0 : index
    %222 = vector.load %arg21[%c1_125, %c0_126, %c0_127] : memref<2x1x32xf32, #tpu.memory_space<vmem>>, vector<1x1x32xf32>
    %223 = vector.shape_cast %222 : vector<1x1x32xf32> to vector<1x32xf32>
    %c1_128 = arith.constant 1 : index
    %c0_129 = arith.constant 0 : index
    %c0_130 = arith.constant 0 : index
    %224 = vector.load %arg22[%c1_128, %c0_129, %c0_130] : memref<2x1x32xf32, #tpu.memory_space<vmem>>, vector<1x1x32xf32>
    %225 = vector.shape_cast %224 : vector<1x1x32xf32> to vector<1x32xf32>
    %cst_131 = arith.constant dense<0.000000e+00> : vector<32xf32>
    %226 = vector.multi_reduction <add>, %221, %cst_131 [1] : vector<32x32xf32> to vector<32xf32>
    %227 = vector.shape_cast %226 : vector<32xf32> to vector<32x1xf32>
    %cst_132 = arith.constant 3.200000e+01 : f32
    %228 = vector.broadcast %cst_132 : f32 to vector<32x1xf32>
    %229 = arith.divf %227, %228 : vector<32x1xf32>
    %230 = vector.broadcast %229 : vector<32x1xf32> to vector<32x32xf32>
    %231 = arith.subf %221, %230 : vector<32x32xf32>
    %232 = arith.mulf %231, %231 : vector<32x32xf32>
    %cst_133 = arith.constant dense<0.000000e+00> : vector<32xf32>
    %233 = vector.multi_reduction <add>, %232, %cst_133 [1] : vector<32x32xf32> to vector<32xf32>
    %234 = vector.shape_cast %233 : vector<32xf32> to vector<32x1xf32>
    %cst_134 = arith.constant 3.200000e+01 : f32
    %235 = vector.broadcast %cst_134 : f32 to vector<32x1xf32>
    %236 = arith.divf %234, %235 : vector<32x1xf32>
    %237 = vector.broadcast %229 : vector<32x1xf32> to vector<32x32xf32>
    %238 = arith.subf %221, %237 : vector<32x32xf32>
    %cst_135 = arith.constant 9.99999974E-6 : f32
    %239 = vector.broadcast %cst_135 : f32 to vector<32x1xf32>
    %240 = arith.addf %236, %239 : vector<32x1xf32>
    %241 = math.rsqrt %240 : vector<32x1xf32>
    %242 = vector.broadcast %241 : vector<32x1xf32> to vector<32x32xf32>
    %243 = arith.mulf %238, %242 : vector<32x32xf32>
    %244 = vector.broadcast %223 : vector<1x32xf32> to vector<32x32xf32>
    %245 = arith.mulf %243, %244 : vector<32x32xf32>
    %246 = vector.broadcast %225 : vector<1x32xf32> to vector<32x32xf32>
    %247 = arith.addf %245, %246 : vector<32x32xf32>
    %c0_136 = arith.constant 0 : index
    %c0_137 = arith.constant 0 : index
    %248 = vector.load %arg10[%c0_136, %c0_137] : memref<2x32xf32, #tpu.memory_space<vmem>>, vector<2x32xf32>
    %cst_138 = arith.constant dense<0.000000e+00> : vector<2x32xf32>
    %249 = tpu.matmul %248, %247, %cst_138 {dimension_numbers = #tpu.dot_dimension_numbers<[1], [0], [0], [1], [0, 0, 1, 1], [], []>} : vector<2x32xf32>, vector<32x32xf32>, vector<2x32xf32> -> vector<2x32xf32>
    %250 = arith.truncf %249 : vector<2x32xf32> to vector<2x32xbf16>
    %c0_139 = arith.constant 0 : index
    %c0_140 = arith.constant 0 : index
    %251 = vector.load %arg23[%c0_139, %c0_140] : memref<32x128xbf16, #tpu.memory_space<vmem>>, vector<32x128xbf16>
    %cst_141 = arith.constant dense<0.000000e+00> : vector<2x128xf32>
    %252 = tpu.matmul %250, %251, %cst_141 {dimension_numbers = #tpu.dot_dimension_numbers<[1], [0], [0], [1], [0, 0, 1, 1], [], []>} : vector<2x32xbf16>, vector<32x128xbf16>, vector<2x128xf32> -> vector<2x128xf32>
    %c0_142 = arith.constant 0 : index
    %c0_143 = arith.constant 0 : index
    %253 = vector.load %arg24[%c0_142, %c0_143] : memref<1x128xf32, #tpu.memory_space<vmem>>, vector<1x128xf32>
    %254 = vector.broadcast %253 : vector<1x128xf32> to vector<2x128xf32>
    %255 = arith.addf %252, %254 : vector<2x128xf32>
    %c0_144 = arith.constant 0 : index
    %c0_145 = arith.constant 0 : index
    %256 = vector.load %arg25[%c0_144, %c0_145] : memref<2x128xf32, #tpu.memory_space<vmem>>, vector<2x128xf32>
    tpu.vector_store %arg25[%c0_144, %c0_145], %255 {strides = array<i32>} : memref<2x128xf32, #tpu.memory_space<vmem>>, vector<2x128xf32>,
    return
  }
}

</mosaic_0001>

<llo_original>
// kernel: vit_forward.1
$region0: #{vit_forward.1}
  #allocation0 [shape = 'u32[]', space=smem, size = 0x4, offset = 0x4, fixed_abs, tag = 'smem constant byte address 0x4 - core index']
  #allocation1 [shape = 'u32[144,128]{1,0:T(1,128)}', space=vmem, size = 0x12000, scoped, tag = 'internal scratch']
  %s0 = inlined_call_operand.vmem [shape: bf16[32,64], index: 0, kind: input, shape index: {}]
  %s1 = inlined_call_operand.vmem [shape: f32[32,32], index: 1, kind: input, shape index: {}]
  %s2 = inlined_call_operand.vmem [shape: bf16[64,32], index: 2, kind: input, shape index: {}]
  %s3 = inlined_call_operand.vmem [shape: f32[1,32], index: 3, kind: input, shape index: {}]
  %s4 = inlined_call_operand.vmem [shape: bf16[128,32], index: 4, kind: input, shape index: {}]
  %s5 = inlined_call_operand.vmem [shape: f32[128,32], index: 5, kind: input, shape index: {}]
  %s6 = inlined_call_operand.vmem [shape: f32[128,128], index: 6, kind: input, shape index: {}]
  %s7 = inlined_call_operand.vmem [shape: f32[128,128], index: 7, kind: input, shape index: {}]
  %s8 = inlined_call_operand.vmem [shape: f32[32,128], index: 8, kind: input, shape index: {}]
  %s9 = inlined_call_operand.vmem [shape: f32[128,32], index: 9, kind: input, shape index: {}]
  %s10 = inlined_call_operand.vmem [shape: f32[2,32], index: 10, kind: input, shape index: {}]
  %s11 = inlined_call_operand.vmem [shape: bf16[2,32,96], index: 11, kind: input, shape index: {}]
  %s12 = inlined_call_operand.vmem [shape: f32[2,1,96], index: 12, kind: input, shape index: {}]
  %s13 = inlined_call_operand.vmem [shape: bf16[2,32,128], index: 13, kind: input, shape index: {}]
  %s14 = inlined_call_operand.vmem [shape: f32[2,1,32], index: 14, kind: input, shape index: {}]
  %s15 = inlined_call_operand.vmem [shape: bf16[2,32,64], index: 15, kind: input, shape index: {}]
  %s16 = inlined_call_operand.vmem [shape: f32[2,1,64], index: 16, kind: input, shape index: {}]
  %s17 = inlined_call_operand.vmem [shape: bf16[2,64,32], index: 17, kind: input, shape index: {}]
  %s18 = inlined_call_operand.vmem [shape: f32[2,1,32], index: 18, kind: input, shape index: {}]
  %s19 = inlined_call_operand.vmem [shape: f32[2,1,32], index: 19, kind: input, shape index: {}]
  %s20 = inlined_call_operand.vmem [shape: f32[2,1,32], index: 20, kind: input, shape index: {}]
  %s21 = inlined_call_operand.vmem [shape: f32[2,1,32], index: 21, kind: input, shape index: {}]
  %s22 = inlined_call_operand.vmem [shape: f32[2,1,32], index: 22, kind: input, shape index: {}]
  %s23 = inlined_call_operand.vmem [shape: bf16[32,128], index: 23, kind: input, shape index: {}]
  %s24 = inlined_call_operand.vmem [shape: f32[1,128], index: 24, kind: input, shape index: {}]
  %s25 = inlined_call_operand.hbm [shape: f32[2,128], index: 25, kind: output, shape index: {}]
  %s26 = sld [smem:[#allocation0]]
  $region110: #{vit_forward.1} parent=0
    _
  %s28 = ssub.s32 1, %s26
  %s29 = scalar_select 0, %s28, %s26
  $region1: #{vit_forward.1} parent=0
    #allocation2 [shape = 'u8[1024]{0}', space=vmem, size = 0x400, scoped, tag = 'output window, operand 0, single buffered']
    #allocation3 [shape = 's32[1]{0}', space=sflag, size = 0x4, scoped, tag = 'scoped memory for vit_forward.1']
    %30 = vsyncpa [#allocation3], 0
    // Predicated region
    $region2: #{vit_forward.1} parent=1 // pred_check
      _
    $region3: #{vit_forward.1} parent=1 // pred_check_branch
      %32 = sbr.rel (0) target = $region5
    $region4: #{vit_forward.1} parent=1 // pred_region
      _
    $region5: #{vit_forward.1} parent=1 // pred_fallthru
      _
    // Predicated region
    $region6: #{vit_forward.1} parent=1 // pred_check
      _
    $region7: #{vit_forward.1} parent=1 // pred_check_branch
      %34 = sbr.rel (0) target = $region9
    $region8: #{vit_forward.1} parent=1 // pred_region
      _
    $region9: #{vit_forward.1} parent=1 // pred_fallthru
      _
    // Predicated region
    $region10: #{vit_forward.1} parent=1 // pred_check
      _
    $region11: #{vit_forward.1} parent=1 // pred_check_branch
      %36 = sbr.rel (0) target = $region13
    $region12: #{vit_forward.1} parent=1 // pred_region
      _
    $region13: #{vit_forward.1} parent=1 // pred_fallthru
      _
    // Predicated region
    $region14: #{vit_forward.1} parent=1 // pred_check
      _
    $region15: #{vit_forward.1} parent=1 // pred_check_branch
      %38 = sbr.rel (0) target = $region17
    $region16: #{vit_forward.1} parent=1 // pred_region
      _
    $region17: #{vit_forward.1} parent=1 // pred_fallthru
      _
    // Predicated region
    $region18: #{vit_forward.1} parent=1 // pred_check
      _
    $region19: #{vit_forward.1} parent=1 // pred_check_branch
      %40 = sbr.rel (0) target = $region21
    $region20: #{vit_forward.1} parent=1 // pred_region
      _
    $region21: #{vit_forward.1} parent=1 // pred_fallthru
      _
    // Predicated region
    $region22: #{vit_forward.1} parent=1 // pred_check
      _
    $region23: #{vit_forward.1} parent=1 // pred_check_branch
      %42 = sbr.rel (0) target = $region25
    $region24: #{vit_forward.1} parent=1 // pred_region
      _
    $region25: #{vit_forward.1} parent=1 // pred_fallthru
      _
    // Predicated region
    $region26: #{vit_forward.1} parent=1 // pred_check
      _
    $region27: #{vit_forward.1} parent=1 // pred_check_branch
      %44 = sbr.rel (0) target = $region29
    $region28: #{vit_forward.1} parent=1 // pred_region
      _
    $region29: #{vit_forward.1} parent=1 // pred_fallthru
      _
    // Predicated region
    $region30: #{vit_forward.1} parent=1 // pred_check
      _
    $region31: #{vit_forward.1} parent=1 // pred_check_branch
      %46 = sbr.rel (0) target = $region33
    $region32: #{vit_forward.1} parent=1 // pred_region
      _
    $region33: #{vit_forward.1} parent=1 // pred_fallthru
      _
    // Predicated region
    $region34: #{vit_forward.1} parent=1 // pred_check
      _
    $region35: #{vit_forward.1} parent=1 // pred_check_branch
      %48 = sbr.rel (0) target = $region37
    $region36: #{vit_forward.1} parent=1 // pred_region
      _
    $region37: #{vit_forward.1} parent=1 // pred_fallthru
      _
    // Predicated region
    $region38: #{vit_forward.1} parent=1 // pred_check
      _
    $region39: #{vit_forward.1} parent=1 // pred_check_branch
      %50 = sbr.rel (0) target = $region41
    $region40: #{vit_forward.1} parent=1 // pred_region
      _
    $region41: #{vit_forward.1} parent=1 // pred_fallthru
      _
    // Predicated region
    $region42: #{vit_forward.1} parent=1 // pred_check
      _
    $region43: #{vit_forward.1} parent=1 // pred_check_branch
      %52 = sbr.rel (0) target = $region45
    $region44: #{vit_forward.1} parent=1 // pred_region
      _
    $region45: #{vit_forward.1} parent=1 // pred_fallthru
      _
    // Predicated region
    $region46: #{vit_forward.1} parent=1 // pred_check
      _
    $region47: #{vit_forward.1} parent=1 // pred_check_branch
      %54 = sbr.rel (0) target = $region49
    $region48: #{vit_forward.1} parent=1 // pred_region
      _
    $region49: #{vit_forward.1} parent=1 // pred_fallthru
      _
    // Predicated region
    $region50: #{vit_forward.1} parent=1 // pred_check
      _
    $region51: #{vit_forward.1} parent=1 // pred_check_branch
      %56 = sbr.rel (0) target = $region53
    $region52: #{vit_forward.1} parent=1 // pred_region
      _
    $region53: #{vit_forward.1} parent=1 // pred_fallthru
      _
    // Predicated region
    $region54: #{vit_forward.1} parent=1 // pred_check
      _
    $region55: #{vit_forward.1} parent=1 // pred_check_branch
      %58 = sbr.rel (0) target = $region57
    $region56: #{vit_forward.1} parent=1 // pred_region
      _
    $region57: #{vit_forward.1} parent=1 // pred_fallthru
      _
    // Predicated region
    $region58: #{vit_forward.1} parent=1 // pred_check
      _
    $region59: #{vit_forward.1} parent=1 // pred_check_branch
      %60 = sbr.rel (0) target = $region61
    $region60: #{vit_forward.1} parent=1 // pred_region
      _
    $region61: #{vit_forward.1} parent=1 // pred_fallthru
      _
    // Predicated region
    $region62: #{vit_forward.1} parent=1 // pred_check
      _
    $region63: #{vit_forward.1} parent=1 // pred_check_branch
      %62 = sbr.rel (0) target = $region65
    $region64: #{vit_forward.1} parent=1 // pred_region
      _
    $region65: #{vit_forward.1} parent=1 // pred_fallthru
      _
    // Predicated region
    $region66: #{vit_forward.1} parent=1 // pred_check
      _
    $region67: #{vit_forward.1} parent=1 // pred_check_branch
      %64 = sbr.rel (0) target = $region69
    $region68: #{vit_forward.1} parent=1 // pred_region
      _
    $region69: #{vit_forward.1} parent=1 // pred_fallthru
      _
    // Predicated region
    $region70: #{vit_forward.1} parent=1 // pred_check
      _
    $region71: #{vit_forward.1} parent=1 // pred_check_branch
      %66 = sbr.rel (0) target = $region73
    $region72: #{vit_forward.1} parent=1 // pred_region
      _
    $region73: #{vit_forward.1} parent=1 // pred_fallthru
      _
    // Predicated region
    $region74: #{vit_forward.1} parent=1 // pred_check
      _
    $region75: #{vit_forward.1} parent=1 // pred_check_branch
      %68 = sbr.rel (0) target = $region77
    $region76: #{vit_forward.1} parent=1 // pred_region
      _
    $region77: #{vit_forward.1} parent=1 // pred_fallthru
      _
    // Predicated region
    $region78: #{vit_forward.1} parent=1 // pred_check
      _
    $region79: #{vit_forward.1} parent=1 // pred_check_branch
      %70 = sbr.rel (0) target = $region81
    $region80: #{vit_forward.1} parent=1 // pred_region
      _
    $region81: #{vit_forward.1} parent=1 // pred_fallthru
      _
    // Predicated region
    $region82: #{vit_forward.1} parent=1 // pred_check
      _
    $region83: #{vit_forward.1} parent=1 // pred_check_branch
      %72 = sbr.rel (0) target = $region85
    $region84: #{vit_forward.1} parent=1 // pred_region
      _
    $region85: #{vit_forward.1} parent=1 // pred_fallthru
      _
    // Predicated region
    $region86: #{vit_forward.1} parent=1 // pred_check
      _
    $region87: #{vit_forward.1} parent=1 // pred_check_branch
      %74 = sbr.rel (0) target = $region89
    $region88: #{vit_forward.1} parent=1 // pred_region
      _
    $region89: #{vit_forward.1} parent=1 // pred_fallthru
      _
    // Predicated region
    $region90: #{vit_forward.1} parent=1 // pred_check
      _
    $region91: #{vit_forward.1} parent=1 // pred_check_branch
      %76 = sbr.rel (0) target = $region93
    $region92: #{vit_forward.1} parent=1 // pred_region
      _
    $region93: #{vit_forward.1} parent=1 // pred_fallthru
      _
    // Predicated region
    $region94: #{vit_forward.1} parent=1 // pred_check
      _
    $region95: #{vit_forward.1} parent=1 // pred_check_branch
      %78 = sbr.rel (0) target = $region97
    $region96: #{vit_forward.1} parent=1 // pred_region
      _
    $region97: #{vit_forward.1} parent=1 // pred_fallthru
      _
    // Predicated region
    $region98: #{vit_forward.1} parent=1 // pred_check
      _
    $region99: #{vit_forward.1} parent=1 // pred_check_branch
      %80 = sbr.rel (0) target = $region101
    $region100: #{vit_forward.1} parent=1 // pred_region
      _
    $region101: #{vit_forward.1} parent=1 // pred_fallthru
      _
    %v82 = vld [vmem:[%s0] sm:$0xf]
    %v83 = vld [vmem:[%s0 + $0x4] sm:$0xf]
    %v84 = vld [vmem:[%s0 + $0x8] sm:$0xf]
    %v85 = vld [vmem:[%s0 + $0xc] sm:$0xf]
    %v86 = vld [vmem:[%s2] sm:$0xf]
    %v87 = vld [vmem:[%s2 + $0x4] sm:$0xf]
    %v88 = vld [vmem:[%s2 + $0x8] sm:$0xf]
    %v89 = vld [vmem:[%s2 + $0xc] sm:$0xf]
    %v90 = vld [vmem:[%s2 + $0x10] sm:$0xf]
    %v91 = vld [vmem:[%s2 + $0x14] sm:$0xf]
    %v92 = vld [vmem:[%s2 + $0x18] sm:$0xf]
    %v93 = vld [vmem:[%s2 + $0x1c] sm:$0xf]
    %v94 = vld [vmem:[%s3] sm:$0x1]
    %v96 = vlaneseq
    %v97 = vshrl.u32 %v96, 7
    %v98 = vsub.s32 0, %v97
    %v99 = vrot.slane %v94, %v98
    %v105 = vunpack.c.l.b16 %v82
    %v106 = vunpack.c.l.b16 %v83
    %v107 = vunpack.c.l.b16 %v84
    %v108 = vunpack.c.l.b16 %v85
    %v109 = vpack.c.b16 %v106, %v105
    %v110 = vpack.c.b16 %v108, %v107
    %v119 = vunpack.c.l.b16 %v86
    %v120 = vunpack.c.l.b16 %v87
    %v121 = vunpack.c.l.b16 %v88
    %v122 = vunpack.c.l.b16 %v89
    %v123 = vunpack.c.l.b16 %v90
    %v124 = vunpack.c.l.b16 %v91
    %v125 = vunpack.c.l.b16 %v92
    %v126 = vunpack.c.l.b16 %v93
    %v127 = vpack.c.b16 %v120, %v119
    %v128 = vpack.c.b16 %v122, %v121
    %v129 = vpack.c.b16 %v124, %v123
    %v130 = vpack.c.b16 %v126, %v125
    %vm135 = vcmask 523264
    %v137 = vsel %vm135, %v109, 0
    %v140 = vsel %vm135, %v110, 0
    %142 = vmatprep.subr.bf16.mxu0 0
    %143 = vmatpush1.bf16.msra.mxu0 %v127
    %144 = vmatprep.subr.bf16.mxu0 0
    %145 = vmatpush1.bf16.msra.mxu0 %v128
    %146 = vmatprep.subr.bf16.mxu0 0
    %147 = vmatpush1.bf16.msra.mxu0 %v129
    %148 = vmatprep.subr.bf16.mxu0 0
    %149 = vmatpush1.bf16.msra.mxu0 %v130
    %150 = vmatprep.subr.bf16.mxu0 0
    %151 = vmatpush1.bf16.msra.mxu0 0
    %152 = vmatprep.subr.bf16.mxu0 0
    %153 = vmatpush1.bf16.msra.mxu0 0
    %154 = vmatprep.subr.bf16.mxu0 0
    %155 = vmatpush1.bf16.msra.mxu0 0
    %156 = vmatprep.subr.bf16.mxu0 0
    %157 = vmatpush1.bf16.msra.mxu0 0
    %158 = vmatprep.subr.bf16.mxu0 0
    %159 = vmatpush1.bf16.msra.mxu0 0
    %160 = vmatprep.subr.bf16.mxu0 0
    %161 = vmatpush1.bf16.msra.mxu0 0
    %162 = vmatprep.subr.bf16.mxu0 0
    %163 = vmatpush1.bf16.msra.mxu0 0
    %164 = vmatprep.subr.bf16.mxu0 0
    %165 = vmatpush1.bf16.msra.mxu0 0
    %166 = vmatprep.subr.bf16.mxu0 0
    %167 = vmatpush1.bf16.msra.mxu0 0
    %168 = vmatprep.subr.bf16.mxu0 0
    %169 = vmatpush1.bf16.msra.mxu0 0
    %170 = vmatprep.subr.bf16.mxu0 0
    %171 = vmatpush1.bf16.msra.mxu0 0
    %172 = vmatprep.subr.bf16.mxu0 0
    %173 = vmatpush1.bf16.msra.mxu0 0
    %174 = vmatprep.mubr.bf16.mxu0 0
    %175 = vmatmul.mubr.bf16.gmra.mrb[0].mxu0 %v137
    %v176 = vpop.f32.mrb[0].mxu0
    %v177 = vadd.f32 %v99, %v176
    %v178 = vpop.f32.mrb[0].mxu0
    %v179 = vpop.f32.mrb[0].mxu0
    %v180 = vadd.f32 %v99, %v179
    %v181 = vpop.f32.mrb[0].mxu0
    %182 = vmatprep.mubr.bf16.mxu0 0
    %183 = vmatmul.mubr.bf16.gmra.mrb[0].mxu0 %v140
    %v184 = vpop.f32.mrb[0].mxu0
    %v185 = vadd.f32 %v99, %v184
    %v186 = vpop.f32.mrb[0].mxu0
    %v187 = vpop.f32.mrb[0].mxu0
    %v188 = vadd.f32 %v99, %v187
    %v189 = vpop.f32.mrb[0].mxu0
    %190 = vdwg.mxu0
    %v191 = vld [vmem:[%s1] sm:$0xff]
    %v192 = vld [vmem:[%s1 + $0x8] sm:$0xff]
    %v193 = vld [vmem:[%s1 + $0x10] sm:$0xff]
    %v194 = vld [vmem:[%s1 + $0x18] sm:$0xff]
    %v195 = vadd.f32 %v177, %v191
    %v196 = vadd.f32 %v180, %v192
    %v197 = vadd.f32 %v185, %v193
    %v198 = vadd.f32 %v188, %v194
    %v199 = vld [vmem:[%s4] sm:$0xf]
    %v200 = vld [vmem:[%s4 + $0x4] sm:$0xf]
    %v201 = vld [vmem:[%s4 + $0x8] sm:$0xf]
    %v202 = vld [vmem:[%s4 + $0xc] sm:$0xf]
    %v203 = vld [vmem:[%s4 + $0x10] sm:$0xf]
    %v204 = vld [vmem:[%s4 + $0x14] sm:$0xf]
    %v205 = vld [vmem:[%s4 + $0x18] sm:$0xf]
    %v206 = vld [vmem:[%s4 + $0x1c] sm:$0xf]
    %v207 = vld [vmem:[%s4 + $0x20] sm:$0xf]
    %v208 = vld [vmem:[%s4 + $0x24] sm:$0xf]
    %v209 = vld [vmem:[%s4 + $0x28] sm:$0xf]
    %v210 = vld [vmem:[%s4 + $0x2c] sm:$0xf]
    %v211 = vld [vmem:[%s4 + $0x30] sm:$0xf]
    %v212 = vld [vmem:[%s4 + $0x34] sm:$0xf]
    %v213 = vld [vmem:[%s4 + $0x38] sm:$0xf]
    %v214 = vld [vmem:[%s4 + $0x3c] sm:$0xf]
    %v215 = vld [vmem:[%s5] sm:$0xff]
    %v216 = vld [vmem:[%s5 + $0x8] sm:$0xff]
    %v217 = vld [vmem:[%s5 + $0x10] sm:$0xff]
    %v218 = vld [vmem:[%s5 + $0x18] sm:$0xff]
    %v219 = vld [vmem:[%s5 + $0x20] sm:$0xff]
    %v220 = vld [vmem:[%s5 + $0x28] sm:$0xff]
    %v221 = vld [vmem:[%s5 + $0x30] sm:$0xff]
    %v222 = vld [vmem:[%s5 + $0x38] sm:$0xff]
    %v223 = vld [vmem:[%s5 + $0x40] sm:$0xff]
    %v224 = vld [vmem:[%s5 + $0x48] sm:$0xff]
    %v225 = vld [vmem:[%s5 + $0x50] sm:$0xff]
    %v226 = vld [vmem:[%s5 + $0x58] sm:$0xff]
    %v227 = vld [vmem:[%s5 + $0x60] sm:$0xff]
    %v228 = vld [vmem:[%s5 + $0x68] sm:$0xff]
    %v229 = vld [vmem:[%s5 + $0x70] sm:$0xff]
    %v230 = vld [vmem:[%s5 + $0x78] sm:$0xff]
    %v231 = vld [vmem:[%s6] sm:$0xff]
    %v232 = vld [vmem:[%s6 + $0x8] sm:$0xff]
    %v233 = vld [vmem:[%s6 + $0x10] sm:$0xff]
    %v234 = vld [vmem:[%s6 + $0x18] sm:$0xff]
    %v235 = vld [vmem:[%s6 + $0x20] sm:$0xff]
    %v236 = vld [vmem:[%s6 + $0x28] sm:$0xff]
    %v237 = vld [vmem:[%s6 + $0x30] sm:$0xff]
    %v238 = vld [vmem:[%s6 + $0x38] sm:$0xff]
    %v239 = vld [vmem:[%s6 + $0x40] sm:$0xff]
    %v240 = vld [vmem:[%s6 + $0x48] sm:$0xff]
    %v241 = vld [vmem:[%s6 + $0x50] sm:$0xff]
    %v242 = vld [vmem:[%s6 + $0x58] sm:$0xff]
    %v243 = vld [vmem:[%s6 + $0x60] sm:$0xff]
    %v244 = vld [vmem:[%s6 + $0x68] sm:$0xff]
    %v245 = vld [vmem:[%s6 + $0x70] sm:$0xff]
    %v246 = vld [vmem:[%s6 + $0x78] sm:$0xff]
    %v247 = vld [vmem:[%s7] sm:$0xff]
    %v248 = vld [vmem:[%s7 + $0x8] sm:$0xff]
    %v249 = vld [vmem:[%s7 + $0x10] sm:$0xff]
    %v250 = vld [vmem:[%s7 + $0x18] sm:$0xff]
    %v251 = vld [vmem:[%s7 + $0x20] sm:$0xff]
    %v252 = vld [vmem:[%s7 + $0x28] sm:$0xff]
    %v253 = vld [vmem:[%s7 + $0x30] sm:$0xff]
    %v254 = vld [vmem:[%s7 + $0x38] sm:$0xff]
    %v255 = vld [vmem:[%s7 + $0x40] sm:$0xff]
    %v256 = vld [vmem:[%s7 + $0x48] sm:$0xff]
    %v257 = vld [vmem:[%s7 + $0x50] sm:$0xff]
    %v258 = vld [vmem:[%s7 + $0x58] sm:$0xff]
    %v259 = vld [vmem:[%s7 + $0x60] sm:$0xff]
    %v260 = vld [vmem:[%s7 + $0x68] sm:$0xff]
    %v261 = vld [vmem:[%s7 + $0x70] sm:$0xff]
    %v262 = vld [vmem:[%s7 + $0x78] sm:$0xff]
    %v263 = vld [vmem:[%s8] sm:$0xff]
    %v264 = vld [vmem:[%s8 + $0x8] sm:$0xff]
    %v265 = vld [vmem:[%s8 + $0x10] sm:$0xff]
    %v266 = vld [vmem:[%s8 + $0x18] sm:$0xff]
    %v267 = vld [vmem:[%s9] sm:$0xff]
    %v268 = vld [vmem:[%s9 + $0x8] sm:$0xff]
    %v269 = vld [vmem:[%s9 + $0x10] sm:$0xff]
    %v270 = vld [vmem:[%s9 + $0x18] sm:$0xff]
    %v271 = vld [vmem:[%s9 + $0x20] sm:$0xff]
    %v272 = vld [vmem:[%s9 + $0x28] sm:$0xff]
    %v273 = vld [vmem:[%s9 + $0x30] sm:$0xff]
    %v274 = vld [vmem:[%s9 + $0x38] sm:$0xff]
    %v275 = vld [vmem:[%s9 + $0x40] sm:$0xff]
    %v276 = vld [vmem:[%s9 + $0x48] sm:$0xff]
    %v277 = vld [vmem:[%s9 + $0x50] sm:$0xff]
    %v278 = vld [vmem:[%s9 + $0x58] sm:$0xff]
    %v279 = vld [vmem:[%s9 + $0x60] sm:$0xff]
    %v280 = vld [vmem:[%s9 + $0x68] sm:$0xff]
    %v281 = vld [vmem:[%s9 + $0x70] sm:$0xff]
    %v282 = vld [vmem:[%s9 + $0x78] sm:$0xff]
    %v283 = vpack.c.bf16 %v196, %v195
    %v284 = vpack.c.bf16 %v198, %v197
    %v301 = vunpack.c.l.b16 %v199
    %v302 = vunpack.c.l.b16 %v200
    %v303 = vunpack.c.l.b16 %v201
    %v304 = vunpack.c.l.b16 %v202
    %v305 = vunpack.c.l.b16 %v203
    %v306 = vunpack.c.l.b16 %v204
    %v307 = vunpack.c.l.b16 %v205
    %v308 = vunpack.c.l.b16 %v206
    %v309 = vunpack.c.l.b16 %v207
    %v310 = vunpack.c.l.b16 %v208
    %v311 = vunpack.c.l.b16 %v209
    %v312 = vunpack.c.l.b16 %v210
    %v313 = vunpack.c.l.b16 %v211
    %v314 = vunpack.c.l.b16 %v212
    %v315 = vunpack.c.l.b16 %v213
    %v316 = vunpack.c.l.b16 %v214
    %v317 = vpack.c.b16 %v302, %v301
    %v318 = vpack.c.b16 %v304, %v303
    %v319 = vpack.c.b16 %v306, %v305
    %v320 = vpack.c.b16 %v308, %v307
    %v321 = vpack.c.b16 %v310, %v309
    %v322 = vpack.c.b16 %v312, %v311
    %v323 = vpack.c.b16 %v314, %v313
    %v324 = vpack.c.b16 %v316, %v315
    %vm325 = vcmask 261120
    %v327 = vsel %vm325, %v317, 0
    %v330 = vsel %vm325, %v318, 0
    %v333 = vsel %vm325, %v319, 0
    %v336 = vsel %vm325, %v320, 0
    %v339 = vsel %vm325, %v321, 0
    %v342 = vsel %vm325, %v322, 0
    %v345 = vsel %vm325, %v323, 0
    %v348 = vsel %vm325, %v324, 0
    %350 = vmatprep.subr.bf16.mxu0 0
    %351 = vmatpush1.bf16.msra.mxu0 %v283
    %352 = vmatprep.subr.bf16.mxu0 0
    %353 = vmatpush1.bf16.msra.mxu0 %v284
    %354 = vmatprep.subr.bf16.mxu0 0
    %355 = vmatpush1.bf16.msra.mxu0 0
    %356 = vmatprep.subr.bf16.mxu0 0
    %357 = vmatpush1.bf16.msra.mxu0 0
    %358 = vmatprep.subr.bf16.mxu0 0
    %359 = vmatpush1.bf16.msra.mxu0 0
    %360 = vmatprep.subr.bf16.mxu0 0
    %361 = vmatpush1.bf16.msra.mxu0 0
    %362 = vmatprep.subr.bf16.mxu0 0
    %363 = vmatpush1.bf16.msra.mxu0 0
    %364 = vmatprep.subr.bf16.mxu0 0
    %365 = vmatpush1.bf16.msra.mxu0 0
    %366 = vmatprep.subr.bf16.mxu0 0
    %367 = vmatpush1.bf16.msra.mxu0 0
    %368 = vmatprep.subr.bf16.mxu0 0
    %369 = vmatpush1.bf16.msra.mxu0 0
    %370 = vmatprep.subr.bf16.mxu0 0
    %371 = vmatpush1.bf16.msra.mxu0 0
    %372 = vmatprep.subr.bf16.mxu0 0
    %373 = vmatpush1.bf16.msra.mxu0 0
    %374 = vmatprep.subr.bf16.mxu0 0
    %375 = vmatpush1.bf16.msra.mxu0 0
    %376 = vmatprep.subr.bf16.mxu0 0
    %377 = vmatpush1.bf16.msra.mxu0 0
    %378 = vmatprep.subr.bf16.mxu0 0
    %379 = vmatpush1.bf16.msra.mxu0 0
    %380 = vmatprep.subr.bf16.mxu0 0
    %381 = vmatpush1.bf16.msra.mxu0 0
    %382 = vmatprep.mubr.bf16.mxu0 0
    %383 = vmatmul.mubr.bf16.gmra.mrb[0].mxu0 %v327
    %v384 = vpop.f32.mrb[0].mxu0
    %v385 = vadd.f32 0.0, %v384
    %v386 = vpop.f32.mrb[0].mxu0
    %v387 = vpop.f32.mrb[0].mxu0
    %v388 = vadd.f32 0.0, %v387
    %v389 = vpop.f32.mrb[0].mxu0
    %390 = vmatprep.mubr.bf16.mxu0 0
    %391 = vmatmul.mubr.bf16.gmra.mrb[0].mxu0 %v330
    %v392 = vpop.f32.mrb[0].mxu0
    %v393 = vadd.f32 0.0, %v392
    %v394 = vpop.f32.mrb[0].mxu0
    %v395 = vpop.f32.mrb[0].mxu0
    %v396 = vadd.f32 0.0, %v395
    %v397 = vpop.f32.mrb[0].mxu0
    %398 = vmatprep.mubr.bf16.mxu0 0
    %399 = vmatmul.mubr.bf16.gmra.mrb[0].mxu0 %v333
    %v400 = vpop.f32.mrb[0].mxu0
    %v401 = vadd.f32 0.0, %v400
    %v402 = vpop.f32.mrb[0].mxu0
    %v403 = vpop.f32.mrb[0].mxu0
    %v404 = vadd.f32 0.0, %v403
    %v405 = vpop.f32.mrb[0].mxu0
    %406 = vmatprep.mubr.bf16.mxu0 0
    %407 = vmatmul.mubr.bf16.gmra.mrb[0].mxu0 %v336
    %v408 = vpop.f32.mrb[0].mxu0
    %v409 = vadd.f32 0.0, %v408
    %v410 = vpop.f32.mrb[0].mxu0
    %v411 = vpop.f32.mrb[0].mxu0
    %v412 = vadd.f32 0.0, %v411
    %v413 = vpop.f32.mrb[0].mxu0
    %414 = vmatprep.mubr.bf16.mxu0 0
    %415 = vmatmul.mubr.bf16.gmra.mrb[0].mxu0 %v339
    %v416 = vpop.f32.mrb[0].mxu0
    %v417 = vadd.f32 0.0, %v416
    %v418 = vpop.f32.mrb[0].mxu0
    %v419 = vpop.f32.mrb[0].mxu0
    %v420 = vadd.f32 0.0, %v419
    %v421 = vpop.f32.mrb[0].mxu0
    %422 = vmatprep.mubr.bf16.mxu0 0
    %423 = vmatmul.mubr.bf16.gmra.mrb[0].mxu0 %v342
    %v424 = vpop.f32.mrb[0].mxu0
    %v425 = vadd.f32 0.0, %v424
    %v426 = vpop.f32.mrb[0].mxu0
    %v427 = vpop.f32.mrb[0].mxu0
    %v428 = vadd.f32 0.0, %v427
    %v429 = vpop.f32.mrb[0].mxu0
    %430 = vmatprep.mubr.bf16.mxu0 0
    %431 = vmatmul.mubr.bf16.gmra.mrb[0].mxu0 %v345
    %v432 = vpop.f32.mrb[0].mxu0
    %v433 = vadd.f32 0.0, %v432
    %v434 = vpop.f32.mrb[0].mxu0
    %v435 = vpop.f32.mrb[0].mxu0
    %v436 = vadd.f32 0.0, %v435
    %v437 = vpop.f32.mrb[0].mxu0
    %438 = vmatprep.mubr.bf16.mxu0 0
    %439 = vmatmul.mubr.bf16.gmra.mrb[0].mxu0 %v348
    %v440 = vpop.f32.mrb[0].mxu0
    %v441 = vadd.f32 0.0, %v440
    %v442 = vpop.f32.mrb[0].mxu0
    %v443 = vpop.f32.mrb[0].mxu0
    %v444 = vadd.f32 0.0, %v443
    %v445 = vpop.f32.mrb[0].mxu0
    %446 = vdwg.mxu0
    %v447 = vpack.c.bf16 %v388, %v385
    %v448 = vpack.c.bf16 %v396, %v393
    %v449 = vpack.c.bf16 %v404, %v401
    %v450 = vpack.c.bf16 %v412, %v409
    %v451 = vpack.c.bf16 %v420, %v417
    %v452 = vpack.c.bf16 %v428, %v425
    %v453 = vpack.c.bf16 %v436, %v433
    %v454 = vpack.c.bf16 %v444, %v441
    %v455 = vld [vmem:[%s11] sm:$0xf]
    %v456 = vld [vmem:[%s11 + $0x4] sm:$0xf]
    %v457 = vld [vmem:[%s11 + $0x8] sm:$0xf]
    %v458 = vld [vmem:[%s11 + $0xc] sm:$0xf]
    %v459 = vld [vmem:[%s12] sm:$0x1]
    %v461 = vlaneseq
    %v462 = vshrl.u32 %v461, 7
    %v463 = vsub.s32 0, %v462
    %v464 = vrot.slane %v459, %v463
    %v470 = vunpack.c.l.b16 %v455
    %v471 = vunpack.c.l.b16 %v456
    %v472 = vunpack.c.l.b16 %v457
    %v473 = vunpack.c.l.b16 %v458
    %v474 = vpack.c.b16 %v471, %v470
    %v475 = vpack.c.b16 %v473, %v472
    %v479 = vsel %vm325, %v447, 0
    %v482 = vsel %vm325, %v448, 0
    %v485 = vsel %vm325, %v449, 0
    %v488 = vsel %vm325, %v450, 0
    %v491 = vsel %vm325, %v451, 0
    %v494 = vsel %vm325, %v452, 0
    %v497 = vsel %vm325, %v453, 0
    %v500 = vsel %vm325, %v454, 0
    %502 = vmatprep.subr.bf16.mxu0 0
    %503 = vmatpush1.bf16.msra.mxu0 %v474
    %504 = vmatprep.subr.bf16.mxu0 0
    %505 = vmatpush1.bf16.msra.mxu0 %v475
    %506 = vmatprep.subr.bf16.mxu0 0
    %507 = vmatpush1.bf16.msra.mxu0 0
    %508 = vmatprep.subr.bf16.mxu0 0
    %509 = vmatpush1.bf16.msra.mxu0 0
    %510 = vmatprep.subr.bf16.mxu0 0
    %511 = vmatpush1.bf16.msra.mxu0 0
    %512 = vmatprep.subr.bf16.mxu0 0
    %513 = vmatpush1.bf16.msra.mxu0 0
    %514 = vmatprep.subr.bf16.mxu0 0
    %515 = vmatpush1.bf16.msra.mxu0 0
    %516 = vmatprep.subr.bf16.mxu0 0
    %517 = vmatpush1.bf16.msra.mxu0 0
    %518 = vmatprep.subr.bf16.mxu0 0
    %519 = vmatpush1.bf16.msra.mxu0 0
    %520 = vmatprep.subr.bf16.mxu0 0
    %521 = vmatpush1.bf16.msra.mxu0 0
    %522 = vmatprep.subr.bf16.mxu0 0
    %523 = vmatpush1.bf16.msra.mxu0 0
    %524 = vmatprep.subr.bf16.mxu0 0
    %525 = vmatpush1.bf16.msra.mxu0 0
    %526 = vmatprep.subr.bf16.mxu0 0
    %527 = vmatpush1.bf16.msra.mxu0 0
    %528 = vmatprep.subr.bf16.mxu0 0
    %529 = vmatpush1.bf16.msra.mxu0 0
    %530 = vmatprep.subr.bf16.mxu0 0
    %531 = vmatpush1.bf16.msra.mxu0 0
    %532 = vmatprep.subr.bf16.mxu0 0
    %533 = vmatpush1.bf16.msra.mxu0 0
    %534 = vmatprep.mubr.bf16.mxu0 0
    %535 = vmatmul.mubr.bf16.gmra.mrb[0].mxu0 %v479
    %v536 = vpop.f32.mrb[0].mxu0
    %v537 = vadd.f32 %v464, %v536
    %v538 = vpop.f32.mrb[0].mxu0
    %v539 = vpop.f32.mrb[0].mxu0
    %v540 = vadd.f32 %v464, %v539
    %v541 = vpop.f32.mrb[0].mxu0
    %542 = vmatprep.mubr.bf16.mxu0 0
    %543 = vmatmul.mubr.bf16.gmra.mrb[0].mxu0 %v482
    %v544 = vpop.f32.mrb[0].mxu0
    %v545 = vadd.f32 %v464, %v544
    %v546 = vpop.f32.mrb[0].mxu0
    %v547 = vpop.f32.mrb[0].mxu0
    %v548 = vadd.f32 %v464, %v547
    %v549 = vpop.f32.mrb[0].mxu0
    %550 = vmatprep.mubr.bf16.mxu0 0
    %551 = vmatmul.mubr.bf16.gmra.mrb[0].mxu0 %v485
    %v552 = vpop.f32.mrb[0].mxu0
    %v553 = vadd.f32 %v464, %v552
    %v554 = vpop.f32.mrb[0].mxu0
    %v555 = vpop.f32.mrb[0].mxu0
    %v556 = vadd.f32 %v464, %v555
    %v557 = vpop.f32.mrb[0].mxu0
    %558 = vmatprep.mubr.bf16.mxu0 0
    %559 = vmatmul.mubr.bf16.gmra.mrb[0].mxu0 %v488
    %v560 = vpop.f32.mrb[0].mxu0
    %v561 = vadd.f32 %v464, %v560
    %v562 = vpop.f32.mrb[0].mxu0
    %v563 = vpop.f32.mrb[0].mxu0
    %v564 = vadd.f32 %v464, %v563
    %v565 = vpop.f32.mrb[0].mxu0
    %566 = vmatprep.mubr.bf16.mxu0 0
    %567 = vmatmul.mubr.bf16.gmra.mrb[0].mxu0 %v491
    %v568 = vpop.f32.mrb[0].mxu0
    %v569 = vadd.f32 %v464, %v568
    %v570 = vpop.f32.mrb[0].mxu0
    %v571 = vpop.f32.mrb[0].mxu0
    %v572 = vadd.f32 %v464, %v571
    %v573 = vpop.f32.mrb[0].mxu0
    %574 = vmatprep.mubr.bf16.mxu0 0
    %575 = vmatmul.mubr.bf16.gmra.mrb[0].mxu0 %v494
    %v576 = vpop.f32.mrb[0].mxu0
    %v577 = vadd.f32 %v464, %v576
    %v578 = vpop.f32.mrb[0].mxu0
    %v579 = vpop.f32.mrb[0].mxu0
    %v580 = vadd.f32 %v464, %v579
    %v581 = vpop.f32.mrb[0].mxu0
    %582 = vmatprep.mubr.bf16.mxu0 0
    %583 = vmatmul.mubr.bf16.gmra.mrb[0].mxu0 %v497
    %v584 = vpop.f32.mrb[0].mxu0
    %v585 = vadd.f32 %v464, %v584
    %v586 = vpop.f32.mrb[0].mxu0
    %v587 = vpop.f32.mrb[0].mxu0
    %v588 = vadd.f32 %v464, %v587
    %v589 = vpop.f32.mrb[0].mxu0
    %590 = vmatprep.mubr.bf16.mxu0 0
    %591 = vmatmul.mubr.bf16.gmra.mrb[0].mxu0 %v500
    %v592 = vpop.f32.mrb[0].mxu0
    %v593 = vadd.f32 %v464, %v592
    %v594 = vpop.f32.mrb[0].mxu0
    %v595 = vpop.f32.mrb[0].mxu0
    %v596 = vadd.f32 %v464, %v595
    %v597 = vpop.f32.mrb[0].mxu0
    %598 = vdwg.mxu0
    %v599 = vpack.c.bf16 %v540, %v537
    %v600 = vpack.c.bf16 %v548, %v545
    %v601 = vpack.c.bf16 %v556, %v553
    %v602 = vpack.c.bf16 %v564, %v561
    %v603 = vpack.c.bf16 %v572, %v569
    %v604 = vpack.c.bf16 %v580, %v577
    %v605 = vpack.c.bf16 %v588, %v585
    %v606 = vpack.c.bf16 %v596, %v593
    %623 = vrot.lane.b32.xlu0 %v215, 32
    %v624 = vpop.permute.xlu0 %623
    %625 = vrot.lane.b32.xlu0 %v216, 32
    %v626 = vpop.permute.xlu0 %625
    %627 = vrot.lane.b32.xlu0 %v217, 32
    %v628 = vpop.permute.xlu0 %627
    %629 = vrot.lane.b32.xlu0 %v218, 32
    %v630 = vpop.permute.xlu0 %629
    %631 = vrot.lane.b32.xlu0 %v219, 32
    %v632 = vpop.permute.xlu0 %631
    %633 = vrot.lane.b32.xlu0 %v220, 32
    %v634 = vpop.permute.xlu0 %633
    %635 = vrot.lane.b32.xlu0 %v221, 32
    %v636 = vpop.permute.xlu0 %635
    %637 = vrot.lane.b32.xlu0 %v222, 32
    %v638 = vpop.permute.xlu0 %637
    %639 = vrot.lane.b32.xlu0 %v223, 32
    %v640 = vpop.permute.xlu0 %639
    %641 = vrot.lane.b32.xlu0 %v224, 32
    %v642 = vpop.permute.xlu0 %641
    %643 = vrot.lane.b32.xlu0 %v225, 32
    %v644 = vpop.permute.xlu0 %643
    %645 = vrot.lane.b32.xlu0 %v226, 32
    %v646 = vpop.permute.xlu0 %645
    %647 = vrot.lane.b32.xlu0 %v227, 32
    %v648 = vpop.permute.xlu0 %647
    %649 = vrot.lane.b32.xlu0 %v228, 32
    %v650 = vpop.permute.xlu0 %649
    %651 = vrot.lane.b32.xlu0 %v229, 32
    %v652 = vpop.permute.xlu0 %651
    %653 = vrot.lane.b32.xlu0 %v230, 32
    %v654 = vpop.permute.xlu0 %653
    %v671 = vmul.f32 %v537, %v624
    %v672 = vmul.f32 %v540, %v626
    %v673 = vmul.f32 %v545, %v628
    %v674 = vmul.f32 %v548, %v630
    %v675 = vmul.f32 %v553, %v632
    %v676 = vmul.f32 %v556, %v634
    %v677 = vmul.f32 %v561, %v636
    %v678 = vmul.f32 %v564, %v638
    %v679 = vmul.f32 %v569, %v640
    %v680 = vmul.f32 %v572, %v642
    %v681 = vmul.f32 %v577, %v644
    %v682 = vmul.f32 %v580, %v646
    %v683 = vmul.f32 %v585, %v648
    %v684 = vmul.f32 %v588, %v650
    %v685 = vmul.f32 %v593, %v652
    %v686 = vmul.f32 %v596, %v654
    %v687 = vpack.c.bf16 %v672, %v671
    %v688 = vpack.c.bf16 %v674, %v673
    %v689 = vpack.c.bf16 %v676, %v675
    %v690 = vpack.c.bf16 %v678, %v677
    %v691 = vpack.c.bf16 %v680, %v679
    %v692 = vpack.c.bf16 %v682, %v681
    %v693 = vpack.c.bf16 %v684, %v683
    %v694 = vpack.c.bf16 %v686, %v685
    %695 = vrot.lane.b32.xlu0 %v215, 64
    %v696 = vpop.permute.xlu0 %695
    %697 = vrot.lane.b32.xlu0 %v216, 64
    %v698 = vpop.permute.xlu0 %697
    %699 = vrot.lane.b32.xlu0 %v217, 64
    %v700 = vpop.permute.xlu0 %699
    %701 = vrot.lane.b32.xlu0 %v218, 64
    %v702 = vpop.permute.xlu0 %701
    %703 = vrot.lane.b32.xlu0 %v219, 64
    %v704 = vpop.permute.xlu0 %703
    %705 = vrot.lane.b32.xlu0 %v220, 64
    %v706 = vpop.permute.xlu0 %705
    %707 = vrot.lane.b32.xlu0 %v221, 64
    %v708 = vpop.permute.xlu0 %707
    %709 = vrot.lane.b32.xlu0 %v222, 64
    %v710 = vpop.permute.xlu0 %709
    %711 = vrot.lane.b32.xlu0 %v223, 64
    %v712 = vpop.permute.xlu0 %711
    %713 = vrot.lane.b32.xlu0 %v224, 64
    %v714 = vpop.permute.xlu0 %713
    %715 = vrot.lane.b32.xlu0 %v225, 64
    %v716 = vpop.permute.xlu0 %715
    %717 = vrot.lane.b32.xlu0 %v226, 64
    %v718 = vpop.permute.xlu0 %717
    %719 = vrot.lane.b32.xlu0 %v227, 64
    %v720 = vpop.permute.xlu0 %719
    %721 = vrot.lane.b32.xlu0 %v228, 64
    %v722 = vpop.permute.xlu0 %721
    %723 = vrot.lane.b32.xlu0 %v229, 64
    %v724 = vpop.permute.xlu0 %723
    %725 = vrot.lane.b32.xlu0 %v230, 64
    %v726 = vpop.permute.xlu0 %725
    %v743 = vmul.f32 %v537, %v696
    %v744 = vmul.f32 %v540, %v698
    %v745 = vmul.f32 %v545, %v700
    %v746 = vmul.f32 %v548, %v702
    %v747 = vmul.f32 %v553, %v704
    %v748 = vmul.f32 %v556, %v706
    %v749 = vmul.f32 %v561, %v708
    %v750 = vmul.f32 %v564, %v710
    %v751 = vmul.f32 %v569, %v712
    %v752 = vmul.f32 %v572, %v714
    %v753 = vmul.f32 %v577, %v716
    %v754 = vmul.f32 %v580, %v718
    %v755 = vmul.f32 %v585, %v720
    %v756 = vmul.f32 %v588, %v722
    %v757 = vmul.f32 %v593, %v724
    %v758 = vmul.f32 %v596, %v726
    %v759 = vpack.c.bf16 %v744, %v743
    %v760 = vpack.c.bf16 %v746, %v745
    %v761 = vpack.c.bf16 %v748, %v747
    %v762 = vpack.c.bf16 %v750, %v749
    %v763 = vpack.c.bf16 %v752, %v751
    %v764 = vpack.c.bf16 %v754, %v753
    %v765 = vpack.c.bf16 %v756, %v755
    %v766 = vpack.c.bf16 %v758, %v757
    %775 = vrot.lane.b32.xlu0 %v687, 96
    %v776 = vpop.permute.xlu0 %775
    %777 = vrot.lane.b32.xlu0 %v688, 96
    %v778 = vpop.permute.xlu0 %777
    %779 = vrot.lane.b32.xlu0 %v689, 96
    %v780 = vpop.permute.xlu0 %779
    %781 = vrot.lane.b32.xlu0 %v690, 96
    %v782 = vpop.permute.xlu0 %781
    %783 = vrot.lane.b32.xlu0 %v691, 96
    %v784 = vpop.permute.xlu0 %783
    %785 = vrot.lane.b32.xlu0 %v692, 96
    %v786 = vpop.permute.xlu0 %785
    %787 = vrot.lane.b32.xlu0 %v693, 96
    %v788 = vpop.permute.xlu0 %787
    %789 = vrot.lane.b32.xlu0 %v694, 96
    %v790 = vpop.permute.xlu0 %789
    %v792 = vsel %vm325, %v599, 0
    %v795 = vsel %vm325, %v600, 0
    %v798 = vsel %vm325, %v601, 0
    %v801 = vsel %vm325, %v602, 0
    %v804 = vsel %vm325, %v603, 0
    %v807 = vsel %vm325, %v604, 0
    %v810 = vsel %vm325, %v605, 0
    %v813 = vsel %vm325, %v606, 0
    %v816 = vsel %vm325, %v776, 0
    %v819 = vsel %vm325, %v778, 0
    %v822 = vsel %vm325, %v780, 0
    %v825 = vsel %vm325, %v782, 0
    %v828 = vsel %vm325, %v784, 0
    %v831 = vsel %vm325, %v786, 0
    %v834 = vsel %vm325, %v788, 0
    %v837 = vsel %vm325, %v790, 0
    %839 = vmatprep.subr.bf16.mxu0 0
    %840 = vmatpush1.bf16.xpose.msra.mxu0 %v816
    %841 = vmatprep.subr.bf16.mxu0 0
    %842 = vmatpush1.bf16.xpose.msra.mxu0 %v819
    %843 = vmatprep.subr.bf16.mxu0 0
    %844 = vmatpush1.bf16.xpose.msra.mxu0 %v822
    %845 = vmatprep.subr.bf16.mxu0 0
    %846 = vmatpush1.bf16.xpose.msra.mxu0 %v825
    %847 = vmatprep.subr.bf16.mxu0 0
    %848 = vmatpush1.bf16.xpose.msra.mxu0 %v828
    %849 = vmatprep.subr.bf16.mxu0 0
    %850 = vmatpush1.bf16.xpose.msra.mxu0 %v831
    %851 = vmatprep.subr.bf16.mxu0 0
    %852 = vmatpush1.bf16.xpose.msra.mxu0 %v834
    %853 = vmatprep.subr.bf16.mxu0 0
    %854 = vmatpush1.bf16.xpose.msra.mxu0 %v837
    %855 = vmatprep.subr.bf16.mxu0 0
    %856 = vmatpush1.bf16.xpose.msra.mxu0 0
    %857 = vmatprep.subr.bf16.mxu0 0
    %858 = vmatpush1.bf16.xpose.msra.mxu0 0
    %859 = vmatprep.subr.bf16.mxu0 0
    %860 = vmatpush1.bf16.xpose.msra.mxu0 0
    %861 = vmatprep.subr.bf16.mxu0 0
    %862 = vmatpush1.bf16.xpose.msra.mxu0 0
    %863 = vmatprep.subr.bf16.mxu0 0
    %864 = vmatpush1.bf16.xpose.msra.mxu0 0
    %865 = vmatprep.subr.bf16.mxu0 0
    %866 = vmatpush1.bf16.xpose.msra.mxu0 0
    %867 = vmatprep.subr.bf16.mxu0 0
    %868 = vmatpush1.bf16.xpose.msra.mxu0 0
    %869 = vmatprep.subr.bf16.mxu0 0
    %870 = vmatpush1.bf16.xpose.msra.mxu0 0
    %871 = vmatprep.mubr.bf16.mxu0 0
    %872 = vmatmul.mubr.bf16.gmra.mrb[0].mxu0 %v792
    %v873 = vpop.f32.mrb[0].mxu0
    %v874 = vadd.f32 0.0, %v873
    %v875 = vpop.f32.mrb[0].mxu0
    %v876 = vpop.f32.mrb[0].mxu0
    %v877 = vadd.f32 0.0, %v876
    %v878 = vpop.f32.mrb[0].mxu0
    %879 = vmatprep.mubr.bf16.mxu0 0
    %880 = vmatmul.mubr.bf16.gmra.mrb[0].mxu0 %v795
    %v881 = vpop.f32.mrb[0].mxu0
    %v882 = vadd.f32 0.0, %v881
    %v883 = vpop.f32.mrb[0].mxu0
    %v884 = vpop.f32.mrb[0].mxu0
    %v885 = vadd.f32 0.0, %v884
    %v886 = vpop.f32.mrb[0].mxu0
    %887 = vmatprep.mubr.bf16.mxu0 0
    %888 = vmatmul.mubr.bf16.gmra.mrb[0].mxu0 %v798
    %v889 = vpop.f32.mrb[0].mxu0
    %v890 = vadd.f32 0.0, %v889
    %v891 = vpop.f32.mrb[0].mxu0
    %v892 = vpop.f32.mrb[0].mxu0
    %v893 = vadd.f32 0.0, %v892
    %v894 = vpop.f32.mrb[0].mxu0
    %895 = vmatprep.mubr.bf16.mxu0 0
    %896 = vmatmul.mubr.bf16.gmra.mrb[0].mxu0 %v801
    %v897 = vpop.f32.mrb[0].mxu0
    %v898 = vadd.f32 0.0, %v897
    %v899 = vpop.f32.mrb[0].mxu0
    %v900 = vpop.f32.mrb[0].mxu0
    %v901 = vadd.f32 0.0, %v900
    %v902 = vpop.f32.mrb[0].mxu0
    %903 = vmatprep.mubr.bf16.mxu0 0
    %904 = vmatmul.mubr.bf16.gmra.mrb[0].mxu0 %v804
    %v905 = vpop.f32.mrb[0].mxu0
    %v906 = vadd.f32 0.0, %v905
    %v907 = vpop.f32.mrb[0].mxu0
    %v908 = vpop.f32.mrb[0].mxu0
    %v909 = vadd.f32 0.0, %v908
    %v910 = vpop.f32.mrb[0].mxu0
    %911 = vmatprep.mubr.bf16.mxu0 0
    %912 = vmatmul.mubr.bf16.gmra.mrb[0].mxu0 %v807
    %v913 = vpop.f32.mrb[0].mxu0
    %v914 = vadd.f32 0.0, %v913
    %v915 = vpop.f32.mrb[0].mxu0
    %v916 = vpop.f32.mrb[0].mxu0
    %v917 = vadd.f32 0.0, %v916
    %v918 = vpop.f32.mrb[0].mxu0
    %919 = vmatprep.mubr.bf16.mxu0 0
    %920 = vmatmul.mubr.bf16.gmra.mrb[0].mxu0 %v810
    %v921 = vpop.f32.mrb[0].mxu0
    %v922 = vadd.f32 0.0, %v921
    %v923 = vpop.f32.mrb[0].mxu0
    %v924 = vpop.f32.mrb[0].mxu0
    %v925 = vadd.f32 0.0, %v924
    %v926 = vpop.f32.mrb[0].mxu0
    %927 = vmatprep.mubr.bf16.mxu0 0
    %928 = vmatmul.mubr.bf16.gmra.mrb[0].mxu0 %v813
    %v929 = vpop.f32.mrb[0].mxu0
    %v930 = vadd.f32 0.0, %v929
    %v931 = vpop.f32.mrb[0].mxu0
    %v932 = vpop.f32.mrb[0].mxu0
    %v933 = vadd.f32 0.0, %v932
    %v934 = vpop.f32.mrb[0].mxu0
    %935 = vdwg.mxu0
    %v936 = vmul.f32 %v874, 0.35355338
    %v937 = vmul.f32 %v877, 0.35355338
    %v938 = vmul.f32 %v882, 0.35355338
    %v939 = vmul.f32 %v885, 0.35355338
    %v940 = vmul.f32 %v890, 0.35355338
    %v941 = vmul.f32 %v893, 0.35355338
    %v942 = vmul.f32 %v898, 0.35355338
    %v943 = vmul.f32 %v901, 0.35355338
    %v944 = vmul.f32 %v906, 0.35355338
    %v945 = vmul.f32 %v909, 0.35355338
    %v946 = vmul.f32 %v914, 0.35355338
    %v947 = vmul.f32 %v917, 0.35355338
    %v948 = vmul.f32 %v922, 0.35355338
    %v949 = vmul.f32 %v925, 0.35355338
    %v950 = vmul.f32 %v930, 0.35355338
    %v951 = vmul.f32 %v933, 0.35355338
    %v952 = vadd.f32 %v936, %v231
    %v953 = vadd.f32 %v937, %v232
    %v954 = vadd.f32 %v938, %v233
    %v955 = vadd.f32 %v939, %v234
    %v956 = vadd.f32 %v940, %v235
    %v957 = vadd.f32 %v941, %v236
    %v958 = vadd.f32 %v942, %v237
    %v959 = vadd.f32 %v943, %v238
    %v960 = vadd.f32 %v944, %v239
    %v961 = vadd.f32 %v945, %v240
    %v962 = vadd.f32 %v946, %v241
    %v963 = vadd.f32 %v947, %v242
    %v964 = vadd.f32 %v948, %v243
    %v965 = vadd.f32 %v949, %v244
    %v966 = vadd.f32 %v950, %v245
    %v967 = vadd.f32 %v951, %v246
    %968 = vmax.xlane.f32.xlu0 %v952
    %v969 = vpop.xlane.xlu0 %968
    %970 = vmax.xlane.f32.xlu0 %v953
    %v971 = vpop.xlane.xlu0 %970
    %972 = vmax.xlane.f32.xlu0 %v954
    %v973 = vpop.xlane.xlu0 %972
    %974 = vmax.xlane.f32.xlu0 %v955
    %v975 = vpop.xlane.xlu0 %974
    %976 = vmax.xlane.f32.xlu0 %v956
    %v977 = vpop.xlane.xlu0 %976
    %978 = vmax.xlane.f32.xlu0 %v957
    %v979 = vpop.xlane.xlu0 %978
    %980 = vmax.xlane.f32.xlu0 %v958
    %v981 = vpop.xlane.xlu0 %980
    %982 = vmax.xlane.f32.xlu0 %v959
    %v983 = vpop.xlane.xlu0 %982
    %984 = vmax.xlane.f32.xlu0 %v960
    %v985 = vpop.xlane.xlu0 %984
    %986 = vmax.xlane.f32.xlu0 %v961
    %v987 = vpop.xlane.xlu0 %986
    %988 = vmax.xlane.f32.xlu0 %v962
    %v989 = vpop.xlane.xlu0 %988
    %990 = vmax.xlane.f32.xlu0 %v963
    %v991 = vpop.xlane.xlu0 %990
    %992 = vmax.xlane.f32.xlu0 %v964
    %v993 = vpop.xlane.xlu0 %992
    %994 = vmax.xlane.f32.xlu0 %v965
    %v995 = vpop.xlane.xlu0 %994
    %996 = vmax.xlane.f32.xlu0 %v966
    %v997 = vpop.xlane.xlu0 %996
    %998 = vmax.xlane.f32.xlu0 %v967
    %v999 = vpop.xlane.xlu0 %998
    %v1000 = vsub.f32 %v952, %v969
    %v1001 = vsub.f32 %v953, %v971
    %v1002 = vsub.f32 %v954, %v973
    %v1003 = vsub.f32 %v955, %v975
    %v1004 = vsub.f32 %v956, %v977
    %v1005 = vsub.f32 %v957, %v979
    %v1006 = vsub.f32 %v958, %v981
    %v1007 = vsub.f32 %v959, %v983
    %v1008 = vsub.f32 %v960, %v985
    %v1009 = vsub.f32 %v961, %v987
    %v1010 = vsub.f32 %v962, %v989
    %v1011 = vsub.f32 %v963, %v991
    %v1012 = vsub.f32 %v964, %v993
    %v1013 = vsub.f32 %v965, %v995
    %v1014 = vsub.f32 %v966, %v997
    %v1015 = vsub.f32 %v967, %v999
    %v1016 = vmul.f32 %v1000, 1.442695
    %v1017 = vpow.pop %v1016
    %v1018 = vmul.f32 %v1001, 1.442695
    %v1019 = vpow.pop %v1018
    %v1020 = vmul.f32 %v1002, 1.442695
    %v1021 = vpow.pop %v1020
    %v1022 = vmul.f32 %v1003, 1.442695
    %v1023 = vpow.pop %v1022
    %v1024 = vmul.f32 %v1004, 1.442695
    %v1025 = vpow.pop %v1024
    %v1026 = vmul.f32 %v1005, 1.442695
    %v1027 = vpow.pop %v1026
    %v1028 = vmul.f32 %v1006, 1.442695
    %v1029 = vpow.pop %v1028
    %v1030 = vmul.f32 %v1007, 1.442695
    %v1031 = vpow.pop %v1030
    %v1032 = vmul.f32 %v1008, 1.442695
    %v1033 = vpow.pop %v1032
    %v1034 = vmul.f32 %v1009, 1.442695
    %v1035 = vpow.pop %v1034
    %v1036 = vmul.f32 %v1010, 1.442695
    %v1037 = vpow.pop %v1036
    %v1038 = vmul.f32 %v1011, 1.442695
    %v1039 = vpow.pop %v1038
    %v1040 = vmul.f32 %v1012, 1.442695
    %v1041 = vpow.pop %v1040
    %v1042 = vmul.f32 %v1013, 1.442695
    %v1043 = vpow.pop %v1042
    %v1044 = vmul.f32 %v1014, 1.442695
    %v1045 = vpow.pop %v1044
    %v1046 = vmul.f32 %v1015, 1.442695
    %v1047 = vpow.pop %v1046
    %1048 = vadd.xlane.f32.xlu0 %v1017
    %v1049 = vpop.xlane.xlu0 %1048
    %1050 = vadd.xlane.f32.xlu0 %v1019
    %v1051 = vpop.xlane.xlu0 %1050
    %1052 = vadd.xlane.f32.xlu0 %v1021
    %v1053 = vpop.xlane.xlu0 %1052
    %1054 = vadd.xlane.f32.xlu0 %v1023
    %v1055 = vpop.xlane.xlu0 %1054
    %1056 = vadd.xlane.f32.xlu0 %v1025
    %v1057 = vpop.xlane.xlu0 %1056
    %1058 = vadd.xlane.f32.xlu0 %v1027
    %v1059 = vpop.xlane.xlu0 %1058
    %1060 = vadd.xlane.f32.xlu0 %v1029
    %v1061 = vpop.xlane.xlu0 %1060
    %1062 = vadd.xlane.f32.xlu0 %v1031
    %v1063 = vpop.xlane.xlu0 %1062
    %1064 = vadd.xlane.f32.xlu0 %v1033
    %v1065 = vpop.xlane.xlu0 %1064
    %1066 = vadd.xlane.f32.xlu0 %v1035
    %v1067 = vpop.xlane.xlu0 %1066
    %1068 = vadd.xlane.f32.xlu0 %v1037
    %v1069 = vpop.xlane.xlu0 %1068
    %1070 = vadd.xlane.f32.xlu0 %v1039
    %v1071 = vpop.xlane.xlu0 %1070
    %1072 = vadd.xlane.f32.xlu0 %v1041
    %v1073 = vpop.xlane.xlu0 %1072
    %1074 = vadd.xlane.f32.xlu0 %v1043
    %v1075 = vpop.xlane.xlu0 %1074
    %1076 = vadd.xlane.f32.xlu0 %v1045
    %v1077 = vpop.xlane.xlu0 %1076
    %1078 = vadd.xlane.f32.xlu0 %v1047
    %v1079 = vpop.xlane.xlu0 %1078
    %v1080 = vrcp.pop %v1049
    %v1081 = vrcp.pop %v1051
    %v1082 = vrcp.pop %v1053
    %v1083 = vrcp.pop %v1055
    %v1084 = vrcp.pop %v1057
    %v1085 = vrcp.pop %v1059
    %v1086 = vrcp.pop %v1061
    %v1087 = vrcp.pop %v1063
    %v1088 = vrcp.pop %v1065
    %v1089 = vrcp.pop %v1067
    %v1090 = vrcp.pop %v1069
    %v1091 = vrcp.pop %v1071
    %v1092 = vrcp.pop %v1073
    %v1093 = vrcp.pop %v1075
    %v1094 = vrcp.pop %v1077
    %v1095 = vrcp.pop %v1079
    %v1096 = vmul.f32 %v1017, %v1080
    %v1097 = vmul.f32 %v1019, %v1081
    %v1098 = vmul.f32 %v1021, %v1082
    %v1099 = vmul.f32 %v1023, %v1083
    %v1100 = vmul.f32 %v1025, %v1084
    %v1101 = vmul.f32 %v1027, %v1085
    %v1102 = vmul.f32 %v1029, %v1086
    %v1103 = vmul.f32 %v1031, %v1087
    %v1104 = vmul.f32 %v1033, %v1088
    %v1105 = vmul.f32 %v1035, %v1089
    %v1106 = vmul.f32 %v1037, %v1090
    %v1107 = vmul.f32 %v1039, %v1091
    %v1108 = vmul.f32 %v1041, %v1092
    %v1109 = vmul.f32 %v1043, %v1093
    %v1110 = vmul.f32 %v1045, %v1094
    %v1111 = vmul.f32 %v1047, %v1095
    %v1112 = vpack.c.bf16 %v1097, %v1096
    %v1113 = vpack.c.bf16 %v1099, %v1098
    %v1114 = vpack.c.bf16 %v1101, %v1100
    %v1115 = vpack.c.bf16 %v1103, %v1102
    %v1116 = vpack.c.bf16 %v1105, %v1104
    %v1117 = vpack.c.bf16 %v1107, %v1106
    %v1118 = vpack.c.bf16 %v1109, %v1108
    %v1119 = vpack.c.bf16 %v1111, %v1110
    %1128 = vrot.lane.b32.xlu0 %v759, 64
    %v1129 = vpop.permute.xlu0 %1128
    %1130 = vrot.lane.b32.xlu0 %v760, 64
    %v1131 = vpop.permute.xlu0 %1130
    %1132 = vrot.lane.b32.xlu0 %v761, 64
    %v1133 = vpop.permute.xlu0 %1132
    %1134 = vrot.lane.b32.xlu0 %v762, 64
    %v1135 = vpop.permute.xlu0 %1134
    %1136 = vrot.lane.b32.xlu0 %v763, 64
    %v1137 = vpop.permute.xlu0 %1136
    %1138 = vrot.lane.b32.xlu0 %v764, 64
    %v1139 = vpop.permute.xlu0 %1138
    %1140 = vrot.lane.b32.xlu0 %v765, 64
    %v1141 = vpop.permute.xlu0 %1140
    %1142 = vrot.lane.b32.xlu0 %v766, 64
    %v1143 = vpop.permute.xlu0 %1142
    %1152 = vmatprep.subr.bf16.mxu0 0
    %1153 = vmatpush1.bf16.msra.mxu0 %v1129
    %1154 = vmatprep.subr.bf16.mxu0 0
    %1155 = vmatpush1.bf16.msra.mxu0 %v1131
    %1156 = vmatprep.subr.bf16.mxu0 0
    %1157 = vmatpush1.bf16.msra.mxu0 %v1133
    %1158 = vmatprep.subr.bf16.mxu0 0
    %1159 = vmatpush1.bf16.msra.mxu0 %v1135
    %1160 = vmatprep.subr.bf16.mxu0 0
    %1161 = vmatpush1.bf16.msra.mxu0 %v1137
    %1162 = vmatprep.subr.bf16.mxu0 0
    %1163 = vmatpush1.bf16.msra.mxu0 %v1139
    %1164 = vmatprep.subr.bf16.mxu0 0
    %1165 = vmatpush1.bf16.msra.mxu0 %v1141
    %1166 = vmatprep.subr.bf16.mxu0 0
    %1167 = vmatpush1.bf16.msra.mxu0 %v1143
    %1168 = vmatprep.subr.bf16.mxu0 0
    %1169 = vmatpush1.bf16.msra.mxu0 0
    %1170 = vmatprep.subr.bf16.mxu0 0
    %1171 = vmatpush1.bf16.msra.mxu0 0
    %1172 = vmatprep.subr.bf16.mxu0 0
    %1173 = vmatpush1.bf16.msra.mxu0 0
    %1174 = vmatprep.subr.bf16.mxu0 0
    %1175 = vmatpush1.bf16.msra.mxu0 0
    %1176 = vmatprep.subr.bf16.mxu0 0
    %1177 = vmatpush1.bf16.msra.mxu0 0
    %1178 = vmatprep.subr.bf16.mxu0 0
    %1179 = vmatpush1.bf16.msra.mxu0 0
    %1180 = vmatprep.subr.bf16.mxu0 0
    %1181 = vmatpush1.bf16.msra.mxu0 0
    %1182 = vmatprep.subr.bf16.mxu0 0
    %1183 = vmatpush1.bf16.msra.mxu0 0
    %1184 = vmatprep.mubr.bf16.mxu0 0
    %1185 = vmatmul.mubr.bf16.gmra.mrb[0].mxu0 %v1112
    %v1186 = vpop.f32.mrb[0].mxu0
    %v1187 = vadd.f32 0.0, %v1186
    %v1188 = vpop.f32.mrb[0].mxu0
    %v1189 = vpop.f32.mrb[0].mxu0
    %v1190 = vadd.f32 0.0, %v1189
    %v1191 = vpop.f32.mrb[0].mxu0
    %1192 = vmatprep.mubr.bf16.mxu0 0
    %1193 = vmatmul.mubr.bf16.gmra.mrb[0].mxu0 %v1113
    %v1194 = vpop.f32.mrb[0].mxu0
    %v1195 = vadd.f32 0.0, %v1194
    %v1196 = vpop.f32.mrb[0].mxu0
    %v1197 = vpop.f32.mrb[0].mxu0
    %v1198 = vadd.f32 0.0, %v1197
    %v1199 = vpop.f32.mrb[0].mxu0
    %1200 = vmatprep.mubr.bf16.mxu0 0
    %1201 = vmatmul.mubr.bf16.gmra.mrb[0].mxu0 %v1114
    %v1202 = vpop.f32.mrb[0].mxu0
    %v1203 = vadd.f32 0.0, %v1202
    %v1204 = vpop.f32.mrb[0].mxu0
    %v1205 = vpop.f32.mrb[0].mxu0
    %v1206 = vadd.f32 0.0, %v1205
    %v1207 = vpop.f32.mrb[0].mxu0
    %1208 = vmatprep.mubr.bf16.mxu0 0
    %1209 = vmatmul.mubr.bf16.gmra.mrb[0].mxu0 %v1115
    %v1210 = vpop.f32.mrb[0].mxu0
    %v1211 = vadd.f32 0.0, %v1210
    %v1212 = vpop.f32.mrb[0].mxu0
    %v1213 = vpop.f32.mrb[0].mxu0
    %v1214 = vadd.f32 0.0, %v1213
    %v1215 = vpop.f32.mrb[0].mxu0
    %1216 = vmatprep.mubr.bf16.mxu0 0
    %1217 = vmatmul.mubr.bf16.gmra.mrb[0].mxu0 %v1116
    %v1218 = vpop.f32.mrb[0].mxu0
    %v1219 = vadd.f32 0.0, %v1218
    %v1220 = vpop.f32.mrb[0].mxu0
    %v1221 = vpop.f32.mrb[0].mxu0
    %v1222 = vadd.f32 0.0, %v1221
    %v1223 = vpop.f32.mrb[0].mxu0
    %1224 = vmatprep.mubr.bf16.mxu0 0
    %1225 = vmatmul.mubr.bf16.gmra.mrb[0].mxu0 %v1117
    %v1226 = vpop.f32.mrb[0].mxu0
    %v1227 = vadd.f32 0.0, %v1226
    %v1228 = vpop.f32.mrb[0].mxu0
    %v1229 = vpop.f32.mrb[0].mxu0
    %v1230 = vadd.f32 0.0, %v1229
    %v1231 = vpop.f32.mrb[0].mxu0
    %1232 = vmatprep.mubr.bf16.mxu0 0
    %1233 = vmatmul.mubr.bf16.gmra.mrb[0].mxu0 %v1118
    %v1234 = vpop.f32.mrb[0].mxu0
    %v1235 = vadd.f32 0.0, %v1234
    %v1236 = vpop.f32.mrb[0].mxu0
    %v1237 = vpop.f32.mrb[0].mxu0
    %v1238 = vadd.f32 0.0, %v1237
    %v1239 = vpop.f32.mrb[0].mxu0
    %1240 = vmatprep.mubr.bf16.mxu0 0
    %1241 = vmatmul.mubr.bf16.gmra.mrb[0].mxu0 %v1119
    %v1242 = vpop.f32.mrb[0].mxu0
    %v1243 = vadd.f32 0.0, %v1242
    %v1244 = vpop.f32.mrb[0].mxu0
    %v1245 = vpop.f32.mrb[0].mxu0
    %v1246 = vadd.f32 0.0, %v1245
    %v1247 = vpop.f32.mrb[0].mxu0
    %1248 = vdwg.mxu0
    %v1249 = vpack.c.bf16 %v1190, %v1187
    %v1250 = vpack.c.bf16 %v1198, %v1195
    %v1251 = vpack.c.bf16 %v1206, %v1203
    %v1252 = vpack.c.bf16 %v1214, %v1211
    %v1253 = vpack.c.bf16 %v1222, %v1219
    %v1254 = vpack.c.bf16 %v1230, %v1227
    %v1255 = vpack.c.bf16 %v1238, %v1235
    %v1256 = vpack.c.bf16 %v1246, %v1243
    %v1257 = vld [vmem:[%s13] sm:$0xf]
    %v1258 = vld [vmem:[%s13 + $0x4] sm:$0xf]
    %v1259 = vld [vmem:[%s13 + $0x8] sm:$0xf]
    %v1260 = vld [vmem:[%s13 + $0xc] sm:$0xf]
    %v1265 = vunpack.c.l.b16 %v1257
    %v1266 = vunpack.c.l.b16 %v1258
    %v1267 = vunpack.c.l.b16 %v1259
    %v1268 = vunpack.c.l.b16 %v1260
    %v1269 = vpack.c.b16 %v1266, %v1265
    %v1270 = vpack.c.b16 %v1268, %v1267
    %v1274 = vsel %vm325, %v1249, 0
    %v1277 = vsel %vm325, %v1250, 0
    %v1280 = vsel %vm325, %v1251, 0
    %v1283 = vsel %vm325, %v1252, 0
    %v1286 = vsel %vm325, %v1253, 0
    %v1289 = vsel %vm325, %v1254, 0
    %v1292 = vsel %vm325, %v1255, 0
    %v1295 = vsel %vm325, %v1256, 0
    %1297 = vmatprep.subr.bf16.mxu0 0
    %1298 = vmatpush1.bf16.msra.mxu0 %v1269
    %1299 = vmatprep.subr.bf16.mxu0 0
    %1300 = vmatpush1.bf16.msra.mxu0 %v1270
    %1301 = vmatprep.subr.bf16.mxu0 0
    %1302 = vmatpush1.bf16.msra.mxu0 0
    %1303 = vmatprep.subr.bf16.mxu0 0
    %1304 = vmatpush1.bf16.msra.mxu0 0
    %1305 = vmatprep.subr.bf16.mxu0 0
    %1306 = vmatpush1.bf16.msra.mxu0 0
    %1307 = vmatprep.subr.bf16.mxu0 0
    %1308 = vmatpush1.bf16.msra.mxu0 0
    %1309 = vmatprep.subr.bf16.mxu0 0
    %1310 = vmatpush1.bf16.msra.mxu0 0
    %1311 = vmatprep.subr.bf16.mxu0 0
    %1312 = vmatpush1.bf16.msra.mxu0 0
    %1313 = vmatprep.subr.bf16.mxu0 0
    %1314 = vmatpush1.bf16.msra.mxu0 0
    %1315 = vmatprep.subr.bf16.mxu0 0
    %1316 = vmatpush1.bf16.msra.mxu0 0
    %1317 = vmatprep.subr.bf16.mxu0 0
    %1318 = vmatpush1.bf16.msra.mxu0 0
    %1319 = vmatprep.subr.bf16.mxu0 0
    %1320 = vmatpush1.bf16.msra.mxu0 0
    %1321 = vmatprep.subr.bf16.mxu0 0
    %1322 = vmatpush1.bf16.msra.mxu0 0
    %1323 = vmatprep.subr.bf16.mxu0 0
    %1324 = vmatpush1.bf16.msra.mxu0 0
    %1325 = vmatprep.subr.bf16.mxu0 0
    %1326 = vmatpush1.bf16.msra.mxu0 0
    %1327 = vmatprep.subr.bf16.mxu0 0
    %1328 = vmatpush1.bf16.msra.mxu0 0
    %1329 = vmatprep.mubr.bf16.mxu0 0
    %1330 = vmatmul.mubr.bf16.gmra.mrb[0].mxu0 %v1274
    %v1331 = vpop.f32.mrb[0].mxu0
    %v1332 = vadd.f32 0.0, %v1331
    %v1333 = vpop.f32.mrb[0].mxu0
    %v1334 = vpop.f32.mrb[0].mxu0
    %v1335 = vadd.f32 0.0, %v1334
    %v1336 = vpop.f32.mrb[0].mxu0
    %1337 = vmatprep.mubr.bf16.mxu0 0
    %1338 = vmatmul.mubr.bf16.gmra.mrb[0].mxu0 %v1277
    %v1339 = vpop.f32.mrb[0].mxu0
    %v1340 = vadd.f32 0.0, %v1339
    %v1341 = vpop.f32.mrb[0].mxu0
    %v1342 = vpop.f32.mrb[0].mxu0
    %v1343 = vadd.f32 0.0, %v1342
    %v1344 = vpop.f32.mrb[0].mxu0
    %1345 = vmatprep.mubr.bf16.mxu0 0
    %1346 = vmatmul.mubr.bf16.gmra.mrb[0].mxu0 %v1280
    %v1347 = vpop.f32.mrb[0].mxu0
    %v1348 = vadd.f32 0.0, %v1347
    %v1349 = vpop.f32.mrb[0].mxu0
    %v1350 = vpop.f32.mrb[0].mxu0
    %v1351 = vadd.f32 0.0, %v1350
    %v1352 = vpop.f32.mrb[0].mxu0
    %1353 = vmatprep.mubr.bf16.mxu0 0
    %1354 = vmatmul.mubr.bf16.gmra.mrb[0].mxu0 %v1283
    %v1355 = vpop.f32.mrb[0].mxu0
    %v1356 = vadd.f32 0.0, %v1355
    %v1357 = vpop.f32.mrb[0].mxu0
    %v1358 = vpop.f32.mrb[0].mxu0
    %v1359 = vadd.f32 0.0, %v1358
    %v1360 = vpop.f32.mrb[0].mxu0
    %1361 = vmatprep.mubr.bf16.mxu0 0
    %1362 = vmatmul.mubr.bf16.gmra.mrb[0].mxu0 %v1286
    %v1363 = vpop.f32.mrb[0].mxu0
    %v1364 = vadd.f32 0.0, %v1363
    %v1365 = vpop.f32.mrb[0].mxu0
    %v1366 = vpop.f32.mrb[0].mxu0
    %v1367 = vadd.f32 0.0, %v1366
    %v1368 = vpop.f32.mrb[0].mxu0
    %1369 = vmatprep.mubr.bf16.mxu0 0
    %1370 = vmatmul.mubr.bf16.gmra.mrb[0].mxu0 %v1289
    %v1371 = vpop.f32.mrb[0].mxu0
    %v1372 = vadd.f32 0.0, %v1371
    %v1373 = vpop.f32.mrb[0].mxu0
    %v1374 = vpop.f32.mrb[0].mxu0
    %v1375 = vadd.f32 0.0, %v1374
    %v1376 = vpop.f32.mrb[0].mxu0
    %1377 = vmatprep.mubr.bf16.mxu0 0
    %1378 = vmatmul.mubr.bf16.gmra.mrb[0].mxu0 %v1292
    %v1379 = vpop.f32.mrb[0].mxu0
    %v1380 = vadd.f32 0.0, %v1379
    %v1381 = vpop.f32.mrb[0].mxu0
    %v1382 = vpop.f32.mrb[0].mxu0
    %v1383 = vadd.f32 0.0, %v1382
    %v1384 = vpop.f32.mrb[0].mxu0
    %1385 = vmatprep.mubr.bf16.mxu0 0
    %1386 = vmatmul.mubr.bf16.gmra.mrb[0].mxu0 %v1295
    %v1387 = vpop.f32.mrb[0].mxu0
    %v1388 = vadd.f32 0.0, %v1387
    %v1389 = vpop.f32.mrb[0].mxu0
    %v1390 = vpop.f32.mrb[0].mxu0
    %v1391 = vadd.f32 0.0, %v1390
    %v1392 = vpop.f32.mrb[0].mxu0
    %1393 = vdwg.mxu0
    %v1394 = vmul.f32 %v1332, %v247
    %v1395 = vmul.f32 %v1335, %v248
    %v1396 = vmul.f32 %v1340, %v249
    %v1397 = vmul.f32 %v1343, %v250
    %v1398 = vmul.f32 %v1348, %v251
    %v1399 = vmul.f32 %v1351, %v252
    %v1400 = vmul.f32 %v1356, %v253
    %v1401 = vmul.f32 %v1359, %v254
    %v1402 = vmul.f32 %v1364, %v255
    %v1403 = vmul.f32 %v1367, %v256
    %v1404 = vmul.f32 %v1372, %v257
    %v1405 = vmul.f32 %v1375, %v258
    %v1406 = vmul.f32 %v1380, %v259
    %v1407 = vmul.f32 %v1383, %v260
    %v1408 = vmul.f32 %v1388, %v261
    %v1409 = vmul.f32 %v1391, %v262
    %1410 = vmatprep.subr.mxu0 0.0
    %1411 = vmatpush1.msra.mxu0 %v1394
    %1412 = vmatprep.subr.mxu0 0.0
    %1413 = vmatpush1.msra.mxu0 %v1395
    %1414 = vmatprep.subr.mxu0 0.0
    %1415 = vmatpush1.msra.mxu0 %v1396
    %1416 = vmatprep.subr.mxu0 0.0
    %1417 = vmatpush1.msra.mxu0 %v1397
    %1418 = vmatprep.subr.mxu0 0.0
    %1419 = vmatpush1.msra.mxu0 %v1398
    %1420 = vmatprep.subr.mxu0 0.0
    %1421 = vmatpush1.msra.mxu0 %v1399
    %1422 = vmatprep.subr.mxu0 0.0
    %1423 = vmatpush1.msra.mxu0 %v1400
    %1424 = vmatprep.subr.mxu0 0.0
    %1425 = vmatpush1.msra.mxu0 %v1401
    %1426 = vmatprep.subr.mxu0 0.0
    %1427 = vmatpush1.msra.mxu0 %v1402
    %1428 = vmatprep.subr.mxu0 0.0
    %1429 = vmatpush1.msra.mxu0 %v1403
    %1430 = vmatprep.subr.mxu0 0.0
    %1431 = vmatpush1.msra.mxu0 %v1404
    %1432 = vmatprep.subr.mxu0 0.0
    %1433 = vmatpush1.msra.mxu0 %v1405
    %1434 = vmatprep.subr.mxu0 0.0
    %1435 = vmatpush1.msra.mxu0 %v1406
    %1436 = vmatprep.subr.mxu0 0.0
    %1437 = vmatpush1.msra.mxu0 %v1407
    %1438 = vmatprep.subr.mxu0 0.0
    %1439 = vmatpush1.msra.mxu0 %v1408
    %1440 = vmatprep.subr.mxu0 0.0
    %1441 = vmatpush1.msra.mxu0 %v1409
    %1442 = vmatprep.subr.mxu0 0.0
    %1443 = vmatpush1.msra.mxu0 0.0
    %1444 = vmatprep.subr.mxu0 0.0
    %1445 = vmatpush1.msra.mxu0 0.0
    %1446 = vmatprep.subr.mxu0 0.0
    %1447 = vmatpush1.msra.mxu0 0.0
    %1448 = vmatprep.subr.mxu0 0.0
    %1449 = vmatpush1.msra.mxu0 0.0
    %1450 = vmatprep.subr.mxu0 0.0
    %1451 = vmatpush1.msra.mxu0 0.0
    %1452 = vmatprep.subr.mxu0 0.0
    %1453 = vmatpush1.msra.mxu0 0.0
    %1454 = vmatprep.subr.mxu0 0.0
    %1455 = vmatpush1.msra.mxu0 0.0
    %1456 = vmatprep.subr.mxu0 0.0
    %1457 = vmatpush1.msra.mxu0 0.0
    %1458 = vmatprep.subr.mxu0 0.0
    %1459 = vmatpush1.msra.mxu0 0.0
    %1460 = vmatprep.subr.mxu0 0.0
    %1461 = vmatpush1.msra.mxu0 0.0
    %1462 = vmatprep.subr.mxu0 0.0
    %1463 = vmatpush1.msra.mxu0 0.0
    %1464 = vmatprep.subr.mxu0 0.0
    %1465 = vmatpush1.msra.mxu0 0.0
    %1466 = vmatprep.subr.mxu0 0.0
    %1467 = vmatpush1.msra.mxu0 0.0
    %1468 = vmatprep.subr.mxu0 0.0
    %1469 = vmatpush1.msra.mxu0 0.0
    %1470 = vmatprep.subr.mxu0 0.0
    %1471 = vmatpush1.msra.mxu0 0.0
    %1472 = vmatprep.subr.mxu0 0.0
    %1473 = vmatpush1.msra.mxu0 0.0
    %1474 = vmatprep.mubr.f32.mxu0 0.0
    %1475 = vmatmul.mubr.f32.gmra.mrb[0].mxu0 %v263
    %v1476 = vpop.f32.mrb[0].mxu0
    %v1477 = vadd.f32 0.0, %v1476
    %v1478 = vpop.f32.mrb[0].mxu0
    %1479 = vmatprep.mubr.f32.mxu0 0.0
    %1480 = vmatmul.mubr.f32.gmra.mrb[0].mxu0 %v264
    %v1481 = vpop.f32.mrb[0].mxu0
    %v1482 = vadd.f32 0.0, %v1481
    %v1483 = vpop.f32.mrb[0].mxu0
    %1484 = vmatprep.mubr.f32.mxu0 0.0
    %1485 = vmatmul.mubr.f32.gmra.mrb[0].mxu0 %v265
    %v1486 = vpop.f32.mrb[0].mxu0
    %v1487 = vadd.f32 0.0, %v1486
    %v1488 = vpop.f32.mrb[0].mxu0
    %1489 = vmatprep.mubr.f32.mxu0 0.0
    %1490 = vmatmul.mubr.f32.gmra.mrb[0].mxu0 %v266
    %v1491 = vpop.f32.mrb[0].mxu0
    %v1492 = vadd.f32 0.0, %v1491
    %v1493 = vpop.f32.mrb[0].mxu0
    %1494 = vdwg.mxu0
    %v1495 = vld [vmem:[%s14] sm:$0x1]
    %v1497 = vlaneseq
    %v1498 = vshrl.u32 %v1497, 7
    %v1499 = vsub.s32 0, %v1498
    %v1500 = vrot.slane %v1495, %v1499
    %1502 = vmatprep.subr.mxu0 0.0
    %1503 = vmatpush1.msra.mxu0 %v267
    %1504 = vmatprep.subr.mxu0 0.0
    %1505 = vmatpush1.msra.mxu0 %v268
    %1506 = vmatprep.subr.mxu0 0.0
    %1507 = vmatpush1.msra.mxu0 %v269
    %1508 = vmatprep.subr.mxu0 0.0
    %1509 = vmatpush1.msra.mxu0 %v270
    %1510 = vmatprep.subr.mxu0 0.0
    %1511 = vmatpush1.msra.mxu0 %v271
    %1512 = vmatprep.subr.mxu0 0.0
    %1513 = vmatpush1.msra.mxu0 %v272
    %1514 = vmatprep.subr.mxu0 0.0
    %1515 = vmatpush1.msra.mxu0 %v273
    %1516 = vmatprep.subr.mxu0 0.0
    %1517 = vmatpush1.msra.mxu0 %v274
    %1518 = vmatprep.subr.mxu0 0.0
    %1519 = vmatpush1.msra.mxu0 %v275
    %1520 = vmatprep.subr.mxu0 0.0
    %1521 = vmatpush1.msra.mxu0 %v276
    %1522 = vmatprep.subr.mxu0 0.0
    %1523 = vmatpush1.msra.mxu0 %v277
    %1524 = vmatprep.subr.mxu0 0.0
    %1525 = vmatpush1.msra.mxu0 %v278
    %1526 = vmatprep.subr.mxu0 0.0
    %1527 = vmatpush1.msra.mxu0 %v279
    %1528 = vmatprep.subr.mxu0 0.0
    %1529 = vmatpush1.msra.mxu0 %v280
    %1530 = vmatprep.subr.mxu0 0.0
    %1531 = vmatpush1.msra.mxu0 %v281
    %1532 = vmatprep.subr.mxu0 0.0
    %1533 = vmatpush1.msra.mxu0 %v282
    %1534 = vmatprep.subr.mxu0 0.0
    %1535 = vmatpush1.msra.mxu0 0.0
    %1536 = vmatprep.subr.mxu0 0.0
    %1537 = vmatpush1.msra.mxu0 0.0
    %1538 = vmatprep.subr.mxu0 0.0
    %1539 = vmatpush1.msra.mxu0 0.0
    %1540 = vmatprep.subr.mxu0 0.0
    %1541 = vmatpush1.msra.mxu0 0.0
    %1542 = vmatprep.subr.mxu0 0.0
    %1543 = vmatpush1.msra.mxu0 0.0
    %1544 = vmatprep.subr.mxu0 0.0
    %1545 = vmatpush1.msra.mxu0 0.0
    %1546 = vmatprep.subr.mxu0 0.0
    %1547 = vmatpush1.msra.mxu0 0.0
    %1548 = vmatprep.subr.mxu0 0.0
    %1549 = vmatpush1.msra.mxu0 0.0
    %1550 = vmatprep.subr.mxu0 0.0
    %1551 = vmatpush1.msra.mxu0 0.0
    %1552 = vmatprep.subr.mxu0 0.0
    %1553 = vmatpush1.msra.mxu0 0.0
    %1554 = vmatprep.subr.mxu0 0.0
    %1555 = vmatpush1.msra.mxu0 0.0
    %1556 = vmatprep.subr.mxu0 0.0
    %1557 = vmatpush1.msra.mxu0 0.0
    %1558 = vmatprep.subr.mxu0 0.0
    %1559 = vmatpush1.msra.mxu0 0.0
    %1560 = vmatprep.subr.mxu0 0.0
    %1561 = vmatpush1.msra.mxu0 0.0
    %1562 = vmatprep.subr.mxu0 0.0
    %1563 = vmatpush1.msra.mxu0 0.0
    %1564 = vmatprep.subr.mxu0 0.0
    %1565 = vmatpush1.msra.mxu0 0.0
    %1566 = vmatprep.mubr.f32.mxu0 0.0
    %1567 = vmatmul.mubr.f32.gmra.mrb[0].mxu0 %v1477
    %v1568 = vpop.f32.mrb[0].mxu0
    %v1569 = vadd.f32 %v1500, %v1568
    %v1570 = vpop.f32.mrb[0].mxu0
    %1571 = vmatprep.mubr.f32.mxu0 0.0
    %1572 = vmatmul.mubr.f32.gmra.mrb[0].mxu0 %v1482
    %v1573 = vpop.f32.mrb[0].mxu0
    %v1574 = vadd.f32 %v1500, %v1573
    %v1575 = vpop.f32.mrb[0].mxu0
    %1576 = vmatprep.mubr.f32.mxu0 0.0
    %1577 = vmatmul.mubr.f32.gmra.mrb[0].mxu0 %v1487
    %v1578 = vpop.f32.mrb[0].mxu0
    %v1579 = vadd.f32 %v1500, %v1578
    %v1580 = vpop.f32.mrb[0].mxu0
    %1581 = vmatprep.mubr.f32.mxu0 0.0
    %1582 = vmatmul.mubr.f32.gmra.mrb[0].mxu0 %v1492
    %v1583 = vpop.f32.mrb[0].mxu0
    %v1584 = vadd.f32 %v1500, %v1583
    %v1585 = vpop.f32.mrb[0].mxu0
    %1586 = vdwg.mxu0
    %v1587 = vadd.f32 %v195, %v1569
    %v1588 = vadd.f32 %v196, %v1574
    %v1589 = vadd.f32 %v197, %v1579
    %v1590 = vadd.f32 %v198, %v1584
    %v1591 = vld [vmem:[%s19] sm:$0x1]
    %v1592 = vld [vmem:[%s20] sm:$0x1]
    %v1593 = vsel %vm325, %v1587, 0.0
    %1594 = vadd.xlane.f32.xlu0 %v1593
    %v1595 = vpop.xlane.xlu0 %1594
    %v1596 = vsel %vm325, %v1588, 0.0
    %1597 = vadd.xlane.f32.xlu0 %v1596
    %v1598 = vpop.xlane.xlu0 %1597
    %v1599 = vsel %vm325, %v1589, 0.0
    %1600 = vadd.xlane.f32.xlu0 %v1599
    %v1601 = vpop.xlane.xlu0 %1600
    %v1602 = vsel %vm325, %v1590, 0.0
    %1603 = vadd.xlane.f32.xlu0 %v1602
    %v1604 = vpop.xlane.xlu0 %1603
    %v1605 = vrcp.pop 32.0
    %v1606 = vmul.f32 %v1595, %v1605
    %v1607 = vmul.f32 %v1598, %v1605
    %v1608 = vmul.f32 %v1601, %v1605
    %v1609 = vmul.f32 %v1604, %v1605
    %v1610 = vsub.f32 %v1587, %v1606
    %v1611 = vsub.f32 %v1588, %v1607
    %v1612 = vsub.f32 %v1589, %v1608
    %v1613 = vsub.f32 %v1590, %v1609
    %v1614 = vmul.f32 %v1610, %v1610
    %v1615 = vmul.f32 %v1611, %v1611
    %v1616 = vmul.f32 %v1612, %v1612
    %v1617 = vmul.f32 %v1613, %v1613
    %v1618 = vsel %vm325, %v1614, 0.0
    %1619 = vadd.xlane.f32.xlu0 %v1618
    %v1620 = vpop.xlane.xlu0 %1619
    %v1621 = vsel %vm325, %v1615, 0.0
    %1622 = vadd.xlane.f32.xlu0 %v1621
    %v1623 = vpop.xlane.xlu0 %1622
    %v1624 = vsel %vm325, %v1616, 0.0
    %1625 = vadd.xlane.f32.xlu0 %v1624
    %v1626 = vpop.xlane.xlu0 %1625
    %v1627 = vsel %vm325, %v1617, 0.0
    %1628 = vadd.xlane.f32.xlu0 %v1627
    %v1629 = vpop.xlane.xlu0 %1628
    %v1630 = vmul.f32 %v1620, %v1605
    %v1631 = vmul.f32 %v1623, %v1605
    %v1632 = vmul.f32 %v1626, %v1605
    %v1633 = vmul.f32 %v1629, %v1605
    %v1634 = vadd.f32 %v1630, 1e-05
    %v1635 = vadd.f32 %v1631, 1e-05
    %v1636 = vadd.f32 %v1632, 1e-05
    %v1637 = vadd.f32 %v1633, 1e-05
    %v1638 = vrsqrt.pop %v1634
    %v1639 = vrsqrt.pop %v1635
    %v1640 = vrsqrt.pop %v1636
    %v1641 = vrsqrt.pop %v1637
    %v1642 = vmul.f32 %v1610, %v1638
    %v1643 = vmul.f32 %v1611, %v1639
    %v1644 = vmul.f32 %v1612, %v1640
    %v1645 = vmul.f32 %v1613, %v1641
    %v1647 = vlaneseq
    %v1648 = vshrl.u32 %v1647, 7
    %v1649 = vsub.s32 0, %v1648
    %v1650 = vrot.slane %v1591, %v1649
    %v1652 = vmul.f32 %v1642, %v1650
    %v1653 = vmul.f32 %v1643, %v1650
    %v1654 = vmul.f32 %v1644, %v1650
    %v1655 = vmul.f32 %v1645, %v1650
    %v1657 = vlaneseq
    %v1658 = vshrl.u32 %v1657, 7
    %v1659 = vsub.s32 0, %v1658
    %v1660 = vrot.slane %v1592, %v1659
    %v1662 = vadd.f32 %v1652, %v1660
    %v1663 = vadd.f32 %v1653, %v1660
    %v1664 = vadd.f32 %v1654, %v1660
    %v1665 = vadd.f32 %v1655, %v1660
    %v1666 = vpack.c.bf16 %v1663, %v1662
    %v1667 = vpack.c.bf16 %v1665, %v1664
    %v1668 = vld [vmem:[%s15] sm:$0xf]
    %v1669 = vld [vmem:[%s15 + $0x4] sm:$0xf]
    %v1670 = vld [vmem:[%s15 + $0x8] sm:$0xf]
    %v1671 = vld [vmem:[%s15 + $0xc] sm:$0xf]
    %v1672 = vld [vmem:[%s16] sm:$0x1]
    %v1674 = vlaneseq
    %v1675 = vshrl.u32 %v1674, 7
    %v1676 = vsub.s32 0, %v1675
    %v1677 = vrot.slane %v1672, %v1676
    %v1683 = vunpack.c.l.b16 %v1668
    %v1684 = vunpack.c.l.b16 %v1669
    %v1685 = vunpack.c.l.b16 %v1670
    %v1686 = vunpack.c.l.b16 %v1671
    %v1687 = vpack.c.b16 %v1684, %v1683
    %v1688 = vpack.c.b16 %v1686, %v1685
    %v1692 = vsel %vm325, %v1666, 0
    %v1695 = vsel %vm325, %v1667, 0
    %1697 = vmatprep.subr.bf16.mxu0 0
    %1698 = vmatpush1.bf16.msra.mxu0 %v1687
    %1699 = vmatprep.subr.bf16.mxu0 0
    %1700 = vmatpush1.bf16.msra.mxu0 %v1688
    %1701 = vmatprep.subr.bf16.mxu0 0
    %1702 = vmatpush1.bf16.msra.mxu0 0
    %1703 = vmatprep.subr.bf16.mxu0 0
    %1704 = vmatpush1.bf16.msra.mxu0 0
    %1705 = vmatprep.subr.bf16.mxu0 0
    %1706 = vmatpush1.bf16.msra.mxu0 0
    %1707 = vmatprep.subr.bf16.mxu0 0
    %1708 = vmatpush1.bf16.msra.mxu0 0
    %1709 = vmatprep.subr.bf16.mxu0 0
    %1710 = vmatpush1.bf16.msra.mxu0 0
    %1711 = vmatprep.subr.bf16.mxu0 0
    %1712 = vmatpush1.bf16.msra.mxu0 0
    %1713 = vmatprep.subr.bf16.mxu0 0
    %1714 = vmatpush1.bf16.msra.mxu0 0
    %1715 = vmatprep.subr.bf16.mxu0 0
    %1716 = vmatpush1.bf16.msra.mxu0 0
    %1717 = vmatprep.subr.bf16.mxu0 0
    %1718 = vmatpush1.bf16.msra.mxu0 0
    %1719 = vmatprep.subr.bf16.mxu0 0
    %1720 = vmatpush1.bf16.msra.mxu0 0
    %1721 = vmatprep.subr.bf16.mxu0 0
    %1722 = vmatpush1.bf16.msra.mxu0 0
    %1723 = vmatprep.subr.bf16.mxu0 0
    %1724 = vmatpush1.bf16.msra.mxu0 0
    %1725 = vmatprep.subr.bf16.mxu0 0
    %1726 = vmatpush1.bf16.msra.mxu0 0
    %1727 = vmatprep.subr.bf16.mxu0 0
    %1728 = vmatpush1.bf16.msra.mxu0 0
    %1729 = vmatprep.mubr.bf16.mxu0 0
    %1730 = vmatmul.mubr.bf16.gmra.mrb[0].mxu0 %v1692
    %v1731 = vpop.f32.mrb[0].mxu0
    %v1732 = vadd.f32 %v1677, %v1731
    %v1733 = vpop.f32.mrb[0].mxu0
    %v1734 = vpop.f32.mrb[0].mxu0
    %v1735 = vadd.f32 %v1677, %v1734
    %v1736 = vpop.f32.mrb[0].mxu0
    %1737 = vmatprep.mubr.bf16.mxu0 0
    %1738 = vmatmul.mubr.bf16.gmra.mrb[0].mxu0 %v1695
    %v1739 = vpop.f32.mrb[0].mxu0
    %v1740 = vadd.f32 %v1677, %v1739
    %v1741 = vpop.f32.mrb[0].mxu0
    %v1742 = vpop.f32.mrb[0].mxu0
    %v1743 = vadd.f32 %v1677, %v1742
    %v1744 = vpop.f32.mrb[0].mxu0
    %1745 = vdwg.mxu0
    %v1746 = vmax.f32 %v1732, 0.0
    %v1747 = vmax.f32 %v1735, 0.0
    %v1748 = vmax.f32 %v1740, 0.0
    %v1749 = vmax.f32 %v1743, 0.0
    %v1750 = vpack.c.bf16 %v1747, %v1746
    %v1751 = vpack.c.bf16 %v1749, %v1748
    %v1752 = vld [vmem:[%s17] sm:$0xf]
    %v1753 = vld [vmem:[%s17 + $0x4] sm:$0xf]
    %v1754 = vld [vmem:[%s17 + $0x8] sm:$0xf]
    %v1755 = vld [vmem:[%s17 + $0xc] sm:$0xf]
    %v1756 = vld [vmem:[%s17 + $0x10] sm:$0xf]
    %v1757 = vld [vmem:[%s17 + $0x14] sm:$0xf]
    %v1758 = vld [vmem:[%s17 + $0x18] sm:$0xf]
    %v1759 = vld [vmem:[%s17 + $0x1c] sm:$0xf]
    %v1760 = vld [vmem:[%s18] sm:$0x1]
    %v1762 = vlaneseq
    %v1763 = vshrl.u32 %v1762, 7
    %v1764 = vsub.s32 0, %v1763
    %v1765 = vrot.slane %v1760, %v1764
    %v1775 = vunpack.c.l.b16 %v1752
    %v1776 = vunpack.c.l.b16 %v1753
    %v1777 = vunpack.c.l.b16 %v1754
    %v1778 = vunpack.c.l.b16 %v1755
    %v1779 = vunpack.c.l.b16 %v1756
    %v1780 = vunpack.c.l.b16 %v1757
    %v1781 = vunpack.c.l.b16 %v1758
    %v1782 = vunpack.c.l.b16 %v1759
    %v1783 = vpack.c.b16 %v1776, %v1775
    %v1784 = vpack.c.b16 %v1778, %v1777
    %v1785 = vpack.c.b16 %v1780, %v1779
    %v1786 = vpack.c.b16 %v1782, %v1781
    %v1792 = vsel %vm135, %v1750, 0
    %v1795 = vsel %vm135, %v1751, 0
    %1797 = vmatprep.subr.bf16.mxu0 0
    %1798 = vmatpush1.bf16.msra.mxu0 %v1783
    %1799 = vmatprep.subr.bf16.mxu0 0
    %1800 = vmatpush1.bf16.msra.mxu0 %v1784
    %1801 = vmatprep.subr.bf16.mxu0 0
    %1802 = vmatpush1.bf16.msra.mxu0 %v1785
    %1803 = vmatprep.subr.bf16.mxu0 0
    %1804 = vmatpush1.bf16.msra.mxu0 %v1786
    %1805 = vmatprep.subr.bf16.mxu0 0
    %1806 = vmatpush1.bf16.msra.mxu0 0
    %1807 = vmatprep.subr.bf16.mxu0 0
    %1808 = vmatpush1.bf16.msra.mxu0 0
    %1809 = vmatprep.subr.bf16.mxu0 0
    %1810 = vmatpush1.bf16.msra.mxu0 0
    %1811 = vmatprep.subr.bf16.mxu0 0
    %1812 = vmatpush1.bf16.msra.mxu0 0
    %1813 = vmatprep.subr.bf16.mxu0 0
    %1814 = vmatpush1.bf16.msra.mxu0 0
    %1815 = vmatprep.subr.bf16.mxu0 0
    %1816 = vmatpush1.bf16.msra.mxu0 0
    %1817 = vmatprep.subr.bf16.mxu0 0
    %1818 = vmatpush1.bf16.msra.mxu0 0
    %1819 = vmatprep.subr.bf16.mxu0 0
    %1820 = vmatpush1.bf16.msra.mxu0 0
    %1821 = vmatprep.subr.bf16.mxu0 0
    %1822 = vmatpush1.bf16.msra.mxu0 0
    %1823 = vmatprep.subr.bf16.mxu0 0
    %1824 = vmatpush1.bf16.msra.mxu0 0
    %1825 = vmatprep.subr.bf16.mxu0 0
    %1826 = vmatpush1.bf16.msra.mxu0 0
    %1827 = vmatprep.subr.bf16.mxu0 0
    %1828 = vmatpush1.bf16.msra.mxu0 0
    %1829 = vmatprep.mubr.bf16.mxu0 0
    %1830 = vmatmul.mubr.bf16.gmra.mrb[0].mxu0 %v1792
    %v1831 = vpop.f32.mrb[0].mxu0
    %v1832 = vadd.f32 %v1765, %v1831
    %v1833 = vpop.f32.mrb[0].mxu0
    %v1834 = vpop.f32.mrb[0].mxu0
    %v1835 = vadd.f32 %v1765, %v1834
    %v1836 = vpop.f32.mrb[0].mxu0
    %1837 = vmatprep.mubr.bf16.mxu0 0
    %1838 = vmatmul.mubr.bf16.gmra.mrb[0].mxu0 %v1795
    %v1839 = vpop.f32.mrb[0].mxu0
    %v1840 = vadd.f32 %v1765, %v1839
    %v1841 = vpop.f32.mrb[0].mxu0
    %v1842 = vpop.f32.mrb[0].mxu0
    %v1843 = vadd.f32 %v1765, %v1842
    %v1844 = vpop.f32.mrb[0].mxu0
    %1845 = vdwg.mxu0
    %v1846 = vadd.f32 %v1662, %v1832
    %v1847 = vadd.f32 %v1663, %v1835
    %v1848 = vadd.f32 %v1664, %v1840
    %v1849 = vadd.f32 %v1665, %v1843
    %v1850 = vld [vmem:[%s21] sm:$0x1]
    %v1851 = vld [vmem:[%s22] sm:$0x1]
    %v1852 = vsel %vm325, %v1846, 0.0
    %1853 = vadd.xlane.f32.xlu0 %v1852
    %v1854 = vpop.xlane.xlu0 %1853
    %v1855 = vsel %vm325, %v1847, 0.0
    %1856 = vadd.xlane.f32.xlu0 %v1855
    %v1857 = vpop.xlane.xlu0 %1856
    %v1858 = vsel %vm325, %v1848, 0.0
    %1859 = vadd.xlane.f32.xlu0 %v1858
    %v1860 = vpop.xlane.xlu0 %1859
    %v1861 = vsel %vm325, %v1849, 0.0
    %1862 = vadd.xlane.f32.xlu0 %v1861
    %v1863 = vpop.xlane.xlu0 %1862
    %v1864 = vmul.f32 %v1854, %v1605
    %v1865 = vmul.f32 %v1857, %v1605
    %v1866 = vmul.f32 %v1860, %v1605
    %v1867 = vmul.f32 %v1863, %v1605
    %v1868 = vsub.f32 %v1846, %v1864
    %v1869 = vsub.f32 %v1847, %v1865
    %v1870 = vsub.f32 %v1848, %v1866
    %v1871 = vsub.f32 %v1849, %v1867
    %v1872 = vmul.f32 %v1868, %v1868
    %v1873 = vmul.f32 %v1869, %v1869
    %v1874 = vmul.f32 %v1870, %v1870
    %v1875 = vmul.f32 %v1871, %v1871
    %v1876 = vsel %vm325, %v1872, 0.0
    %1877 = vadd.xlane.f32.xlu0 %v1876
    %v1878 = vpop.xlane.xlu0 %1877
    %v1879 = vsel %vm325, %v1873, 0.0
    %1880 = vadd.xlane.f32.xlu0 %v1879
    %v1881 = vpop.xlane.xlu0 %1880
    %v1882 = vsel %vm325, %v1874, 0.0
    %1883 = vadd.xlane.f32.xlu0 %v1882
    %v1884 = vpop.xlane.xlu0 %1883
    %v1885 = vsel %vm325, %v1875, 0.0
    %1886 = vadd.xlane.f32.xlu0 %v1885
    %v1887 = vpop.xlane.xlu0 %1886
    %v1888 = vmul.f32 %v1878, %v1605
    %v1889 = vmul.f32 %v1881, %v1605
    %v1890 = vmul.f32 %v1884, %v1605
    %v1891 = vmul.f32 %v1887, %v1605
    %v1892 = vadd.f32 %v1888, 1e-05
    %v1893 = vadd.f32 %v1889, 1e-05
    %v1894 = vadd.f32 %v1890, 1e-05
    %v1895 = vadd.f32 %v1891, 1e-05
    %v1896 = vrsqrt.pop %v1892
    %v1897 = vrsqrt.pop %v1893
    %v1898 = vrsqrt.pop %v1894
    %v1899 = vrsqrt.pop %v1895
    %v1900 = vmul.f32 %v1868, %v1896
    %v1901 = vmul.f32 %v1869, %v1897
    %v1902 = vmul.f32 %v1870, %v1898
    %v1903 = vmul.f32 %v1871, %v1899
    %v1905 = vlaneseq
    %v1906 = vshrl.u32 %v1905, 7
    %v1907 = vsub.s32 0, %v1906
    %v1908 = vrot.slane %v1850, %v1907
    %v1910 = vmul.f32 %v1900, %v1908
    %v1911 = vmul.f32 %v1901, %v1908
    %v1912 = vmul.f32 %v1902, %v1908
    %v1913 = vmul.f32 %v1903, %v1908
    %v1915 = vlaneseq
    %v1916 = vshrl.u32 %v1915, 7
    %v1917 = vsub.s32 0, %v1916
    %v1918 = vrot.slane %v1851, %v1917
    %v1920 = vadd.f32 %v1910, %v1918
    %v1921 = vadd.f32 %v1911, %v1918
    %v1922 = vadd.f32 %v1912, %v1918
    %v1923 = vadd.f32 %v1913, %v1918
    %v1924 = vpack.c.bf16 %v1921, %v1920
    %v1925 = vpack.c.bf16 %v1923, %v1922
    %1926 = vmatprep.subr.bf16.mxu0 0
    %1927 = vmatpush1.bf16.msra.mxu0 %v1924
    %1928 = vmatprep.subr.bf16.mxu0 0
    %1929 = vmatpush1.bf16.msra.mxu0 %v1925
    %1930 = vmatprep.subr.bf16.mxu0 0
    %1931 = vmatpush1.bf16.msra.mxu0 0
    %1932 = vmatprep.subr.bf16.mxu0 0
    %1933 = vmatpush1.bf16.msra.mxu0 0
    %1934 = vmatprep.subr.bf16.mxu0 0
    %1935 = vmatpush1.bf16.msra.mxu0 0
    %1936 = vmatprep.subr.bf16.mxu0 0
    %1937 = vmatpush1.bf16.msra.mxu0 0
    %1938 = vmatprep.subr.bf16.mxu0 0
    %1939 = vmatpush1.bf16.msra.mxu0 0
    %1940 = vmatprep.subr.bf16.mxu0 0
    %1941 = vmatpush1.bf16.msra.mxu0 0
    %1942 = vmatprep.subr.bf16.mxu0 0
    %1943 = vmatpush1.bf16.msra.mxu0 0
    %1944 = vmatprep.subr.bf16.mxu0 0
    %1945 = vmatpush1.bf16.msra.mxu0 0
    %1946 = vmatprep.subr.bf16.mxu0 0
    %1947 = vmatpush1.bf16.msra.mxu0 0
    %1948 = vmatprep.subr.bf16.mxu0 0
    %1949 = vmatpush1.bf16.msra.mxu0 0
    %1950 = vmatprep.subr.bf16.mxu0 0
    %1951 = vmatpush1.bf16.msra.mxu0 0
    %1952 = vmatprep.subr.bf16.mxu0 0
    %1953 = vmatpush1.bf16.msra.mxu0 0
    %1954 = vmatprep.subr.bf16.mxu0 0
    %1955 = vmatpush1.bf16.msra.mxu0 0
    %1956 = vmatprep.subr.bf16.mxu0 0
    %1957 = vmatpush1.bf16.msra.mxu0 0
    %1958 = vmatprep.mubr.bf16.mxu0 0
    %1959 = vmatmul.mubr.bf16.gmra.mrb[0].mxu0 %v327
    %v1960 = vpop.f32.mrb[0].mxu0
    %v1961 = vadd.f32 0.0, %v1960
    %v1962 = vpop.f32.mrb[0].mxu0
    %v1963 = vpop.f32.mrb[0].mxu0
    %v1964 = vadd.f32 0.0, %v1963
    %v1965 = vpop.f32.mrb[0].mxu0
    %1966 = vmatprep.mubr.bf16.mxu0 0
    %1967 = vmatmul.mubr.bf16.gmra.mrb[0].mxu0 %v330
    %v1968 = vpop.f32.mrb[0].mxu0
    %v1969 = vadd.f32 0.0, %v1968
    %v1970 = vpop.f32.mrb[0].mxu0
    %v1971 = vpop.f32.mrb[0].mxu0
    %v1972 = vadd.f32 0.0, %v1971
    %v1973 = vpop.f32.mrb[0].mxu0
    %1974 = vmatprep.mubr.bf16.mxu0 0
    %1975 = vmatmul.mubr.bf16.gmra.mrb[0].mxu0 %v333
    %v1976 = vpop.f32.mrb[0].mxu0
    %v1977 = vadd.f32 0.0, %v1976
    %v1978 = vpop.f32.mrb[0].mxu0
    %v1979 = vpop.f32.mrb[0].mxu0
    %v1980 = vadd.f32 0.0, %v1979
    %v1981 = vpop.f32.mrb[0].mxu0
    %1982 = vmatprep.mubr.bf16.mxu0 0
    %1983 = vmatmul.mubr.bf16.gmra.mrb[0].mxu0 %v336
    %v1984 = vpop.f32.mrb[0].mxu0
    %v1985 = vadd.f32 0.0, %v1984
    %v1986 = vpop.f32.mrb[0].mxu0
    %v1987 = vpop.f32.mrb[0].mxu0
    %v1988 = vadd.f32 0.0, %v1987
    %v1989 = vpop.f32.mrb[0].mxu0
    %1990 = vmatprep.mubr.bf16.mxu0 0
    %1991 = vmatmul.mubr.bf16.gmra.mrb[0].mxu0 %v339
    %v1992 = vpop.f32.mrb[0].mxu0
    %v1993 = vadd.f32 0.0, %v1992
    %v1994 = vpop.f32.mrb[0].mxu0
    %v1995 = vpop.f32.mrb[0].mxu0
    %v1996 = vadd.f32 0.0, %v1995
    %v1997 = vpop.f32.mrb[0].mxu0
    %1998 = vmatprep.mubr.bf16.mxu0 0
    %1999 = vmatmul.mubr.bf16.gmra.mrb[0].mxu0 %v342
    %v2000 = vpop.f32.mrb[0].mxu0
    %v2001 = vadd.f32 0.0, %v2000
    %v2002 = vpop.f32.mrb[0].mxu0
    %v2003 = vpop.f32.mrb[0].mxu0
    %v2004 = vadd.f32 0.0, %v2003
    %v2005 = vpop.f32.mrb[0].mxu0
    %2006 = vmatprep.mubr.bf16.mxu0 0
    %2007 = vmatmul.mubr.bf16.gmra.mrb[0].mxu0 %v345
    %v2008 = vpop.f32.mrb[0].mxu0
    %v2009 = vadd.f32 0.0, %v2008
    %v2010 = vpop.f32.mrb[0].mxu0
    %v2011 = vpop.f32.mrb[0].mxu0
    %v2012 = vadd.f32 0.0, %v2011
    %v2013 = vpop.f32.mrb[0].mxu0
    %2014 = vmatprep.mubr.bf16.mxu0 0
    %2015 = vmatmul.mubr.bf16.gmra.mrb[0].mxu0 %v348
    %v2016 = vpop.f32.mrb[0].mxu0
    %v2017 = vadd.f32 0.0, %v2016
    %v2018 = vpop.f32.mrb[0].mxu0
    %v2019 = vpop.f32.mrb[0].mxu0
    %v2020 = vadd.f32 0.0, %v2019
    %v2021 = vpop.f32.mrb[0].mxu0
    %2022 = vdwg.mxu0
    %v2023 = vpack.c.bf16 %v1964, %v1961
    %v2024 = vpack.c.bf16 %v1972, %v1969
    %v2025 = vpack.c.bf16 %v1980, %v1977
    %v2026 = vpack.c.bf16 %v1988, %v1985
    %v2027 = vpack.c.bf16 %v1996, %v1993
    %v2028 = vpack.c.bf16 %v2004, %v2001
    %v2029 = vpack.c.bf16 %v2012, %v2009
    %v2030 = vpack.c.bf16 %v2020, %v2017
    %s2031 = scalar_lea.vmem %s11, 16
    %v2032 = vld [vmem:[%s2031] sm:$0xf]
    %v2033 = vld [vmem:[%s2031 + $0x4] sm:$0xf]
    %v2034 = vld [vmem:[%s2031 + $0x8] sm:$0xf]
    %v2035 = vld [vmem:[%s2031 + $0xc] sm:$0xf]
    %s2036 = scalar_lea.vmem %s12, 1
    %v2037 = vld [vmem:[%s2036] sm:$0x1]
    %v2039 = vlaneseq
    %v2040 = vshrl.u32 %v2039, 7
    %v2041 = vsub.s32 0, %v2040
    %v2042 = vrot.slane %v2037, %v2041
    %v2048 = vunpack.c.l.b16 %v2032
    %v2049 = vunpack.c.l.b16 %v2033
    %v2050 = vunpack.c.l.b16 %v2034
    %v2051 = vunpack.c.l.b16 %v2035
    %v2052 = vpack.c.b16 %v2049, %v2048
    %v2053 = vpack.c.b16 %v2051, %v2050
    %v2057 = vsel %vm325, %v2023, 0
    %v2060 = vsel %vm325, %v2024, 0
    %v2063 = vsel %vm325, %v2025, 0
    %v2066 = vsel %vm325, %v2026, 0
    %v2069 = vsel %vm325, %v2027, 0
    %v2072 = vsel %vm325, %v2028, 0
    %v2075 = vsel %vm325, %v2029, 0
    %v2078 = vsel %vm325, %v2030, 0
    %2080 = vmatprep.subr.bf16.mxu0 0
    %2081 = vmatpush1.bf16.msra.mxu0 %v2052
    %2082 = vmatprep.subr.bf16.mxu0 0
    %2083 = vmatpush1.bf16.msra.mxu0 %v2053
    %2084 = vmatprep.subr.bf16.mxu0 0
    %2085 = vmatpush1.bf16.msra.mxu0 0
    %2086 = vmatprep.subr.bf16.mxu0 0
    %2087 = vmatpush1.bf16.msra.mxu0 0
    %2088 = vmatprep.subr.bf16.mxu0 0
    %2089 = vmatpush1.bf16.msra.mxu0 0
    %2090 = vmatprep.subr.bf16.mxu0 0
    %2091 = vmatpush1.bf16.msra.mxu0 0
    %2092 = vmatprep.subr.bf16.mxu0 0
    %2093 = vmatpush1.bf16.msra.mxu0 0
    %2094 = vmatprep.subr.bf16.mxu0 0
    %2095 = vmatpush1.bf16.msra.mxu0 0
    %2096 = vmatprep.subr.bf16.mxu0 0
    %2097 = vmatpush1.bf16.msra.mxu0 0
    %2098 = vmatprep.subr.bf16.mxu0 0
    %2099 = vmatpush1.bf16.msra.mxu0 0
    %2100 = vmatprep.subr.bf16.mxu0 0
    %2101 = vmatpush1.bf16.msra.mxu0 0
    %2102 = vmatprep.subr.bf16.mxu0 0
    %2103 = vmatpush1.bf16.msra.mxu0 0
    %2104 = vmatprep.subr.bf16.mxu0 0
    %2105 = vmatpush1.bf16.msra.mxu0 0
    %2106 = vmatprep.subr.bf16.mxu0 0
    %2107 = vmatpush1.bf16.msra.mxu0 0
    %2108 = vmatprep.subr.bf16.mxu0 0
    %2109 = vmatpush1.bf16.msra.mxu0 0
    %2110 = vmatprep.subr.bf16.mxu0 0
    %2111 = vmatpush1.bf16.msra.mxu0 0
    %2112 = vmatprep.mubr.bf16.mxu0 0
    %2113 = vmatmul.mubr.bf16.gmra.mrb[0].mxu0 %v2057
    %v2114 = vpop.f32.mrb[0].mxu0
    %v2115 = vadd.f32 %v2042, %v2114
    %v2116 = vpop.f32.mrb[0].mxu0
    %v2117 = vpop.f32.mrb[0].mxu0
    %v2118 = vadd.f32 %v2042, %v2117
    %v2119 = vpop.f32.mrb[0].mxu0
    %2120 = vmatprep.mubr.bf16.mxu0 0
    %2121 = vmatmul.mubr.bf16.gmra.mrb[0].mxu0 %v2060
    %v2122 = vpop.f32.mrb[0].mxu0
    %v2123 = vadd.f32 %v2042, %v2122
    %v2124 = vpop.f32.mrb[0].mxu0
    %v2125 = vpop.f32.mrb[0].mxu0
    %v2126 = vadd.f32 %v2042, %v2125
    %v2127 = vpop.f32.mrb[0].mxu0
    %2128 = vmatprep.mubr.bf16.mxu0 0
    %2129 = vmatmul.mubr.bf16.gmra.mrb[0].mxu0 %v2063
    %v2130 = vpop.f32.mrb[0].mxu0
    %v2131 = vadd.f32 %v2042, %v2130
    %v2132 = vpop.f32.mrb[0].mxu0
    %v2133 = vpop.f32.mrb[0].mxu0
    %v2134 = vadd.f32 %v2042, %v2133
    %v2135 = vpop.f32.mrb[0].mxu0
    %2136 = vmatprep.mubr.bf16.mxu0 0
    %2137 = vmatmul.mubr.bf16.gmra.mrb[0].mxu0 %v2066
    %v2138 = vpop.f32.mrb[0].mxu0
    %v2139 = vadd.f32 %v2042, %v2138
    %v2140 = vpop.f32.mrb[0].mxu0
    %v2141 = vpop.f32.mrb[0].mxu0
    %v2142 = vadd.f32 %v2042, %v2141
    %v2143 = vpop.f32.mrb[0].mxu0
    %2144 = vmatprep.mubr.bf16.mxu0 0
    %2145 = vmatmul.mubr.bf16.gmra.mrb[0].mxu0 %v2069
    %v2146 = vpop.f32.mrb[0].mxu0
    %v2147 = vadd.f32 %v2042, %v2146
    %v2148 = vpop.f32.mrb[0].mxu0
    %v2149 = vpop.f32.mrb[0].mxu0
    %v2150 = vadd.f32 %v2042, %v2149
    %v2151 = vpop.f32.mrb[0].mxu0
    %2152 = vmatprep.mubr.bf16.mxu0 0
    %2153 = vmatmul.mubr.bf16.gmra.mrb[0].mxu0 %v2072
    %v2154 = vpop.f32.mrb[0].mxu0
    %v2155 = vadd.f32 %v2042, %v2154
    %v2156 = vpop.f32.mrb[0].mxu0
    %v2157 = vpop.f32.mrb[0].mxu0
    %v2158 = vadd.f32 %v2042, %v2157
    %v2159 = vpop.f32.mrb[0].mxu0
    %2160 = vmatprep.mubr.bf16.mxu0 0
    %2161 = vmatmul.mubr.bf16.gmra.mrb[0].mxu0 %v2075
    %v2162 = vpop.f32.mrb[0].mxu0
    %v2163 = vadd.f32 %v2042, %v2162
    %v2164 = vpop.f32.mrb[0].mxu0
    %v2165 = vpop.f32.mrb[0].mxu0
    %v2166 = vadd.f32 %v2042, %v2165
    %v2167 = vpop.f32.mrb[0].mxu0
    %2168 = vmatprep.mubr.bf16.mxu0 0
    %2169 = vmatmul.mubr.bf16.gmra.mrb[0].mxu0 %v2078
    %v2170 = vpop.f32.mrb[0].mxu0
    %v2171 = vadd.f32 %v2042, %v2170
    %v2172 = vpop.f32.mrb[0].mxu0
    %v2173 = vpop.f32.mrb[0].mxu0
    %v2174 = vadd.f32 %v2042, %v2173
    %v2175 = vpop.f32.mrb[0].mxu0
    %2176 = vdwg.mxu0
    %v2177 = vpack.c.bf16 %v2118, %v2115
    %v2178 = vpack.c.bf16 %v2126, %v2123
    %v2179 = vpack.c.bf16 %v2134, %v2131
    %v2180 = vpack.c.bf16 %v2142, %v2139
    %v2181 = vpack.c.bf16 %v2150, %v2147
    %v2182 = vpack.c.bf16 %v2158, %v2155
    %v2183 = vpack.c.bf16 %v2166, %v2163
    %v2184 = vpack.c.bf16 %v2174, %v2171
    %v2185 = vmul.f32 %v2115, %v624
    %v2186 = vmul.f32 %v2118, %v626
    %v2187 = vmul.f32 %v2123, %v628
    %v2188 = vmul.f32 %v2126, %v630
    %v2189 = vmul.f32 %v2131, %v632
    %v2190 = vmul.f32 %v2134, %v634
    %v2191 = vmul.f32 %v2139, %v636
    %v2192 = vmul.f32 %v2142, %v638
    %v2193 = vmul.f32 %v2147, %v640
    %v2194 = vmul.f32 %v2150, %v642
    %v2195 = vmul.f32 %v2155, %v644
    %v2196 = vmul.f32 %v2158, %v646
    %v2197 = vmul.f32 %v2163, %v648
    %v2198 = vmul.f32 %v2166, %v650
    %v2199 = vmul.f32 %v2171, %v652
    %v2200 = vmul.f32 %v2174, %v654
    %v2201 = vpack.c.bf16 %v2186, %v2185
    %v2202 = vpack.c.bf16 %v2188, %v2187
    %v2203 = vpack.c.bf16 %v2190, %v2189
    %v2204 = vpack.c.bf16 %v2192, %v2191
    %v2205 = vpack.c.bf16 %v2194, %v2193
    %v2206 = vpack.c.bf16 %v2196, %v2195
    %v2207 = vpack.c.bf16 %v2198, %v2197
    %v2208 = vpack.c.bf16 %v2200, %v2199
    %v2209 = vmul.f32 %v2115, %v696
    %v2210 = vmul.f32 %v2118, %v698
    %v2211 = vmul.f32 %v2123, %v700
    %v2212 = vmul.f32 %v2126, %v702
    %v2213 = vmul.f32 %v2131, %v704
    %v2214 = vmul.f32 %v2134, %v706
    %v2215 = vmul.f32 %v2139, %v708
    %v2216 = vmul.f32 %v2142, %v710
    %v2217 = vmul.f32 %v2147, %v712
    %v2218 = vmul.f32 %v2150, %v714
    %v2219 = vmul.f32 %v2155, %v716
    %v2220 = vmul.f32 %v2158, %v718
    %v2221 = vmul.f32 %v2163, %v720
    %v2222 = vmul.f32 %v2166, %v722
    %v2223 = vmul.f32 %v2171, %v724
    %v2224 = vmul.f32 %v2174, %v726
    %v2225 = vpack.c.bf16 %v2210, %v2209
    %v2226 = vpack.c.bf16 %v2212, %v2211
    %v2227 = vpack.c.bf16 %v2214, %v2213
    %v2228 = vpack.c.bf16 %v2216, %v2215
    %v2229 = vpack.c.bf16 %v2218, %v2217
    %v2230 = vpack.c.bf16 %v2220, %v2219
    %v2231 = vpack.c.bf16 %v2222, %v2221
    %v2232 = vpack.c.bf16 %v2224, %v2223
    %2241 = vrot.lane.b32.xlu0 %v2201, 96
    %v2242 = vpop.permute.xlu0 %2241
    %2243 = vrot.lane.b32.xlu0 %v2202, 96
    %v2244 = vpop.permute.xlu0 %2243
    %2245 = vrot.lane.b32.xlu0 %v2203, 96
    %v2246 = vpop.permute.xlu0 %2245
    %2247 = vrot.lane.b32.xlu0 %v2204, 96
    %v2248 = vpop.permute.xlu0 %2247
    %2249 = vrot.lane.b32.xlu0 %v2205, 96
    %v2250 = vpop.permute.xlu0 %2249
    %2251 = vrot.lane.b32.xlu0 %v2206, 96
    %v2252 = vpop.permute.xlu0 %2251
    %2253 = vrot.lane.b32.xlu0 %v2207, 96
    %v2254 = vpop.permute.xlu0 %2253
    %2255 = vrot.lane.b32.xlu0 %v2208, 96
    %v2256 = vpop.permute.xlu0 %2255
    %v2258 = vsel %vm325, %v2177, 0
    %v2261 = vsel %vm325, %v2178, 0
    %v2264 = vsel %vm325, %v2179, 0
    %v2267 = vsel %vm325, %v2180, 0
    %v2270 = vsel %vm325, %v2181, 0
    %v2273 = vsel %vm325, %v2182, 0
    %v2276 = vsel %vm325, %v2183, 0
    %v2279 = vsel %vm325, %v2184, 0
    %v2282 = vsel %vm325, %v2242, 0
    %v2285 = vsel %vm325, %v2244, 0
    %v2288 = vsel %vm325, %v2246, 0
    %v2291 = vsel %vm325, %v2248, 0
    %v2294 = vsel %vm325, %v2250, 0
    %v2297 = vsel %vm325, %v2252, 0
    %v2300 = vsel %vm325, %v2254, 0
    %v2303 = vsel %vm325, %v2256, 0
    %2305 = vmatprep.subr.bf16.mxu0 0
    %2306 = vmatpush1.bf16.xpose.msra.mxu0 %v2282
    %2307 = vmatprep.subr.bf16.mxu0 0
    %2308 = vmatpush1.bf16.xpose.msra.mxu0 %v2285
    %2309 = vmatprep.subr.bf16.mxu0 0
    %2310 = vmatpush1.bf16.xpose.msra.mxu0 %v2288
    %2311 = vmatprep.subr.bf16.mxu0 0
    %2312 = vmatpush1.bf16.xpose.msra.mxu0 %v2291
    %2313 = vmatprep.subr.bf16.mxu0 0
    %2314 = vmatpush1.bf16.xpose.msra.mxu0 %v2294
    %2315 = vmatprep.subr.bf16.mxu0 0
    %2316 = vmatpush1.bf16.xpose.msra.mxu0 %v2297
    %2317 = vmatprep.subr.bf16.mxu0 0
    %2318 = vmatpush1.bf16.xpose.msra.mxu0 %v2300
    %2319 = vmatprep.subr.bf16.mxu0 0
    %2320 = vmatpush1.bf16.xpose.msra.mxu0 %v2303
    %2321 = vmatprep.subr.bf16.mxu0 0
    %2322 = vmatpush1.bf16.xpose.msra.mxu0 0
    %2323 = vmatprep.subr.bf16.mxu0 0
    %2324 = vmatpush1.bf16.xpose.msra.mxu0 0
    %2325 = vmatprep.subr.bf16.mxu0 0
    %2326 = vmatpush1.bf16.xpose.msra.mxu0 0
    %2327 = vmatprep.subr.bf16.mxu0 0
    %2328 = vmatpush1.bf16.xpose.msra.mxu0 0
    %2329 = vmatprep.subr.bf16.mxu0 0
    %2330 = vmatpush1.bf16.xpose.msra.mxu0 0
    %2331 = vmatprep.subr.bf16.mxu0 0
    %2332 = vmatpush1.bf16.xpose.msra.mxu0 0
    %2333 = vmatprep.subr.bf16.mxu0 0
    %2334 = vmatpush1.bf16.xpose.msra.mxu0 0
    %2335 = vmatprep.subr.bf16.mxu0 0
    %2336 = vmatpush1.bf16.xpose.msra.mxu0 0
    %2337 = vmatprep.mubr.bf16.mxu0 0
    %2338 = vmatmul.mubr.bf16.gmra.mrb[0].mxu0 %v2258
    %v2339 = vpop.f32.mrb[0].mxu0
    %v2340 = vadd.f32 0.0, %v2339
    %v2341 = vpop.f32.mrb[0].mxu0
    %v2342 = vpop.f32.mrb[0].mxu0
    %v2343 = vadd.f32 0.0, %v2342
    %v2344 = vpop.f32.mrb[0].mxu0
    %2345 = vmatprep.mubr.bf16.mxu0 0
    %2346 = vmatmul.mubr.bf16.gmra.mrb[0].mxu0 %v2261
    %v2347 = vpop.f32.mrb[0].mxu0
    %v2348 = vadd.f32 0.0, %v2347
    %v2349 = vpop.f32.mrb[0].mxu0
    %v2350 = vpop.f32.mrb[0].mxu0
    %v2351 = vadd.f32 0.0, %v2350
    %v2352 = vpop.f32.mrb[0].mxu0
    %2353 = vmatprep.mubr.bf16.mxu0 0
    %2354 = vmatmul.mubr.bf16.gmra.mrb[0].mxu0 %v2264
    %v2355 = vpop.f32.mrb[0].mxu0
    %v2356 = vadd.f32 0.0, %v2355
    %v2357 = vpop.f32.mrb[0].mxu0
    %v2358 = vpop.f32.mrb[0].mxu0
    %v2359 = vadd.f32 0.0, %v2358
    %v2360 = vpop.f32.mrb[0].mxu0
    %2361 = vmatprep.mubr.bf16.mxu0 0
    %2362 = vmatmul.mubr.bf16.gmra.mrb[0].mxu0 %v2267
    %v2363 = vpop.f32.mrb[0].mxu0
    %v2364 = vadd.f32 0.0, %v2363
    %v2365 = vpop.f32.mrb[0].mxu0
    %v2366 = vpop.f32.mrb[0].mxu0
    %v2367 = vadd.f32 0.0, %v2366
    %v2368 = vpop.f32.mrb[0].mxu0
    %2369 = vmatprep.mubr.bf16.mxu0 0
    %2370 = vmatmul.mubr.bf16.gmra.mrb[0].mxu0 %v2270
    %v2371 = vpop.f32.mrb[0].mxu0
    %v2372 = vadd.f32 0.0, %v2371
    %v2373 = vpop.f32.mrb[0].mxu0
    %v2374 = vpop.f32.mrb[0].mxu0
    %v2375 = vadd.f32 0.0, %v2374
    %v2376 = vpop.f32.mrb[0].mxu0
    %2377 = vmatprep.mubr.bf16.mxu0 0
    %2378 = vmatmul.mubr.bf16.gmra.mrb[0].mxu0 %v2273
    %v2379 = vpop.f32.mrb[0].mxu0
    %v2380 = vadd.f32 0.0, %v2379
    %v2381 = vpop.f32.mrb[0].mxu0
    %v2382 = vpop.f32.mrb[0].mxu0
    %v2383 = vadd.f32 0.0, %v2382
    %v2384 = vpop.f32.mrb[0].mxu0
    %2385 = vmatprep.mubr.bf16.mxu0 0
    %2386 = vmatmul.mubr.bf16.gmra.mrb[0].mxu0 %v2276
    %v2387 = vpop.f32.mrb[0].mxu0
    %v2388 = vadd.f32 0.0, %v2387
    %v2389 = vpop.f32.mrb[0].mxu0
    %v2390 = vpop.f32.mrb[0].mxu0
    %v2391 = vadd.f32 0.0, %v2390
    %v2392 = vpop.f32.mrb[0].mxu0
    %2393 = vmatprep.mubr.bf16.mxu0 0
    %2394 = vmatmul.mubr.bf16.gmra.mrb[0].mxu0 %v2279
    %v2395 = vpop.f32.mrb[0].mxu0
    %v2396 = vadd.f32 0.0, %v2395
    %v2397 = vpop.f32.mrb[0].mxu0
    %v2398 = vpop.f32.mrb[0].mxu0
    %v2399 = vadd.f32 0.0, %v2398
    %v2400 = vpop.f32.mrb[0].mxu0
    %2401 = vdwg.mxu0
    %v2402 = vmul.f32 %v2340, 0.35355338
    %v2403 = vmul.f32 %v2343, 0.35355338
    %v2404 = vmul.f32 %v2348, 0.35355338
    %v2405 = vmul.f32 %v2351, 0.35355338
    %v2406 = vmul.f32 %v2356, 0.35355338
    %v2407 = vmul.f32 %v2359, 0.35355338
    %v2408 = vmul.f32 %v2364, 0.35355338
    %v2409 = vmul.f32 %v2367, 0.35355338
    %v2410 = vmul.f32 %v2372, 0.35355338
    %v2411 = vmul.f32 %v2375, 0.35355338
    %v2412 = vmul.f32 %v2380, 0.35355338
    %v2413 = vmul.f32 %v2383, 0.35355338
    %v2414 = vmul.f32 %v2388, 0.35355338
    %v2415 = vmul.f32 %v2391, 0.35355338
    %v2416 = vmul.f32 %v2396, 0.35355338
    %v2417 = vmul.f32 %v2399, 0.35355338
    %v2418 = vadd.f32 %v2402, %v231
    %v2419 = vadd.f32 %v2403, %v232
    %v2420 = vadd.f32 %v2404, %v233
    %v2421 = vadd.f32 %v2405, %v234
    %v2422 = vadd.f32 %v2406, %v235
    %v2423 = vadd.f32 %v2407, %v236
    %v2424 = vadd.f32 %v2408, %v237
    %v2425 = vadd.f32 %v2409, %v238
    %v2426 = vadd.f32 %v2410, %v239
    %v2427 = vadd.f32 %v2411, %v240
    %v2428 = vadd.f32 %v2412, %v241
    %v2429 = vadd.f32 %v2413, %v242
    %v2430 = vadd.f32 %v2414, %v243
    %v2431 = vadd.f32 %v2415, %v244
    %v2432 = vadd.f32 %v2416, %v245
    %v2433 = vadd.f32 %v2417, %v246
    %2434 = vmax.xlane.f32.xlu0 %v2418
    %v2435 = vpop.xlane.xlu0 %2434
    %2436 = vmax.xlane.f32.xlu0 %v2419
    %v2437 = vpop.xlane.xlu0 %2436
    %2438 = vmax.xlane.f32.xlu0 %v2420
    %v2439 = vpop.xlane.xlu0 %2438
    %2440 = vmax.xlane.f32.xlu0 %v2421
    %v2441 = vpop.xlane.xlu0 %2440
    %2442 = vmax.xlane.f32.xlu0 %v2422
    %v2443 = vpop.xlane.xlu0 %2442
    %2444 = vmax.xlane.f32.xlu0 %v2423
    %v2445 = vpop.xlane.xlu0 %2444
    %2446 = vmax.xlane.f32.xlu0 %v2424
    %v2447 = vpop.xlane.xlu0 %2446
    %2448 = vmax.xlane.f32.xlu0 %v2425
    %v2449 = vpop.xlane.xlu0 %2448
    %2450 = vmax.xlane.f32.xlu0 %v2426
    %v2451 = vpop.xlane.xlu0 %2450
    %2452 = vmax.xlane.f32.xlu0 %v2427
    %v2453 = vpop.xlane.xlu0 %2452
    %2454 = vmax.xlane.f32.xlu0 %v2428
    %v2455 = vpop.xlane.xlu0 %2454
    %2456 = vmax.xlane.f32.xlu0 %v2429
    %v2457 = vpop.xlane.xlu0 %2456
    %2458 = vmax.xlane.f32.xlu0 %v2430
    %v2459 = vpop.xlane.xlu0 %2458
    %2460 = vmax.xlane.f32.xlu0 %v2431
    %v2461 = vpop.xlane.xlu0 %2460
    %2462 = vmax.xlane.f32.xlu0 %v2432
    %v2463 = vpop.xlane.xlu0 %2462
    %2464 = vmax.xlane.f32.xlu0 %v2433
    %v2465 = vpop.xlane.xlu0 %2464
    %v2466 = vsub.f32 %v2418, %v2435
    %v2467 = vsub.f32 %v2419, %v2437
    %v2468 = vsub.f32 %v2420, %v2439
    %v2469 = vsub.f32 %v2421, %v2441
    %v2470 = vsub.f32 %v2422, %v2443
    %v2471 = vsub.f32 %v2423, %v2445
    %v2472 = vsub.f32 %v2424, %v2447
    %v2473 = vsub.f32 %v2425, %v2449
    %v2474 = vsub.f32 %v2426, %v2451
    %v2475 = vsub.f32 %v2427, %v2453
    %v2476 = vsub.f32 %v2428, %v2455
    %v2477 = vsub.f32 %v2429, %v2457
    %v2478 = vsub.f32 %v2430, %v2459
    %v2479 = vsub.f32 %v2431, %v2461
    %v2480 = vsub.f32 %v2432, %v2463
    %v2481 = vsub.f32 %v2433, %v2465
    %v2482 = vmul.f32 %v2466, 1.442695
    %v2483 = vpow.pop %v2482
    %v2484 = vmul.f32 %v2467, 1.442695
    %v2485 = vpow.pop %v2484
    %v2486 = vmul.f32 %v2468, 1.442695
    %v2487 = vpow.pop %v2486
    %v2488 = vmul.f32 %v2469, 1.442695
    %v2489 = vpow.pop %v2488
    %v2490 = vmul.f32 %v2470, 1.442695
    %v2491 = vpow.pop %v2490
    %v2492 = vmul.f32 %v2471, 1.442695
    %v2493 = vpow.pop %v2492
    %v2494 = vmul.f32 %v2472, 1.442695
    %v2495 = vpow.pop %v2494
    %v2496 = vmul.f32 %v2473, 1.442695
    %v2497 = vpow.pop %v2496
    %v2498 = vmul.f32 %v2474, 1.442695
    %v2499 = vpow.pop %v2498
    %v2500 = vmul.f32 %v2475, 1.442695
    %v2501 = vpow.pop %v2500
    %v2502 = vmul.f32 %v2476, 1.442695
    %v2503 = vpow.pop %v2502
    %v2504 = vmul.f32 %v2477, 1.442695
    %v2505 = vpow.pop %v2504
    %v2506 = vmul.f32 %v2478, 1.442695
    %v2507 = vpow.pop %v2506
    %v2508 = vmul.f32 %v2479, 1.442695
    %v2509 = vpow.pop %v2508
    %v2510 = vmul.f32 %v2480, 1.442695
    %v2511 = vpow.pop %v2510
    %v2512 = vmul.f32 %v2481, 1.442695
    %v2513 = vpow.pop %v2512
    %2514 = vadd.xlane.f32.xlu0 %v2483
    %v2515 = vpop.xlane.xlu0 %2514
    %2516 = vadd.xlane.f32.xlu0 %v2485
    %v2517 = vpop.xlane.xlu0 %2516
    %2518 = vadd.xlane.f32.xlu0 %v2487
    %v2519 = vpop.xlane.xlu0 %2518
    %2520 = vadd.xlane.f32.xlu0 %v2489
    %v2521 = vpop.xlane.xlu0 %2520
    %2522 = vadd.xlane.f32.xlu0 %v2491
    %v2523 = vpop.xlane.xlu0 %2522
    %2524 = vadd.xlane.f32.xlu0 %v2493
    %v2525 = vpop.xlane.xlu0 %2524
    %2526 = vadd.xlane.f32.xlu0 %v2495
    %v2527 = vpop.xlane.xlu0 %2526
    %2528 = vadd.xlane.f32.xlu0 %v2497
    %v2529 = vpop.xlane.xlu0 %2528
    %2530 = vadd.xlane.f32.xlu0 %v2499
    %v2531 = vpop.xlane.xlu0 %2530
    %2532 = vadd.xlane.f32.xlu0 %v2501
    %v2533 = vpop.xlane.xlu0 %2532
    %2534 = vadd.xlane.f32.xlu0 %v2503
    %v2535 = vpop.xlane.xlu0 %2534
    %2536 = vadd.xlane.f32.xlu0 %v2505
    %v2537 = vpop.xlane.xlu0 %2536
    %2538 = vadd.xlane.f32.xlu0 %v2507
    %v2539 = vpop.xlane.xlu0 %2538
    %2540 = vadd.xlane.f32.xlu0 %v2509
    %v2541 = vpop.xlane.xlu0 %2540
    %2542 = vadd.xlane.f32.xlu0 %v2511
    %v2543 = vpop.xlane.xlu0 %2542
    %2544 = vadd.xlane.f32.xlu0 %v2513
    %v2545 = vpop.xlane.xlu0 %2544
    %v2546 = vrcp.pop %v2515
    %v2547 = vrcp.pop %v2517
    %v2548 = vrcp.pop %v2519
    %v2549 = vrcp.pop %v2521
    %v2550 = vrcp.pop %v2523
    %v2551 = vrcp.pop %v2525
    %v2552 = vrcp.pop %v2527
    %v2553 = vrcp.pop %v2529
    %v2554 = vrcp.pop %v2531
    %v2555 = vrcp.pop %v2533
    %v2556 = vrcp.pop %v2535
    %v2557 = vrcp.pop %v2537
    %v2558 = vrcp.pop %v2539
    %v2559 = vrcp.pop %v2541
    %v2560 = vrcp.pop %v2543
    %v2561 = vrcp.pop %v2545
    %v2562 = vmul.f32 %v2483, %v2546
    %v2563 = vmul.f32 %v2485, %v2547
    %v2564 = vmul.f32 %v2487, %v2548
    %v2565 = vmul.f32 %v2489, %v2549
    %v2566 = vmul.f32 %v2491, %v2550
    %v2567 = vmul.f32 %v2493, %v2551
    %v2568 = vmul.f32 %v2495, %v2552
    %v2569 = vmul.f32 %v2497, %v2553
    %v2570 = vmul.f32 %v2499, %v2554
    %v2571 = vmul.f32 %v2501, %v2555
    %v2572 = vmul.f32 %v2503, %v2556
    %v2573 = vmul.f32 %v2505, %v2557
    %v2574 = vmul.f32 %v2507, %v2558
    %v2575 = vmul.f32 %v2509, %v2559
    %v2576 = vmul.f32 %v2511, %v2560
    %v2577 = vmul.f32 %v2513, %v2561
    %v2578 = vpack.c.bf16 %v2563, %v2562
    %v2579 = vpack.c.bf16 %v2565, %v2564
    %v2580 = vpack.c.bf16 %v2567, %v2566
    %v2581 = vpack.c.bf16 %v2569, %v2568
    %v2582 = vpack.c.bf16 %v2571, %v2570
    %v2583 = vpack.c.bf16 %v2573, %v2572
    %v2584 = vpack.c.bf16 %v2575, %v2574
    %v2585 = vpack.c.bf16 %v2577, %v2576
    %2594 = vrot.lane.b32.xlu0 %v2225, 64
    %v2595 = vpop.permute.xlu0 %2594
    %2596 = vrot.lane.b32.xlu0 %v2226, 64
    %v2597 = vpop.permute.xlu0 %2596
    %2598 = vrot.lane.b32.xlu0 %v2227, 64
    %v2599 = vpop.permute.xlu0 %2598
    %2600 = vrot.lane.b32.xlu0 %v2228, 64
    %v2601 = vpop.permute.xlu0 %2600
    %2602 = vrot.lane.b32.xlu0 %v2229, 64
    %v2603 = vpop.permute.xlu0 %2602
    %2604 = vrot.lane.b32.xlu0 %v2230, 64
    %v2605 = vpop.permute.xlu0 %2604
    %2606 = vrot.lane.b32.xlu0 %v2231, 64
    %v2607 = vpop.permute.xlu0 %2606
    %2608 = vrot.lane.b32.xlu0 %v2232, 64
    %v2609 = vpop.permute.xlu0 %2608
    %2618 = vmatprep.subr.bf16.mxu0 0
    %2619 = vmatpush1.bf16.msra.mxu0 %v2595
    %2620 = vmatprep.subr.bf16.mxu0 0
    %2621 = vmatpush1.bf16.msra.mxu0 %v2597
    %2622 = vmatprep.subr.bf16.mxu0 0
    %2623 = vmatpush1.bf16.msra.mxu0 %v2599
    %2624 = vmatprep.subr.bf16.mxu0 0
    %2625 = vmatpush1.bf16.msra.mxu0 %v2601
    %2626 = vmatprep.subr.bf16.mxu0 0
    %2627 = vmatpush1.bf16.msra.mxu0 %v2603
    %2628 = vmatprep.subr.bf16.mxu0 0
    %2629 = vmatpush1.bf16.msra.mxu0 %v2605
    %2630 = vmatprep.subr.bf16.mxu0 0
    %2631 = vmatpush1.bf16.msra.mxu0 %v2607
    %2632 = vmatprep.subr.bf16.mxu0 0
    %2633 = vmatpush1.bf16.msra.mxu0 %v2609
    %2634 = vmatprep.subr.bf16.mxu0 0
    %2635 = vmatpush1.bf16.msra.mxu0 0
    %2636 = vmatprep.subr.bf16.mxu0 0
    %2637 = vmatpush1.bf16.msra.mxu0 0
    %2638 = vmatprep.subr.bf16.mxu0 0
    %2639 = vmatpush1.bf16.msra.mxu0 0
    %2640 = vmatprep.subr.bf16.mxu0 0
    %2641 = vmatpush1.bf16.msra.mxu0 0
    %2642 = vmatprep.subr.bf16.mxu0 0
    %2643 = vmatpush1.bf16.msra.mxu0 0
    %2644 = vmatprep.subr.bf16.mxu0 0
    %2645 = vmatpush1.bf16.msra.mxu0 0
    %2646 = vmatprep.subr.bf16.mxu0 0
    %2647 = vmatpush1.bf16.msra.mxu0 0
    %2648 = vmatprep.subr.bf16.mxu0 0
    %2649 = vmatpush1.bf16.msra.mxu0 0
    %2650 = vmatprep.mubr.bf16.mxu0 0
    %2651 = vmatmul.mubr.bf16.gmra.mrb[0].mxu0 %v2578
    %v2652 = vpop.f32.mrb[0].mxu0
    %v2653 = vadd.f32 0.0, %v2652
    %v2654 = vpop.f32.mrb[0].mxu0
    %v2655 = vpop.f32.mrb[0].mxu0
    %v2656 = vadd.f32 0.0, %v2655
    %v2657 = vpop.f32.mrb[0].mxu0
    %2658 = vmatprep.mubr.bf16.mxu0 0
    %2659 = vmatmul.mubr.bf16.gmra.mrb[0].mxu0 %v2579
    %v2660 = vpop.f32.mrb[0].mxu0
    %v2661 = vadd.f32 0.0, %v2660
    %v2662 = vpop.f32.mrb[0].mxu0
    %v2663 = vpop.f32.mrb[0].mxu0
    %v2664 = vadd.f32 0.0, %v2663
    %v2665 = vpop.f32.mrb[0].mxu0
    %2666 = vmatprep.mubr.bf16.mxu0 0
    %2667 = vmatmul.mubr.bf16.gmra.mrb[0].mxu0 %v2580
    %v2668 = vpop.f32.mrb[0].mxu0
    %v2669 = vadd.f32 0.0, %v2668
    %v2670 = vpop.f32.mrb[0].mxu0
    %v2671 = vpop.f32.mrb[0].mxu0
    %v2672 = vadd.f32 0.0, %v2671
    %v2673 = vpop.f32.mrb[0].mxu0
    %2674 = vmatprep.mubr.bf16.mxu0 0
    %2675 = vmatmul.mubr.bf16.gmra.mrb[0].mxu0 %v2581
    %v2676 = vpop.f32.mrb[0].mxu0
    %v2677 = vadd.f32 0.0, %v2676
    %v2678 = vpop.f32.mrb[0].mxu0
    %v2679 = vpop.f32.mrb[0].mxu0
    %v2680 = vadd.f32 0.0, %v2679
    %v2681 = vpop.f32.mrb[0].mxu0
    %2682 = vmatprep.mubr.bf16.mxu0 0
    %2683 = vmatmul.mubr.bf16.gmra.mrb[0].mxu0 %v2582
    %v2684 = vpop.f32.mrb[0].mxu0
    %v2685 = vadd.f32 0.0, %v2684
    %v2686 = vpop.f32.mrb[0].mxu0
    %v2687 = vpop.f32.mrb[0].mxu0
    %v2688 = vadd.f32 0.0, %v2687
    %v2689 = vpop.f32.mrb[0].mxu0
    %2690 = vmatprep.mubr.bf16.mxu0 0
    %2691 = vmatmul.mubr.bf16.gmra.mrb[0].mxu0 %v2583
    %v2692 = vpop.f32.mrb[0].mxu0
    %v2693 = vadd.f32 0.0, %v2692
    %v2694 = vpop.f32.mrb[0].mxu0
    %v2695 = vpop.f32.mrb[0].mxu0
    %v2696 = vadd.f32 0.0, %v2695
    %v2697 = vpop.f32.mrb[0].mxu0
    %2698 = vmatprep.mubr.bf16.mxu0 0
    %2699 = vmatmul.mubr.bf16.gmra.mrb[0].mxu0 %v2584
    %v2700 = vpop.f32.mrb[0].mxu0
    %v2701 = vadd.f32 0.0, %v2700
    %v2702 = vpop.f32.mrb[0].mxu0
    %v2703 = vpop.f32.mrb[0].mxu0
    %v2704 = vadd.f32 0.0, %v2703
    %v2705 = vpop.f32.mrb[0].mxu0
    %2706 = vmatprep.mubr.bf16.mxu0 0
    %2707 = vmatmul.mubr.bf16.gmra.mrb[0].mxu0 %v2585
    %v2708 = vpop.f32.mrb[0].mxu0
    %v2709 = vadd.f32 0.0, %v2708
    %v2710 = vpop.f32.mrb[0].mxu0
    %v2711 = vpop.f32.mrb[0].mxu0
    %v2712 = vadd.f32 0.0, %v2711
    %v2713 = vpop.f32.mrb[0].mxu0
    %2714 = vdwg.mxu0
    %v2715 = vpack.c.bf16 %v2656, %v2653
    %v2716 = vpack.c.bf16 %v2664, %v2661
    %v2717 = vpack.c.bf16 %v2672, %v2669
    %v2718 = vpack.c.bf16 %v2680, %v2677
    %v2719 = vpack.c.bf16 %v2688, %v2685
    %v2720 = vpack.c.bf16 %v2696, %v2693
    %v2721 = vpack.c.bf16 %v2704, %v2701
    %v2722 = vpack.c.bf16 %v2712, %v2709
    %s2723 = scalar_lea.vmem %s13, 16
    %v2724 = vld [vmem:[%s2723] sm:$0xf]
    %v2725 = vld [vmem:[%s2723 + $0x4] sm:$0xf]
    %v2726 = vld [vmem:[%s2723 + $0x8] sm:$0xf]
    %v2727 = vld [vmem:[%s2723 + $0xc] sm:$0xf]
    %v2732 = vunpack.c.l.b16 %v2724
    %v2733 = vunpack.c.l.b16 %v2725
    %v2734 = vunpack.c.l.b16 %v2726
    %v2735 = vunpack.c.l.b16 %v2727
    %v2736 = vpack.c.b16 %v2733, %v2732
    %v2737 = vpack.c.b16 %v2735, %v2734
    %v2741 = vsel %vm325, %v2715, 0
    %v2744 = vsel %vm325, %v2716, 0
    %v2747 = vsel %vm325, %v2717, 0
    %v2750 = vsel %vm325, %v2718, 0
    %v2753 = vsel %vm325, %v2719, 0
    %v2756 = vsel %vm325, %v2720, 0
    %v2759 = vsel %vm325, %v2721, 0
    %v2762 = vsel %vm325, %v2722, 0
    %2764 = vmatprep.subr.bf16.mxu0 0
    %2765 = vmatpush1.bf16.msra.mxu0 %v2736
    %2766 = vmatprep.subr.bf16.mxu0 0
    %2767 = vmatpush1.bf16.msra.mxu0 %v2737
    %2768 = vmatprep.subr.bf16.mxu0 0
    %2769 = vmatpush1.bf16.msra.mxu0 0
    %2770 = vmatprep.subr.bf16.mxu0 0
    %2771 = vmatpush1.bf16.msra.mxu0 0
    %2772 = vmatprep.subr.bf16.mxu0 0
    %2773 = vmatpush1.bf16.msra.mxu0 0
    %2774 = vmatprep.subr.bf16.mxu0 0
    %2775 = vmatpush1.bf16.msra.mxu0 0
    %2776 = vmatprep.subr.bf16.mxu0 0
    %2777 = vmatpush1.bf16.msra.mxu0 0
    %2778 = vmatprep.subr.bf16.mxu0 0
    %2779 = vmatpush1.bf16.msra.mxu0 0
    %2780 = vmatprep.subr.bf16.mxu0 0
    %2781 = vmatpush1.bf16.msra.mxu0 0
    %2782 = vmatprep.subr.bf16.mxu0 0
    %2783 = vmatpush1.bf16.msra.mxu0 0
    %2784 = vmatprep.subr.bf16.mxu0 0
    %2785 = vmatpush1.bf16.msra.mxu0 0
    %2786 = vmatprep.subr.bf16.mxu0 0
    %2787 = vmatpush1.bf16.msra.mxu0 0
    %2788 = vmatprep.subr.bf16.mxu0 0
    %2789 = vmatpush1.bf16.msra.mxu0 0
    %2790 = vmatprep.subr.bf16.mxu0 0
    %2791 = vmatpush1.bf16.msra.mxu0 0
    %2792 = vmatprep.subr.bf16.mxu0 0
    %2793 = vmatpush1.bf16.msra.mxu0 0
    %2794 = vmatprep.subr.bf16.mxu0 0
    %2795 = vmatpush1.bf16.msra.mxu0 0
    %2796 = vmatprep.mubr.bf16.mxu0 0
    %2797 = vmatmul.mubr.bf16.gmra.mrb[0].mxu0 %v2741
    %v2798 = vpop.f32.mrb[0].mxu0
    %v2799 = vadd.f32 0.0, %v2798
    %v2800 = vpop.f32.mrb[0].mxu0
    %v2801 = vpop.f32.mrb[0].mxu0
    %v2802 = vadd.f32 0.0, %v2801
    %v2803 = vpop.f32.mrb[0].mxu0
    %2804 = vmatprep.mubr.bf16.mxu0 0
    %2805 = vmatmul.mubr.bf16.gmra.mrb[0].mxu0 %v2744
    %v2806 = vpop.f32.mrb[0].mxu0
    %v2807 = vadd.f32 0.0, %v2806
    %v2808 = vpop.f32.mrb[0].mxu0
    %v2809 = vpop.f32.mrb[0].mxu0
    %v2810 = vadd.f32 0.0, %v2809
    %v2811 = vpop.f32.mrb[0].mxu0
    %2812 = vmatprep.mubr.bf16.mxu0 0
    %2813 = vmatmul.mubr.bf16.gmra.mrb[0].mxu0 %v2747
    %v2814 = vpop.f32.mrb[0].mxu0
    %v2815 = vadd.f32 0.0, %v2814
    %v2816 = vpop.f32.mrb[0].mxu0
    %v2817 = vpop.f32.mrb[0].mxu0
    %v2818 = vadd.f32 0.0, %v2817
    %v2819 = vpop.f32.mrb[0].mxu0
    %2820 = vmatprep.mubr.bf16.mxu0 0
    %2821 = vmatmul.mubr.bf16.gmra.mrb[0].mxu0 %v2750
    %v2822 = vpop.f32.mrb[0].mxu0
    %v2823 = vadd.f32 0.0, %v2822
    %v2824 = vpop.f32.mrb[0].mxu0
    %v2825 = vpop.f32.mrb[0].mxu0
    %v2826 = vadd.f32 0.0, %v2825
    %v2827 = vpop.f32.mrb[0].mxu0
    %2828 = vmatprep.mubr.bf16.mxu0 0
    %2829 = vmatmul.mubr.bf16.gmra.mrb[0].mxu0 %v2753
    %v2830 = vpop.f32.mrb[0].mxu0
    %v2831 = vadd.f32 0.0, %v2830
    %v2832 = vpop.f32.mrb[0].mxu0
    %v2833 = vpop.f32.mrb[0].mxu0
    %v2834 = vadd.f32 0.0, %v2833
    %v2835 = vpop.f32.mrb[0].mxu0
    %2836 = vmatprep.mubr.bf16.mxu0 0
    %2837 = vmatmul.mubr.bf16.gmra.mrb[0].mxu0 %v2756
    %v2838 = vpop.f32.mrb[0].mxu0
    %v2839 = vadd.f32 0.0, %v2838
    %v2840 = vpop.f32.mrb[0].mxu0
    %v2841 = vpop.f32.mrb[0].mxu0
    %v2842 = vadd.f32 0.0, %v2841
    %v2843 = vpop.f32.mrb[0].mxu0
    %2844 = vmatprep.mubr.bf16.mxu0 0
    %2845 = vmatmul.mubr.bf16.gmra.mrb[0].mxu0 %v2759
    %v2846 = vpop.f32.mrb[0].mxu0
    %v2847 = vadd.f32 0.0, %v2846
    %v2848 = vpop.f32.mrb[0].mxu0
    %v2849 = vpop.f32.mrb[0].mxu0
    %v2850 = vadd.f32 0.0, %v2849
    %v2851 = vpop.f32.mrb[0].mxu0
    %2852 = vmatprep.mubr.bf16.mxu0 0
    %2853 = vmatmul.mubr.bf16.gmra.mrb[0].mxu0 %v2762
    %v2854 = vpop.f32.mrb[0].mxu0
    %v2855 = vadd.f32 0.0, %v2854
    %v2856 = vpop.f32.mrb[0].mxu0
    %v2857 = vpop.f32.mrb[0].mxu0
    %v2858 = vadd.f32 0.0, %v2857
    %v2859 = vpop.f32.mrb[0].mxu0
    %2860 = vdwg.mxu0
    %v2861 = vmul.f32 %v2799, %v247
    %v2862 = vmul.f32 %v2802, %v248
    %v2863 = vmul.f32 %v2807, %v249
    %v2864 = vmul.f32 %v2810, %v250
    %v2865 = vmul.f32 %v2815, %v251
    %v2866 = vmul.f32 %v2818, %v252
    %v2867 = vmul.f32 %v2823, %v253
    %v2868 = vmul.f32 %v2826, %v254
    %v2869 = vmul.f32 %v2831, %v255
    %v2870 = vmul.f32 %v2834, %v256
    %v2871 = vmul.f32 %v2839, %v257
    %v2872 = vmul.f32 %v2842, %v258
    %v2873 = vmul.f32 %v2847, %v259
    %v2874 = vmul.f32 %v2850, %v260
    %v2875 = vmul.f32 %v2855, %v261
    %v2876 = vmul.f32 %v2858, %v262
    %2877 = vmatprep.subr.mxu0 0.0
    %2878 = vmatpush1.msra.mxu0 %v2861
    %2879 = vmatprep.subr.mxu0 0.0
    %2880 = vmatpush1.msra.mxu0 %v2862
    %2881 = vmatprep.subr.mxu0 0.0
    %2882 = vmatpush1.msra.mxu0 %v2863
    %2883 = vmatprep.subr.mxu0 0.0
    %2884 = vmatpush1.msra.mxu0 %v2864
    %2885 = vmatprep.subr.mxu0 0.0
    %2886 = vmatpush1.msra.mxu0 %v2865
    %2887 = vmatprep.subr.mxu0 0.0
    %2888 = vmatpush1.msra.mxu0 %v2866
    %2889 = vmatprep.subr.mxu0 0.0
    %2890 = vmatpush1.msra.mxu0 %v2867
    %2891 = vmatprep.subr.mxu0 0.0
    %2892 = vmatpush1.msra.mxu0 %v2868
    %2893 = vmatprep.subr.mxu0 0.0
    %2894 = vmatpush1.msra.mxu0 %v2869
    %2895 = vmatprep.subr.mxu0 0.0
    %2896 = vmatpush1.msra.mxu0 %v2870
    %2897 = vmatprep.subr.mxu0 0.0
    %2898 = vmatpush1.msra.mxu0 %v2871
    %2899 = vmatprep.subr.mxu0 0.0
    %2900 = vmatpush1.msra.mxu0 %v2872
    %2901 = vmatprep.subr.mxu0 0.0
    %2902 = vmatpush1.msra.mxu0 %v2873
    %2903 = vmatprep.subr.mxu0 0.0
    %2904 = vmatpush1.msra.mxu0 %v2874
    %2905 = vmatprep.subr.mxu0 0.0
    %2906 = vmatpush1.msra.mxu0 %v2875
    %2907 = vmatprep.subr.mxu0 0.0
    %2908 = vmatpush1.msra.mxu0 %v2876
    %2909 = vmatprep.subr.mxu0 0.0
    %2910 = vmatpush1.msra.mxu0 0.0
    %2911 = vmatprep.subr.mxu0 0.0
    %2912 = vmatpush1.msra.mxu0 0.0
    %2913 = vmatprep.subr.mxu0 0.0
    %2914 = vmatpush1.msra.mxu0 0.0
    %2915 = vmatprep.subr.mxu0 0.0
    %2916 = vmatpush1.msra.mxu0 0.0
    %2917 = vmatprep.subr.mxu0 0.0
    %2918 = vmatpush1.msra.mxu0 0.0
    %2919 = vmatprep.subr.mxu0 0.0
    %2920 = vmatpush1.msra.mxu0 0.0
    %2921 = vmatprep.subr.mxu0 0.0
    %2922 = vmatpush1.msra.mxu0 0.0
    %2923 = vmatprep.subr.mxu0 0.0
    %2924 = vmatpush1.msra.mxu0 0.0
    %2925 = vmatprep.subr.mxu0 0.0
    %2926 = vmatpush1.msra.mxu0 0.0
    %2927 = vmatprep.subr.mxu0 0.0
    %2928 = vmatpush1.msra.mxu0 0.0
    %2929 = vmatprep.subr.mxu0 0.0
    %2930 = vmatpush1.msra.mxu0 0.0
    %2931 = vmatprep.subr.mxu0 0.0
    %2932 = vmatpush1.msra.mxu0 0.0
    %2933 = vmatprep.subr.mxu0 0.0
    %2934 = vmatpush1.msra.mxu0 0.0
    %2935 = vmatprep.subr.mxu0 0.0
    %2936 = vmatpush1.msra.mxu0 0.0
    %2937 = vmatprep.subr.mxu0 0.0
    %2938 = vmatpush1.msra.mxu0 0.0
    %2939 = vmatprep.subr.mxu0 0.0
    %2940 = vmatpush1.msra.mxu0 0.0
    %2941 = vmatprep.mubr.f32.mxu0 0.0
    %2942 = vmatmul.mubr.f32.gmra.mrb[0].mxu0 %v263
    %v2943 = vpop.f32.mrb[0].mxu0
    %v2944 = vadd.f32 0.0, %v2943
    %v2945 = vpop.f32.mrb[0].mxu0
    %2946 = vmatprep.mubr.f32.mxu0 0.0
    %2947 = vmatmul.mubr.f32.gmra.mrb[0].mxu0 %v264
    %v2948 = vpop.f32.mrb[0].mxu0
    %v2949 = vadd.f32 0.0, %v2948
    %v2950 = vpop.f32.mrb[0].mxu0
    %2951 = vmatprep.mubr.f32.mxu0 0.0
    %2952 = vmatmul.mubr.f32.gmra.mrb[0].mxu0 %v265
    %v2953 = vpop.f32.mrb[0].mxu0
    %v2954 = vadd.f32 0.0, %v2953
    %v2955 = vpop.f32.mrb[0].mxu0
    %2956 = vmatprep.mubr.f32.mxu0 0.0
    %2957 = vmatmul.mubr.f32.gmra.mrb[0].mxu0 %v266
    %v2958 = vpop.f32.mrb[0].mxu0
    %v2959 = vadd.f32 0.0, %v2958
    %v2960 = vpop.f32.mrb[0].mxu0
    %2961 = vdwg.mxu0
    %s2962 = scalar_lea.vmem %s14, 1
    %v2963 = vld [vmem:[%s2962] sm:$0x1]
    %v2965 = vlaneseq
    %v2966 = vshrl.u32 %v2965, 7
    %v2967 = vsub.s32 0, %v2966
    %v2968 = vrot.slane %v2963, %v2967
    %2970 = vmatprep.subr.mxu0 0.0
    %2971 = vmatpush1.msra.mxu0 %v267
    %2972 = vmatprep.subr.mxu0 0.0
    %2973 = vmatpush1.msra.mxu0 %v268
    %2974 = vmatprep.subr.mxu0 0.0
    %2975 = vmatpush1.msra.mxu0 %v269
    %2976 = vmatprep.subr.mxu0 0.0
    %2977 = vmatpush1.msra.mxu0 %v270
    %2978 = vmatprep.subr.mxu0 0.0
    %2979 = vmatpush1.msra.mxu0 %v271
    %2980 = vmatprep.subr.mxu0 0.0
    %2981 = vmatpush1.msra.mxu0 %v272
    %2982 = vmatprep.subr.mxu0 0.0
    %2983 = vmatpush1.msra.mxu0 %v273
    %2984 = vmatprep.subr.mxu0 0.0
    %2985 = vmatpush1.msra.mxu0 %v274
    %2986 = vmatprep.subr.mxu0 0.0
    %2987 = vmatpush1.msra.mxu0 %v275
    %2988 = vmatprep.subr.mxu0 0.0
    %2989 = vmatpush1.msra.mxu0 %v276
    %2990 = vmatprep.subr.mxu0 0.0
    %2991 = vmatpush1.msra.mxu0 %v277
    %2992 = vmatprep.subr.mxu0 0.0
    %2993 = vmatpush1.msra.mxu0 %v278
    %2994 = vmatprep.subr.mxu0 0.0
    %2995 = vmatpush1.msra.mxu0 %v279
    %2996 = vmatprep.subr.mxu0 0.0
    %2997 = vmatpush1.msra.mxu0 %v280
    %2998 = vmatprep.subr.mxu0 0.0
    %2999 = vmatpush1.msra.mxu0 %v281
    %3000 = vmatprep.subr.mxu0 0.0
    %3001 = vmatpush1.msra.mxu0 %v282
    %3002 = vmatprep.subr.mxu0 0.0
    %3003 = vmatpush1.msra.mxu0 0.0
    %3004 = vmatprep.subr.mxu0 0.0
    %3005 = vmatpush1.msra.mxu0 0.0
    %3006 = vmatprep.subr.mxu0 0.0
    %3007 = vmatpush1.msra.mxu0 0.0
    %3008 = vmatprep.subr.mxu0 0.0
    %3009 = vmatpush1.msra.mxu0 0.0
    %3010 = vmatprep.subr.mxu0 0.0
    %3011 = vmatpush1.msra.mxu0 0.0
    %3012 = vmatprep.subr.mxu0 0.0
    %3013 = vmatpush1.msra.mxu0 0.0
    %3014 = vmatprep.subr.mxu0 0.0
    %3015 = vmatpush1.msra.mxu0 0.0
    %3016 = vmatprep.subr.mxu0 0.0
    %3017 = vmatpush1.msra.mxu0 0.0
    %3018 = vmatprep.subr.mxu0 0.0
    %3019 = vmatpush1.msra.mxu0 0.0
    %3020 = vmatprep.subr.mxu0 0.0
    %3021 = vmatpush1.msra.mxu0 0.0
    %3022 = vmatprep.subr.mxu0 0.0
    %3023 = vmatpush1.msra.mxu0 0.0
    %3024 = vmatprep.subr.mxu0 0.0
    %3025 = vmatpush1.msra.mxu0 0.0
    %3026 = vmatprep.subr.mxu0 0.0
    %3027 = vmatpush1.msra.mxu0 0.0
    %3028 = vmatprep.subr.mxu0 0.0
    %3029 = vmatpush1.msra.mxu0 0.0
    %3030 = vmatprep.subr.mxu0 0.0
    %3031 = vmatpush1.msra.mxu0 0.0
    %3032 = vmatprep.subr.mxu0 0.0
    %3033 = vmatpush1.msra.mxu0 0.0
    %3034 = vmatprep.mubr.f32.mxu0 0.0
    %3035 = vmatmul.mubr.f32.gmra.mrb[0].mxu0 %v2944
    %v3036 = vpop.f32.mrb[0].mxu0
    %v3037 = vadd.f32 %v2968, %v3036
    %v3038 = vpop.f32.mrb[0].mxu0
    %3039 = vmatprep.mubr.f32.mxu0 0.0
    %3040 = vmatmul.mubr.f32.gmra.mrb[0].mxu0 %v2949
    %v3041 = vpop.f32.mrb[0].mxu0
    %v3042 = vadd.f32 %v2968, %v3041
    %v3043 = vpop.f32.mrb[0].mxu0
    %3044 = vmatprep.mubr.f32.mxu0 0.0
    %3045 = vmatmul.mubr.f32.gmra.mrb[0].mxu0 %v2954
    %v3046 = vpop.f32.mrb[0].mxu0
    %v3047 = vadd.f32 %v2968, %v3046
    %v3048 = vpop.f32.mrb[0].mxu0
    %3049 = vmatprep.mubr.f32.mxu0 0.0
    %3050 = vmatmul.mubr.f32.gmra.mrb[0].mxu0 %v2959
    %v3051 = vpop.f32.mrb[0].mxu0
    %v3052 = vadd.f32 %v2968, %v3051
    %v3053 = vpop.f32.mrb[0].mxu0
    %3054 = vdwg.mxu0
    %v3055 = vadd.f32 %v1920, %v3037
    %v3056 = vadd.f32 %v1921, %v3042
    %v3057 = vadd.f32 %v1922, %v3047
    %v3058 = vadd.f32 %v1923, %v3052
    %s3059 = scalar_lea.vmem %s19, 1
    %v3060 = vld [vmem:[%s3059] sm:$0x1]
    %s3061 = scalar_lea.vmem %s20, 1
    %v3062 = vld [vmem:[%s3061] sm:$0x1]
    %v3063 = vsel %vm325, %v3055, 0.0
    %3064 = vadd.xlane.f32.xlu0 %v3063
    %v3065 = vpop.xlane.xlu0 %3064
    %v3066 = vsel %vm325, %v3056, 0.0
    %3067 = vadd.xlane.f32.xlu0 %v3066
    %v3068 = vpop.xlane.xlu0 %3067
    %v3069 = vsel %vm325, %v3057, 0.0
    %3070 = vadd.xlane.f32.xlu0 %v3069
    %v3071 = vpop.xlane.xlu0 %3070
    %v3072 = vsel %vm325, %v3058, 0.0
    %3073 = vadd.xlane.f32.xlu0 %v3072
    %v3074 = vpop.xlane.xlu0 %3073
    %v3075 = vmul.f32 %v3065, %v1605
    %v3076 = vmul.f32 %v3068, %v1605
    %v3077 = vmul.f32 %v3071, %v1605
    %v3078 = vmul.f32 %v3074, %v1605
    %v3079 = vsub.f32 %v3055, %v3075
    %v3080 = vsub.f32 %v3056, %v3076
    %v3081 = vsub.f32 %v3057, %v3077
    %v3082 = vsub.f32 %v3058, %v3078
    %v3083 = vmul.f32 %v3079, %v3079
    %v3084 = vmul.f32 %v3080, %v3080
    %v3085 = vmul.f32 %v3081, %v3081
    %v3086 = vmul.f32 %v3082, %v3082
    %v3087 = vsel %vm325, %v3083, 0.0
    %3088 = vadd.xlane.f32.xlu0 %v3087
    %v3089 = vpop.xlane.xlu0 %3088
    %v3090 = vsel %vm325, %v3084, 0.0
    %3091 = vadd.xlane.f32.xlu0 %v3090
    %v3092 = vpop.xlane.xlu0 %3091
    %v3093 = vsel %vm325, %v3085, 0.0
    %3094 = vadd.xlane.f32.xlu0 %v3093
    %v3095 = vpop.xlane.xlu0 %3094
    %v3096 = vsel %vm325, %v3086, 0.0
    %3097 = vadd.xlane.f32.xlu0 %v3096
    %v3098 = vpop.xlane.xlu0 %3097
    %v3099 = vmul.f32 %v3089, %v1605
    %v3100 = vmul.f32 %v3092, %v1605
    %v3101 = vmul.f32 %v3095, %v1605
    %v3102 = vmul.f32 %v3098, %v1605
    %v3103 = vadd.f32 %v3099, 1e-05
    %v3104 = vadd.f32 %v3100, 1e-05
    %v3105 = vadd.f32 %v3101, 1e-05
    %v3106 = vadd.f32 %v3102, 1e-05
    %v3107 = vrsqrt.pop %v3103
    %v3108 = vrsqrt.pop %v3104
    %v3109 = vrsqrt.pop %v3105
    %v3110 = vrsqrt.pop %v3106
    %v3111 = vmul.f32 %v3079, %v3107
    %v3112 = vmul.f32 %v3080, %v3108
    %v3113 = vmul.f32 %v3081, %v3109
    %v3114 = vmul.f32 %v3082, %v3110
    %v3116 = vlaneseq
    %v3117 = vshrl.u32 %v3116, 7
    %v3118 = vsub.s32 0, %v3117
    %v3119 = vrot.slane %v3060, %v3118
    %v3121 = vmul.f32 %v3111, %v3119
    %v3122 = vmul.f32 %v3112, %v3119
    %v3123 = vmul.f32 %v3113, %v3119
    %v3124 = vmul.f32 %v3114, %v3119
    %v3126 = vlaneseq
    %v3127 = vshrl.u32 %v3126, 7
    %v3128 = vsub.s32 0, %v3127
    %v3129 = vrot.slane %v3062, %v3128
    %v3131 = vadd.f32 %v3121, %v3129
    %v3132 = vadd.f32 %v3122, %v3129
    %v3133 = vadd.f32 %v3123, %v3129
    %v3134 = vadd.f32 %v3124, %v3129
    %v3135 = vpack.c.bf16 %v3132, %v3131
    %v3136 = vpack.c.bf16 %v3134, %v3133
    %s3137 = scalar_lea.vmem %s15, 16
    %v3138 = vld [vmem:[%s3137] sm:$0xf]
    %v3139 = vld [vmem:[%s3137 + $0x4] sm:$0xf]
    %v3140 = vld [vmem:[%s3137 + $0x8] sm:$0xf]
    %v3141 = vld [vmem:[%s3137 + $0xc] sm:$0xf]
    %s3142 = scalar_lea.vmem %s16, 1
    %v3143 = vld [vmem:[%s3142] sm:$0x1]
    %v3145 = vlaneseq
    %v3146 = vshrl.u32 %v3145, 7
    %v3147 = vsub.s32 0, %v3146
    %v3148 = vrot.slane %v3143, %v3147
    %v3154 = vunpack.c.l.b16 %v3138
    %v3155 = vunpack.c.l.b16 %v3139
    %v3156 = vunpack.c.l.b16 %v3140
    %v3157 = vunpack.c.l.b16 %v3141
    %v3158 = vpack.c.b16 %v3155, %v3154
    %v3159 = vpack.c.b16 %v3157, %v3156
    %v3163 = vsel %vm325, %v3135, 0
    %v3166 = vsel %vm325, %v3136, 0
    %3168 = vmatprep.subr.bf16.mxu0 0
    %3169 = vmatpush1.bf16.msra.mxu0 %v3158
    %3170 = vmatprep.subr.bf16.mxu0 0
    %3171 = vmatpush1.bf16.msra.mxu0 %v3159
    %3172 = vmatprep.subr.bf16.mxu0 0
    %3173 = vmatpush1.bf16.msra.mxu0 0
    %3174 = vmatprep.subr.bf16.mxu0 0
    %3175 = vmatpush1.bf16.msra.mxu0 0
    %3176 = vmatprep.subr.bf16.mxu0 0
    %3177 = vmatpush1.bf16.msra.mxu0 0
    %3178 = vmatprep.subr.bf16.mxu0 0
    %3179 = vmatpush1.bf16.msra.mxu0 0
    %3180 = vmatprep.subr.bf16.mxu0 0
    %3181 = vmatpush1.bf16.msra.mxu0 0
    %3182 = vmatprep.subr.bf16.mxu0 0
    %3183 = vmatpush1.bf16.msra.mxu0 0
    %3184 = vmatprep.subr.bf16.mxu0 0
    %3185 = vmatpush1.bf16.msra.mxu0 0
    %3186 = vmatprep.subr.bf16.mxu0 0
    %3187 = vmatpush1.bf16.msra.mxu0 0
    %3188 = vmatprep.subr.bf16.mxu0 0
    %3189 = vmatpush1.bf16.msra.mxu0 0
    %3190 = vmatprep.subr.bf16.mxu0 0
    %3191 = vmatpush1.bf16.msra.mxu0 0
    %3192 = vmatprep.subr.bf16.mxu0 0
    %3193 = vmatpush1.bf16.msra.mxu0 0
    %3194 = vmatprep.subr.bf16.mxu0 0
    %3195 = vmatpush1.bf16.msra.mxu0 0
    %3196 = vmatprep.subr.bf16.mxu0 0
    %3197 = vmatpush1.bf16.msra.mxu0 0
    %3198 = vmatprep.subr.bf16.mxu0 0
    %3199 = vmatpush1.bf16.msra.mxu0 0
    %3200 = vmatprep.mubr.bf16.mxu0 0
    %3201 = vmatmul.mubr.bf16.gmra.mrb[0].mxu0 %v3163
    %v3202 = vpop.f32.mrb[0].mxu0
    %v3203 = vadd.f32 %v3148, %v3202
    %v3204 = vpop.f32.mrb[0].mxu0
    %v3205 = vpop.f32.mrb[0].mxu0
    %v3206 = vadd.f32 %v3148, %v3205
    %v3207 = vpop.f32.mrb[0].mxu0
    %3208 = vmatprep.mubr.bf16.mxu0 0
    %3209 = vmatmul.mubr.bf16.gmra.mrb[0].mxu0 %v3166
    %v3210 = vpop.f32.mrb[0].mxu0
    %v3211 = vadd.f32 %v3148, %v3210
    %v3212 = vpop.f32.mrb[0].mxu0
    %v3213 = vpop.f32.mrb[0].mxu0
    %v3214 = vadd.f32 %v3148, %v3213
    %v3215 = vpop.f32.mrb[0].mxu0
    %3216 = vdwg.mxu0
    %v3217 = vmax.f32 %v3203, 0.0
    %v3218 = vmax.f32 %v3206, 0.0
    %v3219 = vmax.f32 %v3211, 0.0
    %v3220 = vmax.f32 %v3214, 0.0
    %v3221 = vpack.c.bf16 %v3218, %v3217
    %v3222 = vpack.c.bf16 %v3220, %v3219
    %s3223 = scalar_lea.vmem %s17, 32
    %v3224 = vld [vmem:[%s3223] sm:$0xf]
    %v3225 = vld [vmem:[%s3223 + $0x4] sm:$0xf]
    %v3226 = vld [vmem:[%s3223 + $0x8] sm:$0xf]
    %v3227 = vld [vmem:[%s3223 + $0xc] sm:$0xf]
    %v3228 = vld [vmem:[%s3223 + $0x10] sm:$0xf]
    %v3229 = vld [vmem:[%s3223 + $0x14] sm:$0xf]
    %v3230 = vld [vmem:[%s3223 + $0x18] sm:$0xf]
    %v3231 = vld [vmem:[%s3223 + $0x1c] sm:$0xf]
    %s3232 = scalar_lea.vmem %s18, 1
    %v3233 = vld [vmem:[%s3232] sm:$0x1]
    %v3235 = vlaneseq
    %v3236 = vshrl.u32 %v3235, 7
    %v3237 = vsub.s32 0, %v3236
    %v3238 = vrot.slane %v3233, %v3237
    %v3248 = vunpack.c.l.b16 %v3224
    %v3249 = vunpack.c.l.b16 %v3225
    %v3250 = vunpack.c.l.b16 %v3226
    %v3251 = vunpack.c.l.b16 %v3227
    %v3252 = vunpack.c.l.b16 %v3228
    %v3253 = vunpack.c.l.b16 %v3229
    %v3254 = vunpack.c.l.b16 %v3230
    %v3255 = vunpack.c.l.b16 %v3231
    %v3256 = vpack.c.b16 %v3249, %v3248
    %v3257 = vpack.c.b16 %v3251, %v3250
    %v3258 = vpack.c.b16 %v3253, %v3252
    %v3259 = vpack.c.b16 %v3255, %v3254
    %v3265 = vsel %vm135, %v3221, 0
    %v3268 = vsel %vm135, %v3222, 0
    %3270 = vmatprep.subr.bf16.mxu0 0
    %3271 = vmatpush1.bf16.msra.mxu0 %v3256
    %3272 = vmatprep.subr.bf16.mxu0 0
    %3273 = vmatpush1.bf16.msra.mxu0 %v3257
    %3274 = vmatprep.subr.bf16.mxu0 0
    %3275 = vmatpush1.bf16.msra.mxu0 %v3258
    %3276 = vmatprep.subr.bf16.mxu0 0
    %3277 = vmatpush1.bf16.msra.mxu0 %v3259
    %3278 = vmatprep.subr.bf16.mxu0 0
    %3279 = vmatpush1.bf16.msra.mxu0 0
    %3280 = vmatprep.subr.bf16.mxu0 0
    %3281 = vmatpush1.bf16.msra.mxu0 0
    %3282 = vmatprep.subr.bf16.mxu0 0
    %3283 = vmatpush1.bf16.msra.mxu0 0
    %3284 = vmatprep.subr.bf16.mxu0 0
    %3285 = vmatpush1.bf16.msra.mxu0 0
    %3286 = vmatprep.subr.bf16.mxu0 0
    %3287 = vmatpush1.bf16.msra.mxu0 0
    %3288 = vmatprep.subr.bf16.mxu0 0
    %3289 = vmatpush1.bf16.msra.mxu0 0
    %3290 = vmatprep.subr.bf16.mxu0 0
    %3291 = vmatpush1.bf16.msra.mxu0 0
    %3292 = vmatprep.subr.bf16.mxu0 0
    %3293 = vmatpush1.bf16.msra.mxu0 0
    %3294 = vmatprep.subr.bf16.mxu0 0
    %3295 = vmatpush1.bf16.msra.mxu0 0
    %3296 = vmatprep.subr.bf16.mxu0 0
    %3297 = vmatpush1.bf16.msra.mxu0 0
    %3298 = vmatprep.subr.bf16.mxu0 0
    %3299 = vmatpush1.bf16.msra.mxu0 0
    %3300 = vmatprep.subr.bf16.mxu0 0
    %3301 = vmatpush1.bf16.msra.mxu0 0
    %3302 = vmatprep.mubr.bf16.mxu0 0
    %3303 = vmatmul.mubr.bf16.gmra.mrb[0].mxu0 %v3265
    %v3304 = vpop.f32.mrb[0].mxu0
    %v3305 = vadd.f32 %v3238, %v3304
    %v3306 = vpop.f32.mrb[0].mxu0
    %v3307 = vpop.f32.mrb[0].mxu0
    %v3308 = vadd.f32 %v3238, %v3307
    %v3309 = vpop.f32.mrb[0].mxu0
    %3310 = vmatprep.mubr.bf16.mxu0 0
    %3311 = vmatmul.mubr.bf16.gmra.mrb[0].mxu0 %v3268
    %v3312 = vpop.f32.mrb[0].mxu0
    %v3313 = vadd.f32 %v3238, %v3312
    %v3314 = vpop.f32.mrb[0].mxu0
    %v3315 = vpop.f32.mrb[0].mxu0
    %v3316 = vadd.f32 %v3238, %v3315
    %v3317 = vpop.f32.mrb[0].mxu0
    %3318 = vdwg.mxu0
    %v3319 = vadd.f32 %v3131, %v3305
    %v3320 = vadd.f32 %v3132, %v3308
    %v3321 = vadd.f32 %v3133, %v3313
    %v3322 = vadd.f32 %v3134, %v3316
    %s3323 = scalar_lea.vmem %s21, 1
    %v3324 = vld [vmem:[%s3323] sm:$0x1]
    %s3325 = scalar_lea.vmem %s22, 1
    %v3326 = vld [vmem:[%s3325] sm:$0x1]
    %v3327 = vsel %vm325, %v3319, 0.0
    %3328 = vadd.xlane.f32.xlu0 %v3327
    %v3329 = vpop.xlane.xlu0 %3328
    %v3330 = vsel %vm325, %v3320, 0.0
    %3331 = vadd.xlane.f32.xlu0 %v3330
    %v3332 = vpop.xlane.xlu0 %3331
    %v3333 = vsel %vm325, %v3321, 0.0
    %3334 = vadd.xlane.f32.xlu0 %v3333
    %v3335 = vpop.xlane.xlu0 %3334
    %v3336 = vsel %vm325, %v3322, 0.0
    %3337 = vadd.xlane.f32.xlu0 %v3336
    %v3338 = vpop.xlane.xlu0 %3337
    %v3339 = vmul.f32 %v3329, %v1605
    %v3340 = vmul.f32 %v3332, %v1605
    %v3341 = vmul.f32 %v3335, %v1605
    %v3342 = vmul.f32 %v3338, %v1605
    %v3343 = vsub.f32 %v3319, %v3339
    %v3344 = vsub.f32 %v3320, %v3340
    %v3345 = vsub.f32 %v3321, %v3341
    %v3346 = vsub.f32 %v3322, %v3342
    %v3347 = vmul.f32 %v3343, %v3343
    %v3348 = vmul.f32 %v3344, %v3344
    %v3349 = vmul.f32 %v3345, %v3345
    %v3350 = vmul.f32 %v3346, %v3346
    %v3351 = vsel %vm325, %v3347, 0.0
    %3352 = vadd.xlane.f32.xlu0 %v3351
    %v3353 = vpop.xlane.xlu0 %3352
    %v3354 = vsel %vm325, %v3348, 0.0
    %3355 = vadd.xlane.f32.xlu0 %v3354
    %v3356 = vpop.xlane.xlu0 %3355
    %v3357 = vsel %vm325, %v3349, 0.0
    %3358 = vadd.xlane.f32.xlu0 %v3357
    %v3359 = vpop.xlane.xlu0 %3358
    %v3360 = vsel %vm325, %v3350, 0.0
    %3361 = vadd.xlane.f32.xlu0 %v3360
    %v3362 = vpop.xlane.xlu0 %3361
    %v3363 = vmul.f32 %v3353, %v1605
    %v3364 = vmul.f32 %v3356, %v1605
    %v3365 = vmul.f32 %v3359, %v1605
    %v3366 = vmul.f32 %v3362, %v1605
    %v3367 = vadd.f32 %v3363, 1e-05
    %v3368 = vadd.f32 %v3364, 1e-05
    %v3369 = vadd.f32 %v3365, 1e-05
    %v3370 = vadd.f32 %v3366, 1e-05
    %v3371 = vrsqrt.pop %v3367
    %v3372 = vrsqrt.pop %v3368
    %v3373 = vrsqrt.pop %v3369
    %v3374 = vrsqrt.pop %v3370
    %v3375 = vmul.f32 %v3343, %v3371
    %v3376 = vmul.f32 %v3344, %v3372
    %v3377 = vmul.f32 %v3345, %v3373
    %v3378 = vmul.f32 %v3346, %v3374
    %v3380 = vlaneseq
    %v3381 = vshrl.u32 %v3380, 7
    %v3382 = vsub.s32 0, %v3381
    %v3383 = vrot.slane %v3324, %v3382
    %v3385 = vmul.f32 %v3375, %v3383
    %v3386 = vmul.f32 %v3376, %v3383
    %v3387 = vmul.f32 %v3377, %v3383
    %v3388 = vmul.f32 %v3378, %v3383
    %v3390 = vlaneseq
    %v3391 = vshrl.u32 %v3390, 7
    %v3392 = vsub.s32 0, %v3391
    %v3393 = vrot.slane %v3326, %v3392
    %v3395 = vadd.f32 %v3385, %v3393
    %v3396 = vadd.f32 %v3386, %v3393
    %v3397 = vadd.f32 %v3387, %v3393
    %v3398 = vadd.f32 %v3388, %v3393
    %v3399 = vld [vmem:[%s10] sm:$0x3]
    %v3401 = vsel %vm325, %v3399, 0
    %3403 = vmatprep.subr.mxu0 0.0
    %3404 = vmatpush1.msra.mxu0 %v3395
    %3405 = vmatprep.subr.mxu0 0.0
    %3406 = vmatpush1.msra.mxu0 %v3396
    %3407 = vmatprep.subr.mxu0 0.0
    %3408 = vmatpush1.msra.mxu0 %v3397
    %3409 = vmatprep.subr.mxu0 0.0
    %3410 = vmatpush1.msra.mxu0 %v3398
    %3411 = vmatprep.subr.mxu0 0.0
    %3412 = vmatpush1.msra.mxu0 0.0
    %3413 = vmatprep.subr.mxu0 0.0
    %3414 = vmatpush1.msra.mxu0 0.0
    %3415 = vmatprep.subr.mxu0 0.0
    %3416 = vmatpush1.msra.mxu0 0.0
    %3417 = vmatprep.subr.mxu0 0.0
    %3418 = vmatpush1.msra.mxu0 0.0
    %3419 = vmatprep.subr.mxu0 0.0
    %3420 = vmatpush1.msra.mxu0 0.0
    %3421 = vmatprep.subr.mxu0 0.0
    %3422 = vmatpush1.msra.mxu0 0.0
    %3423 = vmatprep.subr.mxu0 0.0
    %3424 = vmatpush1.msra.mxu0 0.0
    %3425 = vmatprep.subr.mxu0 0.0
    %3426 = vmatpush1.msra.mxu0 0.0
    %3427 = vmatprep.subr.mxu0 0.0
    %3428 = vmatpush1.msra.mxu0 0.0
    %3429 = vmatprep.subr.mxu0 0.0
    %3430 = vmatpush1.msra.mxu0 0.0
    %3431 = vmatprep.subr.mxu0 0.0
    %3432 = vmatpush1.msra.mxu0 0.0
    %3433 = vmatprep.subr.mxu0 0.0
    %3434 = vmatpush1.msra.mxu0 0.0
    %3435 = vmatprep.subr.mxu0 0.0
    %3436 = vmatpush1.msra.mxu0 0.0
    %3437 = vmatprep.subr.mxu0 0.0
    %3438 = vmatpush1.msra.mxu0 0.0
    %3439 = vmatprep.subr.mxu0 0.0
    %3440 = vmatpush1.msra.mxu0 0.0
    %3441 = vmatprep.subr.mxu0 0.0
    %3442 = vmatpush1.msra.mxu0 0.0
    %3443 = vmatprep.subr.mxu0 0.0
    %3444 = vmatpush1.msra.mxu0 0.0
    %3445 = vmatprep.subr.mxu0 0.0
    %3446 = vmatpush1.msra.mxu0 0.0
    %3447 = vmatprep.subr.mxu0 0.0
    %3448 = vmatpush1.msra.mxu0 0.0
    %3449 = vmatprep.subr.mxu0 0.0
    %3450 = vmatpush1.msra.mxu0 0.0
    %3451 = vmatprep.subr.mxu0 0.0
    %3452 = vmatpush1.msra.mxu0 0.0
    %3453 = vmatprep.subr.mxu0 0.0
    %3454 = vmatpush1.msra.mxu0 0.0
    %3455 = vmatprep.subr.mxu0 0.0
    %3456 = vmatpush1.msra.mxu0 0.0
    %3457 = vmatprep.subr.mxu0 0.0
    %3458 = vmatpush1.msra.mxu0 0.0
    %3459 = vmatprep.subr.mxu0 0.0
    %3460 = vmatpush1.msra.mxu0 0.0
    %3461 = vmatprep.subr.mxu0 0.0
    %3462 = vmatpush1.msra.mxu0 0.0
    %3463 = vmatprep.subr.mxu0 0.0
    %3464 = vmatpush1.msra.mxu0 0.0
    %3465 = vmatprep.subr.mxu0 0.0
    %3466 = vmatpush1.msra.mxu0 0.0
    %3467 = vmatprep.mubr.f32.mxu0 0.0
    %3468 = vmatmul.mubr.f32.gmra.mrb[0].mxu0 %v3401
    %v3469 = vpop.f32.mrb[0].mxu0
    %v3470 = vadd.f32 0.0, %v3469
    %v3471 = vpop.f32.mrb[0].mxu0
    %3472 = vdwg.mxu0
    %v3473 = vpack.c.bf16 %v3470, %v3470
    %v3474 = vld [vmem:[%s23] sm:$0xf]
    %v3475 = vld [vmem:[%s23 + $0x4] sm:$0xf]
    %v3476 = vld [vmem:[%s23 + $0x8] sm:$0xf]
    %v3477 = vld [vmem:[%s23 + $0xc] sm:$0xf]
    %v3478 = vld [vmem:[%s24] sm:$0x1]
    %v3480 = vlaneseq
    %v3481 = vshrl.u32 %v3480, 7
    %v3482 = vsub.s32 0, %v3481
    %v3483 = vrot.slane %v3478, %v3482
    %v3489 = vunpack.c.l.b16 %v3474
    %v3490 = vunpack.c.l.b16 %v3475
    %v3491 = vunpack.c.l.b16 %v3476
    %v3492 = vunpack.c.l.b16 %v3477
    %v3493 = vpack.c.b16 %v3490, %v3489
    %v3494 = vpack.c.b16 %v3492, %v3491
    %v3498 = vsel %vm325, %v3473, 0
    %3500 = vmatprep.subr.bf16.mxu0 0
    %3501 = vmatpush1.bf16.msra.mxu0 %v3493
    %3502 = vmatprep.subr.bf16.mxu0 0
    %3503 = vmatpush1.bf16.msra.mxu0 %v3494
    %3504 = vmatprep.subr.bf16.mxu0 0
    %3505 = vmatpush1.bf16.msra.mxu0 0
    %3506 = vmatprep.subr.bf16.mxu0 0
    %3507 = vmatpush1.bf16.msra.mxu0 0
    %3508 = vmatprep.subr.bf16.mxu0 0
    %3509 = vmatpush1.bf16.msra.mxu0 0
    %3510 = vmatprep.subr.bf16.mxu0 0
    %3511 = vmatpush1.bf16.msra.mxu0 0
    %3512 = vmatprep.subr.bf16.mxu0 0
    %3513 = vmatpush1.bf16.msra.mxu0 0
    %3514 = vmatprep.subr.bf16.mxu0 0
    %3515 = vmatpush1.bf16.msra.mxu0 0
    %3516 = vmatprep.subr.bf16.mxu0 0
    %3517 = vmatpush1.bf16.msra.mxu0 0
    %3518 = vmatprep.subr.bf16.mxu0 0
    %3519 = vmatpush1.bf16.msra.mxu0 0
    %3520 = vmatprep.subr.bf16.mxu0 0
    %3521 = vmatpush1.bf16.msra.mxu0 0
    %3522 = vmatprep.subr.bf16.mxu0 0
    %3523 = vmatpush1.bf16.msra.mxu0 0
    %3524 = vmatprep.subr.bf16.mxu0 0
    %3525 = vmatpush1.bf16.msra.mxu0 0
    %3526 = vmatprep.subr.bf16.mxu0 0
    %3527 = vmatpush1.bf16.msra.mxu0 0
    %3528 = vmatprep.subr.bf16.mxu0 0
    %3529 = vmatpush1.bf16.msra.mxu0 0
    %3530 = vmatprep.subr.bf16.mxu0 0
    %3531 = vmatpush1.bf16.msra.mxu0 0
    %3532 = vmatprep.mubr.bf16.mxu0 0
    %3533 = vmatmul.mubr.bf16.gmra.mrb[0].mxu0 %v3498
    %v3534 = vpop.f32.mrb[0].mxu0
    %v3535 = vadd.f32 %v3483, %v3534
    %v3536 = vpop.f32.mrb[0].mxu0
    %v3537 = vpop.f32.mrb[0].mxu0
    %v3538 = vpop.f32.mrb[0].mxu0
    %3539 = vdwg.mxu0
    %3540 = vst [vmem:[#allocation2] sm:$0x3] %v3535
    // Predicated region
    $region102: #{vit_forward.1} parent=1 // pred_check
      _
    $region103: #{vit_forward.1} parent=1 // pred_check_branch
      %3542 = sbr.rel (0) target = $region105
    $region104: #{vit_forward.1} parent=1 // pred_region
      %s3544 = ssub.s32 32, 32
      %3545 = vsyncadd [#allocation3], %s3544
      %s3547 = sshll.u32 [#allocation2], 4
      %s3548 = int_to_ptr.vmem [resolvable:$true] %s3547
      %3550 = dma.vmem_to_hbm [thread:$0]  %s3548, 32, %s25, [#allocation3]
    $region105: #{vit_forward.1} parent=1 // pred_fallthru
      _
    // Predicated region
    $region106: #{vit_forward.1} parent=1 // pred_check
      _
    $region107: #{vit_forward.1} parent=1 // pred_check_branch
      %3552 = sbr.rel (0) target = $region109
    $region108: #{vit_forward.1} parent=1 // pred_region
      %3553 = dma.done [#allocation3], 32
    $region109: #{vit_forward.1} parent=1 // pred_fallthru
      _
    %3554 = vsyncpa [#allocation3], 1

</llo_original>
